<compile_context>
chip_gen: v5e
topology: v5e:2x2
jax: 0.10.0
libtpu: 0.0.40
codegen_flags: <defaults>
</compile_context>

<pallas_src>
import functools

import jax
import jax.numpy as jnp
from jax.experimental import pallas as pl
from jax.experimental.pallas import tpu as pltpu


def _round_up(v, m):
    return (v + m - 1) // m * m


def _attention_kernel(xy_ref, z_ref, w_ref, wf_ref, o_ref, v_ref, *,
                      n, cqp, nvp, s, hw, d, out_chunk):
    """Single grid point; all operands resident in VMEM.

    xy_ref: (N, Cxyp, S) bf16       [x ; y] channels, batch-major (no transpose)
    z_ref : (N, Czp,  HW) bf16      z is never depth-replicated in HBM
    w_ref : (Rp, Czp+Cxyp) bf16     fused [wq ; wk ; wv] rows, [z | xy] columns
    wf_ref: (8, 8) f32              padded final 1x1x1 conv weight
    o_ref : (N, 8, S) bf16          padded output channels (wrapper keeps 3)
    v_ref : (N, 8, S) f32 scratch   relu'd v projection (the only rows reused)
    """
    w = w_ref[...]                                   # (Rp, Czp+Cxyp) bf16
    z_chunks = [z_ref[b] for b in range(n)]          # (Czp, HW) bf16, reused per depth

    # ---- Stage 1 + 2 fused.  Per (depth, batch) chunk one MXU dot produces
    # the whole q/k/v projection in registers (z folded into the contraction
    # via an in-VMEM concat), ReLU'd, the v rows stored exactly once, and the
    # q.k lane-partials accumulated while the chunk is still in vregs.
    acc = [[jnp.zeros((1, hw), jnp.float32) for _ in range(n)] for _ in range(n)]
    for dd in range(d):
        lo = dd * hw
        p_chunks = []
        for b in range(n):
            aug = jnp.concatenate(
                [z_chunks[b], xy_ref[b, :, lo:lo + hw]], axis=0)   # (Czp+Cxyp, HW) bf16
            p = jnp.maximum(
                jnp.dot(w, aug, preferred_element_type=jnp.float32), 0.0)  # (Rp, HW) f32
            v_ref[b, :, lo:lo + hw] = p[2 * cqp:2 * cqp + nvp, :]  # single scratch store
            p_chunks.append(p)
        for a in range(n):
            q_a = p_chunks[a][0:cqp, :]
            for b2 in range(n):
                k_b = p_chunks[b2][cqp:2 * cqp, :]
                # Sublane reduce only (XLU); cross-lane reduce deferred to the end.
                acc[a][b2] = acc[a][b2] + jnp.sum(q_a * k_b, axis=0, keepdims=True)

    # ---- Finalize q_k: one small cross-lane reduce per pair, ReLU, scatter
    # into an (8, 8) MXU operand (padded rows/cols stay exactly zero).
    row_i = jax.lax.broadcasted_iota(jnp.int32, (nvp, nvp), 0)
    col_i = jax.lax.broadcasted_iota(jnp.int32, (nvp, nvp), 1)
    qk8 = jnp.zeros((nvp, nvp), jnp.float32)
    for a in range(n):
        for b2 in range(n):
            qk_ab = jnp.maximum(jnp.sum(acc[a][b2]), 0.0)
            qk8 = qk8 + jnp.where((row_i == a) & (col_i == b2), qk_ab, 0.0)

    # ---- Stage 3: q_k is batch-invariant, computed once; apply + final conv
    # run as lane-dense (8,8)@(8,CH) matmuls (chunked only to bound live vregs).
    wf8 = wf_ref[...]
    for b in range(n):
        for lo in range(0, s, out_chunk):
            v_c = v_ref[b, :, lo:lo + out_chunk]                         # (8, CH) f32
            h_c = jnp.maximum(
                jnp.dot(qk8, v_c, preferred_element_type=jnp.float32), 0.0)
            o_ref[b, :, lo:lo + out_chunk] = jnp.dot(
                wf8, h_c, preferred_element_type=jnp.float32).astype(o_ref.dtype)


def prepare_weights(wq, wk, wv, wf, *, n, cx, cy, cz):
    """Builds the fused/padded bf16 projection weight and the padded final-conv
    weight.  Depends only on the weights: hoist / cache across forward calls."""
    c = cx + cy + cz
    cxy = cx + cy
    cxyp = _round_up(cxy, 8)
    czp = _round_up(cz, 16)      # z leads the fused operand; 16-align the bf16 boundary
    cqp = _round_up(c, 8)
    nvp = 8
    rp = 2 * cqp + nvp
    assert n <= nvp and wf.shape[0] <= nvp and wf.shape[1] == n

    # Row-stack [wq ; wk ; wv] (zero-padded rows), columns in torch concat
    # order [x | y | z].
    w_all = jnp.zeros((rp, c), jnp.float32)
    w_all = w_all.at[0:c, :].set(wq.astype(jnp.float32))
    w_all = w_all.at[cqp:cqp + c, :].set(wk.astype(jnp.float32))
    w_all = w_all.at[2 * cqp:2 * cqp + n, :].set(wv.astype(jnp.float32))

    # Permute columns into the kernel operand order [z | xy] (zero-padded).
    w_fused = jnp.zeros((rp, czp + cxyp), jnp.float32)
    w_fused = w_fused.at[:, 0:cz].set(w_all[:, cxy:c])
    w_fused = w_fused.at[:, czp:czp + cxy].set(w_all[:, 0:cxy])
    w_fused = w_fused.astype(jnp.bfloat16)

    wf8 = jnp.zeros((nvp, nvp), jnp.float32).at[:wf.shape[0], :n].set(
        wf.astype(jnp.float32))
    return w_fused, wf8


def conv3d_attention_apply(x, y, z, w_fused, wf8):
    """x: (N, Cx, 8, H, W), y: (N, Cy, 8, H, W), z: (N, Cz, H, W)."""
    n, cx, d, hh, ww = x.shape
    cy, cz = y.shape[1], z.shape[1]
    assert d == 8, "z is stacked 8x along depth in the torch forward, so D must be 8"
    assert y.shape == (n, cy, d, hh, ww) and z.shape == (n, cz, hh, ww)
    c = cx + cy + cz
    hw = hh * ww
    s = d * hw
    assert hw % 128 == 0, "H*W must be lane-aligned for the depth-chunked kernel"

    cxy = cx + cy
    cxyp = _round_up(cxy, 8)
    czp = _round_up(cz, 16)
    cqp = _round_up(c, 8)
    nvp = 8
    rp = 2 * cqp + nvp
    assert n <= nvp
    assert w_fused.shape == (rp, czp + cxyp) and wf8.shape == (nvp, nvp)

    # Batch-major channel layout: reshape + channel-pad + bf16 cast only; no
    # (N, C, S) -> (C, N*S) transpose pass over the activations in HBM.
    xy = jnp.concatenate([x.reshape(n, cx, s), y.reshape(n, cy, s)], axis=1)
    xy = jnp.pad(xy, ((0, 0), (0, cxyp - cxy), (0, 0))).astype(jnp.bfloat16)
    z2 = jnp.pad(z.reshape(n, cz, hw),
                 ((0, 0), (0, czp - cz), (0, 0))).astype(jnp.bfloat16)

    out_chunk = 512  # s = 8*H*W is a multiple of 1024, so this always divides s
    kernel = functools.partial(_attention_kernel, n=n, cqp=cqp, nvp=nvp, s=s,
                               hw=hw, d=d, out_chunk=out_chunk)

    flops = (2 * rp * (czp + cxyp) * n * s        # fused q/k/v projection
             + 3 * cqp * n * n * s                # q.k products + reduction
             + 2 * 2 * nvp * nvp * n * s)         # h and final 1x1x1 conv
    bytes_accessed = (xy.size * 2 + z2.size * 2 + w_fused.size * 2
                      + wf8.size * 4 + n * nvp * s * 2)

    out = pl.pallas_call(
        kernel,
        out_shape=jax.ShapeDtypeStruct((n, nvp, s), jnp.bfloat16),
        in_specs=[pl.BlockSpec(memory_space=pltpu.MemorySpace.VMEM)] * 4,
        out_specs=pl.BlockSpec(memory_space=pltpu.MemorySpace.VMEM),
        scratch_shapes=[pltpu.VMEM((n, nvp, s), jnp.float32)],
        compiler_params=pltpu.CompilerParams(vmem_limit_bytes=32 * 1024 * 1024),
        cost_estimate=pl.CostEstimate(flops=flops, transcendentals=0,
                                      bytes_accessed=bytes_accessed),
    )(xy, z2, w_fused, wf8)

    # Only 3 output channels are real (8-row padding keeps in-kernel stores
    # full-sublane); restore NCDHW.
    return out[:, :3, :].astype(jnp.float32).reshape(n, 3, d, hh, ww)


def conv3d_attention_block(x, y, z, wq, wk, wv, wf):
    """Convenience wrapper (weight prep + kernel).  In production call
    prepare_weights() once and reuse its outputs across forward calls."""
    n, cx = x.shape[0], x.shape[1]
    cy, cz = y.shape[1], z.shape[1]
    w_fused, wf8 = prepare_weights(wq, wk, wv, wf, n=n, cx=cx, cy=cy, cz=cz)
    return conv3d_attention_apply(x, y, z, w_fused, wf8)


def reference(x, y, z, wq, wk, wv, wf):
    """Pure-JAX reference mirroring the torch forward.

    Inputs and projection weights are rounded to bf16 (exactly what the kernel
    stores in VMEM); all contractions run at HIGHEST precision with f32
    accumulation, matching the kernel's f32 accumulators.
    """
    hi = jax.lax.Precision.HIGHEST
    q8 = lambda a: a.astype(jnp.bfloat16).astype(jnp.float32)
    x, y, z, wq, wk, wv = map(q8, (x, y, z, wq, wk, wv))
    n, _, d, hh, ww = x.shape
    z_rep = jnp.broadcast_to(z[:, :, None, :, :], (n, z.shape[1], d, hh, ww))
    xc = jnp.concatenate([x, y, z_rep], axis=1)
    c = xc.shape[1]
    xf = xc.reshape(n, c, d * hh * ww)
    q = jax.nn.relu(jnp.einsum('oc,ncs->nos', wq, xf, precision=hi))
    k = jax.nn.relu(jnp.einsum('oc,ncs->nos', wk, xf, precision=hi))
    v = jax.nn.relu(jnp.einsum('oc,ncs->nos', wv, xf, precision=hi))
    qk = jax.nn.relu(jnp.einsum('ncs,mcs->nm', q, k, precision=hi))   # conv3d(q, k) full extent
    h = jax.nn.relu(jnp.einsum('mj,njs->nms', qk, v, precision=hi))   # conv3d(v, q_k) 1x1x1
    out = jnp.einsum('om,nms->nos', wf.astype(jnp.float32), h, precision=hi)
    return out.reshape(n, 3, d, hh, ww)


if __name__ == "__main__":
    key = jax.random.PRNGKey(0)
    kx, ky, kz, k1, k2, k3, k4 = jax.random.split(key, 7)

    # Small shapes consistent with the forward: D must be 8 (z stacked 8x along depth).
    N, Cx, Cy, Cz, D, H, W = 2, 4, 4, 2, 8, 16, 16
    x = jax.random.normal(kx, (N, Cx, D, H, W), jnp.float32)
    y = jax.random.normal(ky, (N, Cy, D, H, W), jnp.float32)
    z = jax.random.normal(kz, (N, Cz, H, W), jnp.float32)

    C = Cx + Cy + Cz
    # Deterministic stand-ins for the nn.Parameter(torch.randn(...)) weights
    # created inside the torch forward (scaled for numerical sanity).
    wq = jax.random.normal(k1, (C, C), jnp.float32) * 0.1   # (C, C, 1, 1, 1)
    wk = jax.random.normal(k2, (C, C), jnp.float32) * 0.1   # (C, C, 1, 1, 1)
    wv = jax.random.normal(k3, (N, C), jnp.float32) * 0.1   # (N, C, 1, 1, 1)
    wf = jax.random.normal(k4, (3, N), jnp.float32) * 0.1   # (3, N, 1, 1, 1)

    out = conv3d_attention_block(x, y, z, wq, wk, wv, wf)
    out = jax.block_until_ready(out)

    ref = reference(x, y, z, wq, wk, wv, wf)
    assert out.shape == (N, 3, D, H, W), out.shape
    err = float(jnp.max(jnp.abs(out - ref)))
    scale = float(jnp.max(jnp.abs(ref))) + 1.0
    assert err <= 1e-2 * scale, f"mismatch: max_abs_err={err}, scale={scale}"
    print("KERNEL_OK")
</pallas_src>

<mosaic_0001>
module attributes {stable_mosaic.version = 11 : i64} {
  func.func @_attention_kernel(%arg0: memref<2x8x2048xbf16, #tpu.memory_space<vmem>>, %arg1: memref<2x16x256xbf16, #tpu.memory_space<vmem>>, %arg2: memref<40x24xbf16, #tpu.memory_space<vmem>>, %arg3: memref<8x8xf32, #tpu.memory_space<vmem>>, %arg4: memref<2x8x2048xbf16, #tpu.memory_space<vmem>>, %arg5: memref<2x8x2048xf32, #tpu.memory_space<vmem>>) attributes {dimension_semantics = [], scalar_prefetch = 0 : i64, scratch_operands = 1 : i64, tpu.core_type = #tpu.core_type<tc>} {
    %c0 = arith.constant 0 : index
    %c0_0 = arith.constant 0 : index
    %0 = vector.load %arg2[%c0, %c0_0] : memref<40x24xbf16, #tpu.memory_space<vmem>>, vector<40x24xbf16>
    %c0_1 = arith.constant 0 : index
    %c0_2 = arith.constant 0 : index
    %c0_3 = arith.constant 0 : index
    %1 = vector.load %arg1[%c0_1, %c0_2, %c0_3] : memref<2x16x256xbf16, #tpu.memory_space<vmem>>, vector<1x16x256xbf16>
    %2 = vector.shape_cast %1 : vector<1x16x256xbf16> to vector<16x256xbf16>
    %c1 = arith.constant 1 : index
    %c0_4 = arith.constant 0 : index
    %c0_5 = arith.constant 0 : index
    %3 = vector.load %arg1[%c1, %c0_4, %c0_5] : memref<2x16x256xbf16, #tpu.memory_space<vmem>>, vector<1x16x256xbf16>
    %4 = vector.shape_cast %3 : vector<1x16x256xbf16> to vector<16x256xbf16>
    %cst = arith.constant 0.000000e+00 : f32
    %5 = vector.broadcast %cst : f32 to vector<1x256xf32>
    %cst_6 = arith.constant 0.000000e+00 : f32
    %6 = vector.broadcast %cst_6 : f32 to vector<1x256xf32>
    %cst_7 = arith.constant 0.000000e+00 : f32
    %7 = vector.broadcast %cst_7 : f32 to vector<1x256xf32>
    %cst_8 = arith.constant 0.000000e+00 : f32
    %8 = vector.broadcast %cst_8 : f32 to vector<1x256xf32>
    %c0_9 = arith.constant 0 : index
    %c0_10 = arith.constant 0 : index
    %c0_11 = arith.constant 0 : index
    %9 = vector.load %arg0[%c0_9, %c0_10, %c0_11] : memref<2x8x2048xbf16, #tpu.memory_space<vmem>>, vector<1x8x256xbf16>
    %10 = vector.shape_cast %9 : vector<1x8x256xbf16> to vector<8x256xbf16>
    %11 = tpu.concatenate %2, %10 in 0 : vector<16x256xbf16>, vector<8x256xbf16> -> vector<24x256xbf16>
    %cst_12 = arith.constant dense<0.000000e+00> : vector<40x256xf32>
    %12 = tpu.matmul %0, %11, %cst_12 {dimension_numbers = #tpu.dot_dimension_numbers<[1], [0], [0], [1], [0, 0, 1, 1], [], []>} : vector<40x24xbf16>, vector<24x256xbf16>, vector<40x256xf32> -> vector<40x256xf32>
    %cst_13 = arith.constant 0.000000e+00 : f32
    %13 = vector.broadcast %cst_13 : f32 to vector<40x256xf32>
    %14 = arith.maximumf %12, %13 : vector<40x256xf32>
    %15 = vector.extract_strided_slice %14 {offsets = [32, 0], sizes = [8, 256], strides = [1, 1]} : vector<40x256xf32> to vector<8x256xf32>
    %c0_14 = arith.constant 0 : index
    %c0_15 = arith.constant 0 : index
    %c0_16 = arith.constant 0 : index
    %16 = vector.load %arg5[%c0_14, %c0_15, %c0_16] : memref<2x8x2048xf32, #tpu.memory_space<vmem>>, vector<1x8x256xf32>
    %17 = vector.shape_cast %16 : vector<1x8x256xf32> to vector<8x256xf32>
    %18 = vector.shape_cast %15 : vector<8x256xf32> to vector<1x8x256xf32>
    tpu.vector_store %arg5[%c0_14, %c0_15, %c0_16], %18 {strides = array<i32>} : memref<2x8x2048xf32, #tpu.memory_space<vmem>>, vector<1x8x256xf32>,
    %c1_17 = arith.constant 1 : index
    %c0_18 = arith.constant 0 : index
    %c0_19 = arith.constant 0 : index
    %19 = vector.load %arg0[%c1_17, %c0_18, %c0_19] : memref<2x8x2048xbf16, #tpu.memory_space<vmem>>, vector<1x8x256xbf16>
    %20 = vector.shape_cast %19 : vector<1x8x256xbf16> to vector<8x256xbf16>
    %21 = tpu.concatenate %4, %20 in 0 : vector<16x256xbf16>, vector<8x256xbf16> -> vector<24x256xbf16>
    %cst_20 = arith.constant dense<0.000000e+00> : vector<40x256xf32>
    %22 = tpu.matmul %0, %21, %cst_20 {dimension_numbers = #tpu.dot_dimension_numbers<[1], [0], [0], [1], [0, 0, 1, 1], [], []>} : vector<40x24xbf16>, vector<24x256xbf16>, vector<40x256xf32> -> vector<40x256xf32>
    %cst_21 = arith.constant 0.000000e+00 : f32
    %23 = vector.broadcast %cst_21 : f32 to vector<40x256xf32>
    %24 = arith.maximumf %22, %23 : vector<40x256xf32>
    %25 = vector.extract_strided_slice %24 {offsets = [32, 0], sizes = [8, 256], strides = [1, 1]} : vector<40x256xf32> to vector<8x256xf32>
    %c1_22 = arith.constant 1 : index
    %c0_23 = arith.constant 0 : index
    %c0_24 = arith.constant 0 : index
    %26 = vector.load %arg5[%c1_22, %c0_23, %c0_24] : memref<2x8x2048xf32, #tpu.memory_space<vmem>>, vector<1x8x256xf32>
    %27 = vector.shape_cast %26 : vector<1x8x256xf32> to vector<8x256xf32>
    %28 = vector.shape_cast %25 : vector<8x256xf32> to vector<1x8x256xf32>
    tpu.vector_store %arg5[%c1_22, %c0_23, %c0_24], %28 {strides = array<i32>} : memref<2x8x2048xf32, #tpu.memory_space<vmem>>, vector<1x8x256xf32>,
    %29 = vector.extract_strided_slice %14 {offsets = [0, 0], sizes = [16, 256], strides = [1, 1]} : vector<40x256xf32> to vector<16x256xf32>
    %30 = vector.extract_strided_slice %14 {offsets = [16, 0], sizes = [16, 256], strides = [1, 1]} : vector<40x256xf32> to vector<16x256xf32>
    %31 = arith.mulf %29, %30 : vector<16x256xf32>
    %cst_25 = arith.constant dense<0.000000e+00> : vector<256xf32>
    %32 = vector.multi_reduction <add>, %31, %cst_25 [0] : vector<16x256xf32> to vector<256xf32>
    %33 = vector.shape_cast %32 : vector<256xf32> to vector<1x256xf32>
    %34 = arith.addf %5, %33 : vector<1x256xf32>
    %35 = vector.extract_strided_slice %24 {offsets = [16, 0], sizes = [16, 256], strides = [1, 1]} : vector<40x256xf32> to vector<16x256xf32>
    %36 = arith.mulf %29, %35 : vector<16x256xf32>
    %cst_26 = arith.constant dense<0.000000e+00> : vector<256xf32>
    %37 = vector.multi_reduction <add>, %36, %cst_26 [0] : vector<16x256xf32> to vector<256xf32>
    %38 = vector.shape_cast %37 : vector<256xf32> to vector<1x256xf32>
    %39 = arith.addf %6, %38 : vector<1x256xf32>
    %40 = vector.extract_strided_slice %24 {offsets = [0, 0], sizes = [16, 256], strides = [1, 1]} : vector<40x256xf32> to vector<16x256xf32>
    %41 = vector.extract_strided_slice %14 {offsets = [16, 0], sizes = [16, 256], strides = [1, 1]} : vector<40x256xf32> to vector<16x256xf32>
    %42 = arith.mulf %40, %41 : vector<16x256xf32>
    %cst_27 = arith.constant dense<0.000000e+00> : vector<256xf32>
    %43 = vector.multi_reduction <add>, %42, %cst_27 [0] : vector<16x256xf32> to vector<256xf32>
    %44 = vector.shape_cast %43 : vector<256xf32> to vector<1x256xf32>
    %45 = arith.addf %7, %44 : vector<1x256xf32>
    %46 = vector.extract_strided_slice %24 {offsets = [16, 0], sizes = [16, 256], strides = [1, 1]} : vector<40x256xf32> to vector<16x256xf32>
    %47 = arith.mulf %40, %46 : vector<16x256xf32>
    %cst_28 = arith.constant dense<0.000000e+00> : vector<256xf32>
    %48 = vector.multi_reduction <add>, %47, %cst_28 [0] : vector<16x256xf32> to vector<256xf32>
    %49 = vector.shape_cast %48 : vector<256xf32> to vector<1x256xf32>
    %50 = arith.addf %8, %49 : vector<1x256xf32>
    %c0_29 = arith.constant 0 : index
    %c0_30 = arith.constant 0 : index
    %c256 = arith.constant 256 : index
    %51 = vector.load %arg0[%c0_29, %c0_30, %c256] : memref<2x8x2048xbf16, #tpu.memory_space<vmem>>, vector<1x8x256xbf16>
    %52 = vector.shape_cast %51 : vector<1x8x256xbf16> to vector<8x256xbf16>
    %53 = tpu.concatenate %2, %52 in 0 : vector<16x256xbf16>, vector<8x256xbf16> -> vector<24x256xbf16>
    %cst_31 = arith.constant dense<0.000000e+00> : vector<40x256xf32>
    %54 = tpu.matmul %0, %53, %cst_31 {dimension_numbers = #tpu.dot_dimension_numbers<[1], [0], [0], [1], [0, 0, 1, 1], [], []>} : vector<40x24xbf16>, vector<24x256xbf16>, vector<40x256xf32> -> vector<40x256xf32>
    %cst_32 = arith.constant 0.000000e+00 : f32
    %55 = vector.broadcast %cst_32 : f32 to vector<40x256xf32>
    %56 = arith.maximumf %54, %55 : vector<40x256xf32>
    %57 = vector.extract_strided_slice %56 {offsets = [32, 0], sizes = [8, 256], strides = [1, 1]} : vector<40x256xf32> to vector<8x256xf32>
    %c0_33 = arith.constant 0 : index
    %c0_34 = arith.constant 0 : index
    %c256_35 = arith.constant 256 : index
    %58 = vector.load %arg5[%c0_33, %c0_34, %c256_35] : memref<2x8x2048xf32, #tpu.memory_space<vmem>>, vector<1x8x256xf32>
    %59 = vector.shape_cast %58 : vector<1x8x256xf32> to vector<8x256xf32>
    %60 = vector.shape_cast %57 : vector<8x256xf32> to vector<1x8x256xf32>
    tpu.vector_store %arg5[%c0_33, %c0_34, %c256_35], %60 {strides = array<i32>} : memref<2x8x2048xf32, #tpu.memory_space<vmem>>, vector<1x8x256xf32>,
    %c1_36 = arith.constant 1 : index
    %c0_37 = arith.constant 0 : index
    %c256_38 = arith.constant 256 : index
    %61 = vector.load %arg0[%c1_36, %c0_37, %c256_38] : memref<2x8x2048xbf16, #tpu.memory_space<vmem>>, vector<1x8x256xbf16>
    %62 = vector.shape_cast %61 : vector<1x8x256xbf16> to vector<8x256xbf16>
    %63 = tpu.concatenate %4, %62 in 0 : vector<16x256xbf16>, vector<8x256xbf16> -> vector<24x256xbf16>
    %cst_39 = arith.constant dense<0.000000e+00> : vector<40x256xf32>
    %64 = tpu.matmul %0, %63, %cst_39 {dimension_numbers = #tpu.dot_dimension_numbers<[1], [0], [0], [1], [0, 0, 1, 1], [], []>} : vector<40x24xbf16>, vector<24x256xbf16>, vector<40x256xf32> -> vector<40x256xf32>
    %cst_40 = arith.constant 0.000000e+00 : f32
    %65 = vector.broadcast %cst_40 : f32 to vector<40x256xf32>
    %66 = arith.maximumf %64, %65 : vector<40x256xf32>
    %67 = vector.extract_strided_slice %66 {offsets = [32, 0], sizes = [8, 256], strides = [1, 1]} : vector<40x256xf32> to vector<8x256xf32>
    %c1_41 = arith.constant 1 : index
    %c0_42 = arith.constant 0 : index
    %c256_43 = arith.constant 256 : index
    %68 = vector.load %arg5[%c1_41, %c0_42, %c256_43] : memref<2x8x2048xf32, #tpu.memory_space<vmem>>, vector<1x8x256xf32>
    %69 = vector.shape_cast %68 : vector<1x8x256xf32> to vector<8x256xf32>
    %70 = vector.shape_cast %67 : vector<8x256xf32> to vector<1x8x256xf32>
    tpu.vector_store %arg5[%c1_41, %c0_42, %c256_43], %70 {strides = array<i32>} : memref<2x8x2048xf32, #tpu.memory_space<vmem>>, vector<1x8x256xf32>,
    %71 = vector.extract_strided_slice %56 {offsets = [0, 0], sizes = [16, 256], strides = [1, 1]} : vector<40x256xf32> to vector<16x256xf32>
    %72 = vector.extract_strided_slice %56 {offsets = [16, 0], sizes = [16, 256], strides = [1, 1]} : vector<40x256xf32> to vector<16x256xf32>
    %73 = arith.mulf %71, %72 : vector<16x256xf32>
    %cst_44 = arith.constant dense<0.000000e+00> : vector<256xf32>
    %74 = vector.multi_reduction <add>, %73, %cst_44 [0] : vector<16x256xf32> to vector<256xf32>
    %75 = vector.shape_cast %74 : vector<256xf32> to vector<1x256xf32>
    %76 = arith.addf %34, %75 : vector<1x256xf32>
    %77 = vector.extract_strided_slice %66 {offsets = [16, 0], sizes = [16, 256], strides = [1, 1]} : vector<40x256xf32> to vector<16x256xf32>
    %78 = arith.mulf %71, %77 : vector<16x256xf32>
    %cst_45 = arith.constant dense<0.000000e+00> : vector<256xf32>
    %79 = vector.multi_reduction <add>, %78, %cst_45 [0] : vector<16x256xf32> to vector<256xf32>
    %80 = vector.shape_cast %79 : vector<256xf32> to vector<1x256xf32>
    %81 = arith.addf %39, %80 : vector<1x256xf32>
    %82 = vector.extract_strided_slice %66 {offsets = [0, 0], sizes = [16, 256], strides = [1, 1]} : vector<40x256xf32> to vector<16x256xf32>
    %83 = vector.extract_strided_slice %56 {offsets = [16, 0], sizes = [16, 256], strides = [1, 1]} : vector<40x256xf32> to vector<16x256xf32>
    %84 = arith.mulf %82, %83 : vector<16x256xf32>
    %cst_46 = arith.constant dense<0.000000e+00> : vector<256xf32>
    %85 = vector.multi_reduction <add>, %84, %cst_46 [0] : vector<16x256xf32> to vector<256xf32>
    %86 = vector.shape_cast %85 : vector<256xf32> to vector<1x256xf32>
    %87 = arith.addf %45, %86 : vector<1x256xf32>
    %88 = vector.extract_strided_slice %66 {offsets = [16, 0], sizes = [16, 256], strides = [1, 1]} : vector<40x256xf32> to vector<16x256xf32>
    %89 = arith.mulf %82, %88 : vector<16x256xf32>
    %cst_47 = arith.constant dense<0.000000e+00> : vector<256xf32>
    %90 = vector.multi_reduction <add>, %89, %cst_47 [0] : vector<16x256xf32> to vector<256xf32>
    %91 = vector.shape_cast %90 : vector<256xf32> to vector<1x256xf32>
    %92 = arith.addf %50, %91 : vector<1x256xf32>
    %c0_48 = arith.constant 0 : index
    %c0_49 = arith.constant 0 : index
    %c512 = arith.constant 512 : index
    %93 = vector.load %arg0[%c0_48, %c0_49, %c512] : memref<2x8x2048xbf16, #tpu.memory_space<vmem>>, vector<1x8x256xbf16>
    %94 = vector.shape_cast %93 : vector<1x8x256xbf16> to vector<8x256xbf16>
    %95 = tpu.concatenate %2, %94 in 0 : vector<16x256xbf16>, vector<8x256xbf16> -> vector<24x256xbf16>
    %cst_50 = arith.constant dense<0.000000e+00> : vector<40x256xf32>
    %96 = tpu.matmul %0, %95, %cst_50 {dimension_numbers = #tpu.dot_dimension_numbers<[1], [0], [0], [1], [0, 0, 1, 1], [], []>} : vector<40x24xbf16>, vector<24x256xbf16>, vector<40x256xf32> -> vector<40x256xf32>
    %cst_51 = arith.constant 0.000000e+00 : f32
    %97 = vector.broadcast %cst_51 : f32 to vector<40x256xf32>
    %98 = arith.maximumf %96, %97 : vector<40x256xf32>
    %99 = vector.extract_strided_slice %98 {offsets = [32, 0], sizes = [8, 256], strides = [1, 1]} : vector<40x256xf32> to vector<8x256xf32>
    %c0_52 = arith.constant 0 : index
    %c0_53 = arith.constant 0 : index
    %c512_54 = arith.constant 512 : index
    %100 = vector.load %arg5[%c0_52, %c0_53, %c512_54] : memref<2x8x2048xf32, #tpu.memory_space<vmem>>, vector<1x8x256xf32>
    %101 = vector.shape_cast %100 : vector<1x8x256xf32> to vector<8x256xf32>
    %102 = vector.shape_cast %99 : vector<8x256xf32> to vector<1x8x256xf32>
    tpu.vector_store %arg5[%c0_52, %c0_53, %c512_54], %102 {strides = array<i32>} : memref<2x8x2048xf32, #tpu.memory_space<vmem>>, vector<1x8x256xf32>,
    %c1_55 = arith.constant 1 : index
    %c0_56 = arith.constant 0 : index
    %c512_57 = arith.constant 512 : index
    %103 = vector.load %arg0[%c1_55, %c0_56, %c512_57] : memref<2x8x2048xbf16, #tpu.memory_space<vmem>>, vector<1x8x256xbf16>
    %104 = vector.shape_cast %103 : vector<1x8x256xbf16> to vector<8x256xbf16>
    %105 = tpu.concatenate %4, %104 in 0 : vector<16x256xbf16>, vector<8x256xbf16> -> vector<24x256xbf16>
    %cst_58 = arith.constant dense<0.000000e+00> : vector<40x256xf32>
    %106 = tpu.matmul %0, %105, %cst_58 {dimension_numbers = #tpu.dot_dimension_numbers<[1], [0], [0], [1], [0, 0, 1, 1], [], []>} : vector<40x24xbf16>, vector<24x256xbf16>, vector<40x256xf32> -> vector<40x256xf32>
    %cst_59 = arith.constant 0.000000e+00 : f32
    %107 = vector.broadcast %cst_59 : f32 to vector<40x256xf32>
    %108 = arith.maximumf %106, %107 : vector<40x256xf32>
    %109 = vector.extract_strided_slice %108 {offsets = [32, 0], sizes = [8, 256], strides = [1, 1]} : vector<40x256xf32> to vector<8x256xf32>
    %c1_60 = arith.constant 1 : index
    %c0_61 = arith.constant 0 : index
    %c512_62 = arith.constant 512 : index
    %110 = vector.load %arg5[%c1_60, %c0_61, %c512_62] : memref<2x8x2048xf32, #tpu.memory_space<vmem>>, vector<1x8x256xf32>
    %111 = vector.shape_cast %110 : vector<1x8x256xf32> to vector<8x256xf32>
    %112 = vector.shape_cast %109 : vector<8x256xf32> to vector<1x8x256xf32>
    tpu.vector_store %arg5[%c1_60, %c0_61, %c512_62], %112 {strides = array<i32>} : memref<2x8x2048xf32, #tpu.memory_space<vmem>>, vector<1x8x256xf32>,
    %113 = vector.extract_strided_slice %98 {offsets = [0, 0], sizes = [16, 256], strides = [1, 1]} : vector<40x256xf32> to vector<16x256xf32>
    %114 = vector.extract_strided_slice %98 {offsets = [16, 0], sizes = [16, 256], strides = [1, 1]} : vector<40x256xf32> to vector<16x256xf32>
    %115 = arith.mulf %113, %114 : vector<16x256xf32>
    %cst_63 = arith.constant dense<0.000000e+00> : vector<256xf32>
    %116 = vector.multi_reduction <add>, %115, %cst_63 [0] : vector<16x256xf32> to vector<256xf32>
    %117 = vector.shape_cast %116 : vector<256xf32> to vector<1x256xf32>
    %118 = arith.addf %76, %117 : vector<1x256xf32>
    %119 = vector.extract_strided_slice %108 {offsets = [16, 0], sizes = [16, 256], strides = [1, 1]} : vector<40x256xf32> to vector<16x256xf32>
    %120 = arith.mulf %113, %119 : vector<16x256xf32>
    %cst_64 = arith.constant dense<0.000000e+00> : vector<256xf32>
    %121 = vector.multi_reduction <add>, %120, %cst_64 [0] : vector<16x256xf32> to vector<256xf32>
    %122 = vector.shape_cast %121 : vector<256xf32> to vector<1x256xf32>
    %123 = arith.addf %81, %122 : vector<1x256xf32>
    %124 = vector.extract_strided_slice %108 {offsets = [0, 0], sizes = [16, 256], strides = [1, 1]} : vector<40x256xf32> to vector<16x256xf32>
    %125 = vector.extract_strided_slice %98 {offsets = [16, 0], sizes = [16, 256], strides = [1, 1]} : vector<40x256xf32> to vector<16x256xf32>
    %126 = arith.mulf %124, %125 : vector<16x256xf32>
    %cst_65 = arith.constant dense<0.000000e+00> : vector<256xf32>
    %127 = vector.multi_reduction <add>, %126, %cst_65 [0] : vector<16x256xf32> to vector<256xf32>
    %128 = vector.shape_cast %127 : vector<256xf32> to vector<1x256xf32>
    %129 = arith.addf %87, %128 : vector<1x256xf32>
    %130 = vector.extract_strided_slice %108 {offsets = [16, 0], sizes = [16, 256], strides = [1, 1]} : vector<40x256xf32> to vector<16x256xf32>
    %131 = arith.mulf %124, %130 : vector<16x256xf32>
    %cst_66 = arith.constant dense<0.000000e+00> : vector<256xf32>
    %132 = vector.multi_reduction <add>, %131, %cst_66 [0] : vector<16x256xf32> to vector<256xf32>
    %133 = vector.shape_cast %132 : vector<256xf32> to vector<1x256xf32>
    %134 = arith.addf %92, %133 : vector<1x256xf32>
    %c0_67 = arith.constant 0 : index
    %c0_68 = arith.constant 0 : index
    %c768 = arith.constant 768 : index
    %135 = vector.load %arg0[%c0_67, %c0_68, %c768] : memref<2x8x2048xbf16, #tpu.memory_space<vmem>>, vector<1x8x256xbf16>
    %136 = vector.shape_cast %135 : vector<1x8x256xbf16> to vector<8x256xbf16>
    %137 = tpu.concatenate %2, %136 in 0 : vector<16x256xbf16>, vector<8x256xbf16> -> vector<24x256xbf16>
    %cst_69 = arith.constant dense<0.000000e+00> : vector<40x256xf32>
    %138 = tpu.matmul %0, %137, %cst_69 {dimension_numbers = #tpu.dot_dimension_numbers<[1], [0], [0], [1], [0, 0, 1, 1], [], []>} : vector<40x24xbf16>, vector<24x256xbf16>, vector<40x256xf32> -> vector<40x256xf32>
    %cst_70 = arith.constant 0.000000e+00 : f32
    %139 = vector.broadcast %cst_70 : f32 to vector<40x256xf32>
    %140 = arith.maximumf %138, %139 : vector<40x256xf32>
    %141 = vector.extract_strided_slice %140 {offsets = [32, 0], sizes = [8, 256], strides = [1, 1]} : vector<40x256xf32> to vector<8x256xf32>
    %c0_71 = arith.constant 0 : index
    %c0_72 = arith.constant 0 : index
    %c768_73 = arith.constant 768 : index
    %142 = vector.load %arg5[%c0_71, %c0_72, %c768_73] : memref<2x8x2048xf32, #tpu.memory_space<vmem>>, vector<1x8x256xf32>
    %143 = vector.shape_cast %142 : vector<1x8x256xf32> to vector<8x256xf32>
    %144 = vector.shape_cast %141 : vector<8x256xf32> to vector<1x8x256xf32>
    tpu.vector_store %arg5[%c0_71, %c0_72, %c768_73], %144 {strides = array<i32>} : memref<2x8x2048xf32, #tpu.memory_space<vmem>>, vector<1x8x256xf32>,
    %c1_74 = arith.constant 1 : index
    %c0_75 = arith.constant 0 : index
    %c768_76 = arith.constant 768 : index
    %145 = vector.load %arg0[%c1_74, %c0_75, %c768_76] : memref<2x8x2048xbf16, #tpu.memory_space<vmem>>, vector<1x8x256xbf16>
    %146 = vector.shape_cast %145 : vector<1x8x256xbf16> to vector<8x256xbf16>
    %147 = tpu.concatenate %4, %146 in 0 : vector<16x256xbf16>, vector<8x256xbf16> -> vector<24x256xbf16>
    %cst_77 = arith.constant dense<0.000000e+00> : vector<40x256xf32>
    %148 = tpu.matmul %0, %147, %cst_77 {dimension_numbers = #tpu.dot_dimension_numbers<[1], [0], [0], [1], [0, 0, 1, 1], [], []>} : vector<40x24xbf16>, vector<24x256xbf16>, vector<40x256xf32> -> vector<40x256xf32>
    %cst_78 = arith.constant 0.000000e+00 : f32
    %149 = vector.broadcast %cst_78 : f32 to vector<40x256xf32>
    %150 = arith.maximumf %148, %149 : vector<40x256xf32>
    %151 = vector.extract_strided_slice %150 {offsets = [32, 0], sizes = [8, 256], strides = [1, 1]} : vector<40x256xf32> to vector<8x256xf32>
    %c1_79 = arith.constant 1 : index
    %c0_80 = arith.constant 0 : index
    %c768_81 = arith.constant 768 : index
    %152 = vector.load %arg5[%c1_79, %c0_80, %c768_81] : memref<2x8x2048xf32, #tpu.memory_space<vmem>>, vector<1x8x256xf32>
    %153 = vector.shape_cast %152 : vector<1x8x256xf32> to vector<8x256xf32>
    %154 = vector.shape_cast %151 : vector<8x256xf32> to vector<1x8x256xf32>
    tpu.vector_store %arg5[%c1_79, %c0_80, %c768_81], %154 {strides = array<i32>} : memref<2x8x2048xf32, #tpu.memory_space<vmem>>, vector<1x8x256xf32>,
    %155 = vector.extract_strided_slice %140 {offsets = [0, 0], sizes = [16, 256], strides = [1, 1]} : vector<40x256xf32> to vector<16x256xf32>
    %156 = vector.extract_strided_slice %140 {offsets = [16, 0], sizes = [16, 256], strides = [1, 1]} : vector<40x256xf32> to vector<16x256xf32>
    %157 = arith.mulf %155, %156 : vector<16x256xf32>
    %cst_82 = arith.constant dense<0.000000e+00> : vector<256xf32>
    %158 = vector.multi_reduction <add>, %157, %cst_82 [0] : vector<16x256xf32> to vector<256xf32>
    %159 = vector.shape_cast %158 : vector<256xf32> to vector<1x256xf32>
    %160 = arith.addf %118, %159 : vector<1x256xf32>
    %161 = vector.extract_strided_slice %150 {offsets = [16, 0], sizes = [16, 256], strides = [1, 1]} : vector<40x256xf32> to vector<16x256xf32>
    %162 = arith.mulf %155, %161 : vector<16x256xf32>
    %cst_83 = arith.constant dense<0.000000e+00> : vector<256xf32>
    %163 = vector.multi_reduction <add>, %162, %cst_83 [0] : vector<16x256xf32> to vector<256xf32>
    %164 = vector.shape_cast %163 : vector<256xf32> to vector<1x256xf32>
    %165 = arith.addf %123, %164 : vector<1x256xf32>
    %166 = vector.extract_strided_slice %150 {offsets = [0, 0], sizes = [16, 256], strides = [1, 1]} : vector<40x256xf32> to vector<16x256xf32>
    %167 = vector.extract_strided_slice %140 {offsets = [16, 0], sizes = [16, 256], strides = [1, 1]} : vector<40x256xf32> to vector<16x256xf32>
    %168 = arith.mulf %166, %167 : vector<16x256xf32>
    %cst_84 = arith.constant dense<0.000000e+00> : vector<256xf32>
    %169 = vector.multi_reduction <add>, %168, %cst_84 [0] : vector<16x256xf32> to vector<256xf32>
    %170 = vector.shape_cast %169 : vector<256xf32> to vector<1x256xf32>
    %171 = arith.addf %129, %170 : vector<1x256xf32>
    %172 = vector.extract_strided_slice %150 {offsets = [16, 0], sizes = [16, 256], strides = [1, 1]} : vector<40x256xf32> to vector<16x256xf32>
    %173 = arith.mulf %166, %172 : vector<16x256xf32>
    %cst_85 = arith.constant dense<0.000000e+00> : vector<256xf32>
    %174 = vector.multi_reduction <add>, %173, %cst_85 [0] : vector<16x256xf32> to vector<256xf32>
    %175 = vector.shape_cast %174 : vector<256xf32> to vector<1x256xf32>
    %176 = arith.addf %134, %175 : vector<1x256xf32>
    %c0_86 = arith.constant 0 : index
    %c0_87 = arith.constant 0 : index
    %c1024 = arith.constant 1024 : index
    %177 = vector.load %arg0[%c0_86, %c0_87, %c1024] : memref<2x8x2048xbf16, #tpu.memory_space<vmem>>, vector<1x8x256xbf16>
    %178 = vector.shape_cast %177 : vector<1x8x256xbf16> to vector<8x256xbf16>
    %179 = tpu.concatenate %2, %178 in 0 : vector<16x256xbf16>, vector<8x256xbf16> -> vector<24x256xbf16>
    %cst_88 = arith.constant dense<0.000000e+00> : vector<40x256xf32>
    %180 = tpu.matmul %0, %179, %cst_88 {dimension_numbers = #tpu.dot_dimension_numbers<[1], [0], [0], [1], [0, 0, 1, 1], [], []>} : vector<40x24xbf16>, vector<24x256xbf16>, vector<40x256xf32> -> vector<40x256xf32>
    %cst_89 = arith.constant 0.000000e+00 : f32
    %181 = vector.broadcast %cst_89 : f32 to vector<40x256xf32>
    %182 = arith.maximumf %180, %181 : vector<40x256xf32>
    %183 = vector.extract_strided_slice %182 {offsets = [32, 0], sizes = [8, 256], strides = [1, 1]} : vector<40x256xf32> to vector<8x256xf32>
    %c0_90 = arith.constant 0 : index
    %c0_91 = arith.constant 0 : index
    %c1024_92 = arith.constant 1024 : index
    %184 = vector.load %arg5[%c0_90, %c0_91, %c1024_92] : memref<2x8x2048xf32, #tpu.memory_space<vmem>>, vector<1x8x256xf32>
    %185 = vector.shape_cast %184 : vector<1x8x256xf32> to vector<8x256xf32>
    %186 = vector.shape_cast %183 : vector<8x256xf32> to vector<1x8x256xf32>
    tpu.vector_store %arg5[%c0_90, %c0_91, %c1024_92], %186 {strides = array<i32>} : memref<2x8x2048xf32, #tpu.memory_space<vmem>>, vector<1x8x256xf32>,
    %c1_93 = arith.constant 1 : index
    %c0_94 = arith.constant 0 : index
    %c1024_95 = arith.constant 1024 : index
    %187 = vector.load %arg0[%c1_93, %c0_94, %c1024_95] : memref<2x8x2048xbf16, #tpu.memory_space<vmem>>, vector<1x8x256xbf16>
    %188 = vector.shape_cast %187 : vector<1x8x256xbf16> to vector<8x256xbf16>
    %189 = tpu.concatenate %4, %188 in 0 : vector<16x256xbf16>, vector<8x256xbf16> -> vector<24x256xbf16>
    %cst_96 = arith.constant dense<0.000000e+00> : vector<40x256xf32>
    %190 = tpu.matmul %0, %189, %cst_96 {dimension_numbers = #tpu.dot_dimension_numbers<[1], [0], [0], [1], [0, 0, 1, 1], [], []>} : vector<40x24xbf16>, vector<24x256xbf16>, vector<40x256xf32> -> vector<40x256xf32>
    %cst_97 = arith.constant 0.000000e+00 : f32
    %191 = vector.broadcast %cst_97 : f32 to vector<40x256xf32>
    %192 = arith.maximumf %190, %191 : vector<40x256xf32>
    %193 = vector.extract_strided_slice %192 {offsets = [32, 0], sizes = [8, 256], strides = [1, 1]} : vector<40x256xf32> to vector<8x256xf32>
    %c1_98 = arith.constant 1 : index
    %c0_99 = arith.constant 0 : index
    %c1024_100 = arith.constant 1024 : index
    %194 = vector.load %arg5[%c1_98, %c0_99, %c1024_100] : memref<2x8x2048xf32, #tpu.memory_space<vmem>>, vector<1x8x256xf32>
    %195 = vector.shape_cast %194 : vector<1x8x256xf32> to vector<8x256xf32>
    %196 = vector.shape_cast %193 : vector<8x256xf32> to vector<1x8x256xf32>
    tpu.vector_store %arg5[%c1_98, %c0_99, %c1024_100], %196 {strides = array<i32>} : memref<2x8x2048xf32, #tpu.memory_space<vmem>>, vector<1x8x256xf32>,
    %197 = vector.extract_strided_slice %182 {offsets = [0, 0], sizes = [16, 256], strides = [1, 1]} : vector<40x256xf32> to vector<16x256xf32>
    %198 = vector.extract_strided_slice %182 {offsets = [16, 0], sizes = [16, 256], strides = [1, 1]} : vector<40x256xf32> to vector<16x256xf32>
    %199 = arith.mulf %197, %198 : vector<16x256xf32>
    %cst_101 = arith.constant dense<0.000000e+00> : vector<256xf32>
    %200 = vector.multi_reduction <add>, %199, %cst_101 [0] : vector<16x256xf32> to vector<256xf32>
    %201 = vector.shape_cast %200 : vector<256xf32> to vector<1x256xf32>
    %202 = arith.addf %160, %201 : vector<1x256xf32>
    %203 = vector.extract_strided_slice %192 {offsets = [16, 0], sizes = [16, 256], strides = [1, 1]} : vector<40x256xf32> to vector<16x256xf32>
    %204 = arith.mulf %197, %203 : vector<16x256xf32>
    %cst_102 = arith.constant dense<0.000000e+00> : vector<256xf32>
    %205 = vector.multi_reduction <add>, %204, %cst_102 [0] : vector<16x256xf32> to vector<256xf32>
    %206 = vector.shape_cast %205 : vector<256xf32> to vector<1x256xf32>
    %207 = arith.addf %165, %206 : vector<1x256xf32>
    %208 = vector.extract_strided_slice %192 {offsets = [0, 0], sizes = [16, 256], strides = [1, 1]} : vector<40x256xf32> to vector<16x256xf32>
    %209 = vector.extract_strided_slice %182 {offsets = [16, 0], sizes = [16, 256], strides = [1, 1]} : vector<40x256xf32> to vector<16x256xf32>
    %210 = arith.mulf %208, %209 : vector<16x256xf32>
    %cst_103 = arith.constant dense<0.000000e+00> : vector<256xf32>
    %211 = vector.multi_reduction <add>, %210, %cst_103 [0] : vector<16x256xf32> to vector<256xf32>
    %212 = vector.shape_cast %211 : vector<256xf32> to vector<1x256xf32>
    %213 = arith.addf %171, %212 : vector<1x256xf32>
    %214 = vector.extract_strided_slice %192 {offsets = [16, 0], sizes = [16, 256], strides = [1, 1]} : vector<40x256xf32> to vector<16x256xf32>
    %215 = arith.mulf %208, %214 : vector<16x256xf32>
    %cst_104 = arith.constant dense<0.000000e+00> : vector<256xf32>
    %216 = vector.multi_reduction <add>, %215, %cst_104 [0] : vector<16x256xf32> to vector<256xf32>
    %217 = vector.shape_cast %216 : vector<256xf32> to vector<1x256xf32>
    %218 = arith.addf %176, %217 : vector<1x256xf32>
    %c0_105 = arith.constant 0 : index
    %c0_106 = arith.constant 0 : index
    %c1280 = arith.constant 1280 : index
    %219 = vector.load %arg0[%c0_105, %c0_106, %c1280] : memref<2x8x2048xbf16, #tpu.memory_space<vmem>>, vector<1x8x256xbf16>
    %220 = vector.shape_cast %219 : vector<1x8x256xbf16> to vector<8x256xbf16>
    %221 = tpu.concatenate %2, %220 in 0 : vector<16x256xbf16>, vector<8x256xbf16> -> vector<24x256xbf16>
    %cst_107 = arith.constant dense<0.000000e+00> : vector<40x256xf32>
    %222 = tpu.matmul %0, %221, %cst_107 {dimension_numbers = #tpu.dot_dimension_numbers<[1], [0], [0], [1], [0, 0, 1, 1], [], []>} : vector<40x24xbf16>, vector<24x256xbf16>, vector<40x256xf32> -> vector<40x256xf32>
    %cst_108 = arith.constant 0.000000e+00 : f32
    %223 = vector.broadcast %cst_108 : f32 to vector<40x256xf32>
    %224 = arith.maximumf %222, %223 : vector<40x256xf32>
    %225 = vector.extract_strided_slice %224 {offsets = [32, 0], sizes = [8, 256], strides = [1, 1]} : vector<40x256xf32> to vector<8x256xf32>
    %c0_109 = arith.constant 0 : index
    %c0_110 = arith.constant 0 : index
    %c1280_111 = arith.constant 1280 : index
    %226 = vector.load %arg5[%c0_109, %c0_110, %c1280_111] : memref<2x8x2048xf32, #tpu.memory_space<vmem>>, vector<1x8x256xf32>
    %227 = vector.shape_cast %226 : vector<1x8x256xf32> to vector<8x256xf32>
    %228 = vector.shape_cast %225 : vector<8x256xf32> to vector<1x8x256xf32>
    tpu.vector_store %arg5[%c0_109, %c0_110, %c1280_111], %228 {strides = array<i32>} : memref<2x8x2048xf32, #tpu.memory_space<vmem>>, vector<1x8x256xf32>,
    %c1_112 = arith.constant 1 : index
    %c0_113 = arith.constant 0 : index
    %c1280_114 = arith.constant 1280 : index
    %229 = vector.load %arg0[%c1_112, %c0_113, %c1280_114] : memref<2x8x2048xbf16, #tpu.memory_space<vmem>>, vector<1x8x256xbf16>
    %230 = vector.shape_cast %229 : vector<1x8x256xbf16> to vector<8x256xbf16>
    %231 = tpu.concatenate %4, %230 in 0 : vector<16x256xbf16>, vector<8x256xbf16> -> vector<24x256xbf16>
    %cst_115 = arith.constant dense<0.000000e+00> : vector<40x256xf32>
    %232 = tpu.matmul %0, %231, %cst_115 {dimension_numbers = #tpu.dot_dimension_numbers<[1], [0], [0], [1], [0, 0, 1, 1], [], []>} : vector<40x24xbf16>, vector<24x256xbf16>, vector<40x256xf32> -> vector<40x256xf32>
    %cst_116 = arith.constant 0.000000e+00 : f32
    %233 = vector.broadcast %cst_116 : f32 to vector<40x256xf32>
    %234 = arith.maximumf %232, %233 : vector<40x256xf32>
    %235 = vector.extract_strided_slice %234 {offsets = [32, 0], sizes = [8, 256], strides = [1, 1]} : vector<40x256xf32> to vector<8x256xf32>
    %c1_117 = arith.constant 1 : index
    %c0_118 = arith.constant 0 : index
    %c1280_119 = arith.constant 1280 : index
    %236 = vector.load %arg5[%c1_117, %c0_118, %c1280_119] : memref<2x8x2048xf32, #tpu.memory_space<vmem>>, vector<1x8x256xf32>
    %237 = vector.shape_cast %236 : vector<1x8x256xf32> to vector<8x256xf32>
    %238 = vector.shape_cast %235 : vector<8x256xf32> to vector<1x8x256xf32>
    tpu.vector_store %arg5[%c1_117, %c0_118, %c1280_119], %238 {strides = array<i32>} : memref<2x8x2048xf32, #tpu.memory_space<vmem>>, vector<1x8x256xf32>,
    %239 = vector.extract_strided_slice %224 {offsets = [0, 0], sizes = [16, 256], strides = [1, 1]} : vector<40x256xf32> to vector<16x256xf32>
    %240 = vector.extract_strided_slice %224 {offsets = [16, 0], sizes = [16, 256], strides = [1, 1]} : vector<40x256xf32> to vector<16x256xf32>
    %241 = arith.mulf %239, %240 : vector<16x256xf32>
    %cst_120 = arith.constant dense<0.000000e+00> : vector<256xf32>
    %242 = vector.multi_reduction <add>, %241, %cst_120 [0] : vector<16x256xf32> to vector<256xf32>
    %243 = vector.shape_cast %242 : vector<256xf32> to vector<1x256xf32>
    %244 = arith.addf %202, %243 : vector<1x256xf32>
    %245 = vector.extract_strided_slice %234 {offsets = [16, 0], sizes = [16, 256], strides = [1, 1]} : vector<40x256xf32> to vector<16x256xf32>
    %246 = arith.mulf %239, %245 : vector<16x256xf32>
    %cst_121 = arith.constant dense<0.000000e+00> : vector<256xf32>
    %247 = vector.multi_reduction <add>, %246, %cst_121 [0] : vector<16x256xf32> to vector<256xf32>
    %248 = vector.shape_cast %247 : vector<256xf32> to vector<1x256xf32>
    %249 = arith.addf %207, %248 : vector<1x256xf32>
    %250 = vector.extract_strided_slice %234 {offsets = [0, 0], sizes = [16, 256], strides = [1, 1]} : vector<40x256xf32> to vector<16x256xf32>
    %251 = vector.extract_strided_slice %224 {offsets = [16, 0], sizes = [16, 256], strides = [1, 1]} : vector<40x256xf32> to vector<16x256xf32>
    %252 = arith.mulf %250, %251 : vector<16x256xf32>
    %cst_122 = arith.constant dense<0.000000e+00> : vector<256xf32>
    %253 = vector.multi_reduction <add>, %252, %cst_122 [0] : vector<16x256xf32> to vector<256xf32>
    %254 = vector.shape_cast %253 : vector<256xf32> to vector<1x256xf32>
    %255 = arith.addf %213, %254 : vector<1x256xf32>
    %256 = vector.extract_strided_slice %234 {offsets = [16, 0], sizes = [16, 256], strides = [1, 1]} : vector<40x256xf32> to vector<16x256xf32>
    %257 = arith.mulf %250, %256 : vector<16x256xf32>
    %cst_123 = arith.constant dense<0.000000e+00> : vector<256xf32>
    %258 = vector.multi_reduction <add>, %257, %cst_123 [0] : vector<16x256xf32> to vector<256xf32>
    %259 = vector.shape_cast %258 : vector<256xf32> to vector<1x256xf32>
    %260 = arith.addf %218, %259 : vector<1x256xf32>
    %c0_124 = arith.constant 0 : index
    %c0_125 = arith.constant 0 : index
    %c1536 = arith.constant 1536 : index
    %261 = vector.load %arg0[%c0_124, %c0_125, %c1536] : memref<2x8x2048xbf16, #tpu.memory_space<vmem>>, vector<1x8x256xbf16>
    %262 = vector.shape_cast %261 : vector<1x8x256xbf16> to vector<8x256xbf16>
    %263 = tpu.concatenate %2, %262 in 0 : vector<16x256xbf16>, vector<8x256xbf16> -> vector<24x256xbf16>
    %cst_126 = arith.constant dense<0.000000e+00> : vector<40x256xf32>
    %264 = tpu.matmul %0, %263, %cst_126 {dimension_numbers = #tpu.dot_dimension_numbers<[1], [0], [0], [1], [0, 0, 1, 1], [], []>} : vector<40x24xbf16>, vector<24x256xbf16>, vector<40x256xf32> -> vector<40x256xf32>
    %cst_127 = arith.constant 0.000000e+00 : f32
    %265 = vector.broadcast %cst_127 : f32 to vector<40x256xf32>
    %266 = arith.maximumf %264, %265 : vector<40x256xf32>
    %267 = vector.extract_strided_slice %266 {offsets = [32, 0], sizes = [8, 256], strides = [1, 1]} : vector<40x256xf32> to vector<8x256xf32>
    %c0_128 = arith.constant 0 : index
    %c0_129 = arith.constant 0 : index
    %c1536_130 = arith.constant 1536 : index
    %268 = vector.load %arg5[%c0_128, %c0_129, %c1536_130] : memref<2x8x2048xf32, #tpu.memory_space<vmem>>, vector<1x8x256xf32>
    %269 = vector.shape_cast %268 : vector<1x8x256xf32> to vector<8x256xf32>
    %270 = vector.shape_cast %267 : vector<8x256xf32> to vector<1x8x256xf32>
    tpu.vector_store %arg5[%c0_128, %c0_129, %c1536_130], %270 {strides = array<i32>} : memref<2x8x2048xf32, #tpu.memory_space<vmem>>, vector<1x8x256xf32>,
    %c1_131 = arith.constant 1 : index
    %c0_132 = arith.constant 0 : index
    %c1536_133 = arith.constant 1536 : index
    %271 = vector.load %arg0[%c1_131, %c0_132, %c1536_133] : memref<2x8x2048xbf16, #tpu.memory_space<vmem>>, vector<1x8x256xbf16>
    %272 = vector.shape_cast %271 : vector<1x8x256xbf16> to vector<8x256xbf16>
    %273 = tpu.concatenate %4, %272 in 0 : vector<16x256xbf16>, vector<8x256xbf16> -> vector<24x256xbf16>
    %cst_134 = arith.constant dense<0.000000e+00> : vector<40x256xf32>
    %274 = tpu.matmul %0, %273, %cst_134 {dimension_numbers = #tpu.dot_dimension_numbers<[1], [0], [0], [1], [0, 0, 1, 1], [], []>} : vector<40x24xbf16>, vector<24x256xbf16>, vector<40x256xf32> -> vector<40x256xf32>
    %cst_135 = arith.constant 0.000000e+00 : f32
    %275 = vector.broadcast %cst_135 : f32 to vector<40x256xf32>
    %276 = arith.maximumf %274, %275 : vector<40x256xf32>
    %277 = vector.extract_strided_slice %276 {offsets = [32, 0], sizes = [8, 256], strides = [1, 1]} : vector<40x256xf32> to vector<8x256xf32>
    %c1_136 = arith.constant 1 : index
    %c0_137 = arith.constant 0 : index
    %c1536_138 = arith.constant 1536 : index
    %278 = vector.load %arg5[%c1_136, %c0_137, %c1536_138] : memref<2x8x2048xf32, #tpu.memory_space<vmem>>, vector<1x8x256xf32>
    %279 = vector.shape_cast %278 : vector<1x8x256xf32> to vector<8x256xf32>
    %280 = vector.shape_cast %277 : vector<8x256xf32> to vector<1x8x256xf32>
    tpu.vector_store %arg5[%c1_136, %c0_137, %c1536_138], %280 {strides = array<i32>} : memref<2x8x2048xf32, #tpu.memory_space<vmem>>, vector<1x8x256xf32>,
    %281 = vector.extract_strided_slice %266 {offsets = [0, 0], sizes = [16, 256], strides = [1, 1]} : vector<40x256xf32> to vector<16x256xf32>
    %282 = vector.extract_strided_slice %266 {offsets = [16, 0], sizes = [16, 256], strides = [1, 1]} : vector<40x256xf32> to vector<16x256xf32>
    %283 = arith.mulf %281, %282 : vector<16x256xf32>
    %cst_139 = arith.constant dense<0.000000e+00> : vector<256xf32>
    %284 = vector.multi_reduction <add>, %283, %cst_139 [0] : vector<16x256xf32> to vector<256xf32>
    %285 = vector.shape_cast %284 : vector<256xf32> to vector<1x256xf32>
    %286 = arith.addf %244, %285 : vector<1x256xf32>
    %287 = vector.extract_strided_slice %276 {offsets = [16, 0], sizes = [16, 256], strides = [1, 1]} : vector<40x256xf32> to vector<16x256xf32>
    %288 = arith.mulf %281, %287 : vector<16x256xf32>
    %cst_140 = arith.constant dense<0.000000e+00> : vector<256xf32>
    %289 = vector.multi_reduction <add>, %288, %cst_140 [0] : vector<16x256xf32> to vector<256xf32>
    %290 = vector.shape_cast %289 : vector<256xf32> to vector<1x256xf32>
    %291 = arith.addf %249, %290 : vector<1x256xf32>
    %292 = vector.extract_strided_slice %276 {offsets = [0, 0], sizes = [16, 256], strides = [1, 1]} : vector<40x256xf32> to vector<16x256xf32>
    %293 = vector.extract_strided_slice %266 {offsets = [16, 0], sizes = [16, 256], strides = [1, 1]} : vector<40x256xf32> to vector<16x256xf32>
    %294 = arith.mulf %292, %293 : vector<16x256xf32>
    %cst_141 = arith.constant dense<0.000000e+00> : vector<256xf32>
    %295 = vector.multi_reduction <add>, %294, %cst_141 [0] : vector<16x256xf32> to vector<256xf32>
    %296 = vector.shape_cast %295 : vector<256xf32> to vector<1x256xf32>
    %297 = arith.addf %255, %296 : vector<1x256xf32>
    %298 = vector.extract_strided_slice %276 {offsets = [16, 0], sizes = [16, 256], strides = [1, 1]} : vector<40x256xf32> to vector<16x256xf32>
    %299 = arith.mulf %292, %298 : vector<16x256xf32>
    %cst_142 = arith.constant dense<0.000000e+00> : vector<256xf32>
    %300 = vector.multi_reduction <add>, %299, %cst_142 [0] : vector<16x256xf32> to vector<256xf32>
    %301 = vector.shape_cast %300 : vector<256xf32> to vector<1x256xf32>
    %302 = arith.addf %260, %301 : vector<1x256xf32>
    %c0_143 = arith.constant 0 : index
    %c0_144 = arith.constant 0 : index
    %c1792 = arith.constant 1792 : index
    %303 = vector.load %arg0[%c0_143, %c0_144, %c1792] : memref<2x8x2048xbf16, #tpu.memory_space<vmem>>, vector<1x8x256xbf16>
    %304 = vector.shape_cast %303 : vector<1x8x256xbf16> to vector<8x256xbf16>
    %305 = tpu.concatenate %2, %304 in 0 : vector<16x256xbf16>, vector<8x256xbf16> -> vector<24x256xbf16>
    %cst_145 = arith.constant dense<0.000000e+00> : vector<40x256xf32>
    %306 = tpu.matmul %0, %305, %cst_145 {dimension_numbers = #tpu.dot_dimension_numbers<[1], [0], [0], [1], [0, 0, 1, 1], [], []>} : vector<40x24xbf16>, vector<24x256xbf16>, vector<40x256xf32> -> vector<40x256xf32>
    %cst_146 = arith.constant 0.000000e+00 : f32
    %307 = vector.broadcast %cst_146 : f32 to vector<40x256xf32>
    %308 = arith.maximumf %306, %307 : vector<40x256xf32>
    %309 = vector.extract_strided_slice %308 {offsets = [32, 0], sizes = [8, 256], strides = [1, 1]} : vector<40x256xf32> to vector<8x256xf32>
    %c0_147 = arith.constant 0 : index
    %c0_148 = arith.constant 0 : index
    %c1792_149 = arith.constant 1792 : index
    %310 = vector.load %arg5[%c0_147, %c0_148, %c1792_149] : memref<2x8x2048xf32, #tpu.memory_space<vmem>>, vector<1x8x256xf32>
    %311 = vector.shape_cast %310 : vector<1x8x256xf32> to vector<8x256xf32>
    %312 = vector.shape_cast %309 : vector<8x256xf32> to vector<1x8x256xf32>
    tpu.vector_store %arg5[%c0_147, %c0_148, %c1792_149], %312 {strides = array<i32>} : memref<2x8x2048xf32, #tpu.memory_space<vmem>>, vector<1x8x256xf32>,
    %c1_150 = arith.constant 1 : index
    %c0_151 = arith.constant 0 : index
    %c1792_152 = arith.constant 1792 : index
    %313 = vector.load %arg0[%c1_150, %c0_151, %c1792_152] : memref<2x8x2048xbf16, #tpu.memory_space<vmem>>, vector<1x8x256xbf16>
    %314 = vector.shape_cast %313 : vector<1x8x256xbf16> to vector<8x256xbf16>
    %315 = tpu.concatenate %4, %314 in 0 : vector<16x256xbf16>, vector<8x256xbf16> -> vector<24x256xbf16>
    %cst_153 = arith.constant dense<0.000000e+00> : vector<40x256xf32>
    %316 = tpu.matmul %0, %315, %cst_153 {dimension_numbers = #tpu.dot_dimension_numbers<[1], [0], [0], [1], [0, 0, 1, 1], [], []>} : vector<40x24xbf16>, vector<24x256xbf16>, vector<40x256xf32> -> vector<40x256xf32>
    %cst_154 = arith.constant 0.000000e+00 : f32
    %317 = vector.broadcast %cst_154 : f32 to vector<40x256xf32>
    %318 = arith.maximumf %316, %317 : vector<40x256xf32>
    %319 = vector.extract_strided_slice %318 {offsets = [32, 0], sizes = [8, 256], strides = [1, 1]} : vector<40x256xf32> to vector<8x256xf32>
    %c1_155 = arith.constant 1 : index
    %c0_156 = arith.constant 0 : index
    %c1792_157 = arith.constant 1792 : index
    %320 = vector.load %arg5[%c1_155, %c0_156, %c1792_157] : memref<2x8x2048xf32, #tpu.memory_space<vmem>>, vector<1x8x256xf32>
    %321 = vector.shape_cast %320 : vector<1x8x256xf32> to vector<8x256xf32>
    %322 = vector.shape_cast %319 : vector<8x256xf32> to vector<1x8x256xf32>
    tpu.vector_store %arg5[%c1_155, %c0_156, %c1792_157], %322 {strides = array<i32>} : memref<2x8x2048xf32, #tpu.memory_space<vmem>>, vector<1x8x256xf32>,
    %323 = vector.extract_strided_slice %308 {offsets = [0, 0], sizes = [16, 256], strides = [1, 1]} : vector<40x256xf32> to vector<16x256xf32>
    %324 = vector.extract_strided_slice %308 {offsets = [16, 0], sizes = [16, 256], strides = [1, 1]} : vector<40x256xf32> to vector<16x256xf32>
    %325 = arith.mulf %323, %324 : vector<16x256xf32>
    %cst_158 = arith.constant dense<0.000000e+00> : vector<256xf32>
    %326 = vector.multi_reduction <add>, %325, %cst_158 [0] : vector<16x256xf32> to vector<256xf32>
    %327 = vector.shape_cast %326 : vector<256xf32> to vector<1x256xf32>
    %328 = arith.addf %286, %327 : vector<1x256xf32>
    %329 = vector.extract_strided_slice %318 {offsets = [16, 0], sizes = [16, 256], strides = [1, 1]} : vector<40x256xf32> to vector<16x256xf32>
    %330 = arith.mulf %323, %329 : vector<16x256xf32>
    %cst_159 = arith.constant dense<0.000000e+00> : vector<256xf32>
    %331 = vector.multi_reduction <add>, %330, %cst_159 [0] : vector<16x256xf32> to vector<256xf32>
    %332 = vector.shape_cast %331 : vector<256xf32> to vector<1x256xf32>
    %333 = arith.addf %291, %332 : vector<1x256xf32>
    %334 = vector.extract_strided_slice %318 {offsets = [0, 0], sizes = [16, 256], strides = [1, 1]} : vector<40x256xf32> to vector<16x256xf32>
    %335 = vector.extract_strided_slice %308 {offsets = [16, 0], sizes = [16, 256], strides = [1, 1]} : vector<40x256xf32> to vector<16x256xf32>
    %336 = arith.mulf %334, %335 : vector<16x256xf32>
    %cst_160 = arith.constant dense<0.000000e+00> : vector<256xf32>
    %337 = vector.multi_reduction <add>, %336, %cst_160 [0] : vector<16x256xf32> to vector<256xf32>
    %338 = vector.shape_cast %337 : vector<256xf32> to vector<1x256xf32>
    %339 = arith.addf %297, %338 : vector<1x256xf32>
    %340 = vector.extract_strided_slice %318 {offsets = [16, 0], sizes = [16, 256], strides = [1, 1]} : vector<40x256xf32> to vector<16x256xf32>
    %341 = arith.mulf %334, %340 : vector<16x256xf32>
    %cst_161 = arith.constant dense<0.000000e+00> : vector<256xf32>
    %342 = vector.multi_reduction <add>, %341, %cst_161 [0] : vector<16x256xf32> to vector<256xf32>
    %343 = vector.shape_cast %342 : vector<256xf32> to vector<1x256xf32>
    %344 = arith.addf %302, %343 : vector<1x256xf32>
    %345 = tpu.iota {dimensions = array<i32: 0>} : vector<8x8xi32>
    %346 = tpu.iota {dimensions = array<i32: 1>} : vector<8x8xi32>
    %cst_162 = arith.constant 0.000000e+00 : f32
    %347 = vector.broadcast %cst_162 : f32 to vector<8x8xf32>
    %348 = vector.shape_cast %328 : vector<1x256xf32> to vector<1x1x256xf32>
    %cst_163 = arith.constant dense<0.000000e+00> : vector<1xf32>
    %349 = vector.multi_reduction <add>, %348, %cst_163 [1, 2] : vector<1x1x256xf32> to vector<1xf32>
    %350 = vector.shape_cast %349 : vector<1xf32> to vector<1x1x1xf32>
    %351 = vector.extract %350[0, 0, 0] : f32 from vector<1x1x1xf32>
    %cst_164 = arith.constant 0.000000e+00 : f32
    %352 = arith.maximumf %351, %cst_164 : f32
    %c0_i32 = arith.constant 0 : i32
    %353 = vector.broadcast %c0_i32 : i32 to vector<8x8xi32>
    %354 = arith.cmpi eq, %345, %353 : vector<8x8xi32>
    %c0_i32_165 = arith.constant 0 : i32
    %355 = vector.broadcast %c0_i32_165 : i32 to vector<8x8xi32>
    %356 = arith.cmpi eq, %346, %355 : vector<8x8xi32>
    %357 = arith.andi %354, %356 : vector<8x8xi1>
    %cst_166 = arith.constant 0.000000e+00 : f32
    %358 = vector.broadcast %352 : f32 to vector<8x8xf32>
    %359 = vector.broadcast %cst_166 : f32 to vector<8x8xf32>
    %360 = arith.select %357, %358, %359 : vector<8x8xi1>, vector<8x8xf32>
    %361 = arith.addf %347, %360 : vector<8x8xf32>
    %362 = vector.shape_cast %333 : vector<1x256xf32> to vector<1x1x256xf32>
    %cst_167 = arith.constant dense<0.000000e+00> : vector<1xf32>
    %363 = vector.multi_reduction <add>, %362, %cst_167 [1, 2] : vector<1x1x256xf32> to vector<1xf32>
    %364 = vector.shape_cast %363 : vector<1xf32> to vector<1x1x1xf32>
    %365 = vector.extract %364[0, 0, 0] : f32 from vector<1x1x1xf32>
    %cst_168 = arith.constant 0.000000e+00 : f32
    %366 = arith.maximumf %365, %cst_168 : f32
    %c0_i32_169 = arith.constant 0 : i32
    %367 = vector.broadcast %c0_i32_169 : i32 to vector<8x8xi32>
    %368 = arith.cmpi eq, %345, %367 : vector<8x8xi32>
    %c1_i32 = arith.constant 1 : i32
    %369 = vector.broadcast %c1_i32 : i32 to vector<8x8xi32>
    %370 = arith.cmpi eq, %346, %369 : vector<8x8xi32>
    %371 = arith.andi %368, %370 : vector<8x8xi1>
    %cst_170 = arith.constant 0.000000e+00 : f32
    %372 = vector.broadcast %366 : f32 to vector<8x8xf32>
    %373 = vector.broadcast %cst_170 : f32 to vector<8x8xf32>
    %374 = arith.select %371, %372, %373 : vector<8x8xi1>, vector<8x8xf32>
    %375 = arith.addf %361, %374 : vector<8x8xf32>
    %376 = vector.shape_cast %339 : vector<1x256xf32> to vector<1x1x256xf32>
    %cst_171 = arith.constant dense<0.000000e+00> : vector<1xf32>
    %377 = vector.multi_reduction <add>, %376, %cst_171 [1, 2] : vector<1x1x256xf32> to vector<1xf32>
    %378 = vector.shape_cast %377 : vector<1xf32> to vector<1x1x1xf32>
    %379 = vector.extract %378[0, 0, 0] : f32 from vector<1x1x1xf32>
    %cst_172 = arith.constant 0.000000e+00 : f32
    %380 = arith.maximumf %379, %cst_172 : f32
    %c1_i32_173 = arith.constant 1 : i32
    %381 = vector.broadcast %c1_i32_173 : i32 to vector<8x8xi32>
    %382 = arith.cmpi eq, %345, %381 : vector<8x8xi32>
    %c0_i32_174 = arith.constant 0 : i32
    %383 = vector.broadcast %c0_i32_174 : i32 to vector<8x8xi32>
    %384 = arith.cmpi eq, %346, %383 : vector<8x8xi32>
    %385 = arith.andi %382, %384 : vector<8x8xi1>
    %cst_175 = arith.constant 0.000000e+00 : f32
    %386 = vector.broadcast %380 : f32 to vector<8x8xf32>
    %387 = vector.broadcast %cst_175 : f32 to vector<8x8xf32>
    %388 = arith.select %385, %386, %387 : vector<8x8xi1>, vector<8x8xf32>
    %389 = arith.addf %375, %388 : vector<8x8xf32>
    %390 = vector.shape_cast %344 : vector<1x256xf32> to vector<1x1x256xf32>
    %cst_176 = arith.constant dense<0.000000e+00> : vector<1xf32>
    %391 = vector.multi_reduction <add>, %390, %cst_176 [1, 2] : vector<1x1x256xf32> to vector<1xf32>
    %392 = vector.shape_cast %391 : vector<1xf32> to vector<1x1x1xf32>
    %393 = vector.extract %392[0, 0, 0] : f32 from vector<1x1x1xf32>
    %cst_177 = arith.constant 0.000000e+00 : f32
    %394 = arith.maximumf %393, %cst_177 : f32
    %c1_i32_178 = arith.constant 1 : i32
    %395 = vector.broadcast %c1_i32_178 : i32 to vector<8x8xi32>
    %396 = arith.cmpi eq, %345, %395 : vector<8x8xi32>
    %c1_i32_179 = arith.constant 1 : i32
    %397 = vector.broadcast %c1_i32_179 : i32 to vector<8x8xi32>
    %398 = arith.cmpi eq, %346, %397 : vector<8x8xi32>
    %399 = arith.andi %396, %398 : vector<8x8xi1>
    %cst_180 = arith.constant 0.000000e+00 : f32
    %400 = vector.broadcast %394 : f32 to vector<8x8xf32>
    %401 = vector.broadcast %cst_180 : f32 to vector<8x8xf32>
    %402 = arith.select %399, %400, %401 : vector<8x8xi1>, vector<8x8xf32>
    %403 = arith.addf %389, %402 : vector<8x8xf32>
    %c0_181 = arith.constant 0 : index
    %c0_182 = arith.constant 0 : index
    %404 = vector.load %arg3[%c0_181, %c0_182] : memref<8x8xf32, #tpu.memory_space<vmem>>, vector<8x8xf32>
    %c0_183 = arith.constant 0 : index
    %c0_184 = arith.constant 0 : index
    %c0_185 = arith.constant 0 : index
    %405 = vector.load %arg5[%c0_183, %c0_184, %c0_185] : memref<2x8x2048xf32, #tpu.memory_space<vmem>>, vector<1x8x512xf32>
    %406 = vector.shape_cast %405 : vector<1x8x512xf32> to vector<8x512xf32>
    %cst_186 = arith.constant dense<0.000000e+00> : vector<8x512xf32>
    %407 = tpu.matmul %403, %406, %cst_186 {dimension_numbers = #tpu.dot_dimension_numbers<[1], [0], [0], [1], [0, 0, 1, 1], [], []>} : vector<8x8xf32>, vector<8x512xf32>, vector<8x512xf32> -> vector<8x512xf32>
    %cst_187 = arith.constant 0.000000e+00 : f32
    %408 = vector.broadcast %cst_187 : f32 to vector<8x512xf32>
    %409 = arith.maximumf %407, %408 : vector<8x512xf32>
    %cst_188 = arith.constant dense<0.000000e+00> : vector<8x512xf32>
    %410 = tpu.matmul %404, %409, %cst_188 {dimension_numbers = #tpu.dot_dimension_numbers<[1], [0], [0], [1], [0, 0, 1, 1], [], []>} : vector<8x8xf32>, vector<8x512xf32>, vector<8x512xf32> -> vector<8x512xf32>
    %411 = arith.truncf %410 : vector<8x512xf32> to vector<8x512xbf16>
    %c0_189 = arith.constant 0 : index
    %c0_190 = arith.constant 0 : index
    %c0_191 = arith.constant 0 : index
    %412 = vector.load %arg4[%c0_189, %c0_190, %c0_191] : memref<2x8x2048xbf16, #tpu.memory_space<vmem>>, vector<1x8x512xbf16>
    %413 = vector.shape_cast %412 : vector<1x8x512xbf16> to vector<8x512xbf16>
    %414 = vector.shape_cast %411 : vector<8x512xbf16> to vector<1x8x512xbf16>
    tpu.vector_store %arg4[%c0_189, %c0_190, %c0_191], %414 {strides = array<i32>} : memref<2x8x2048xbf16, #tpu.memory_space<vmem>>, vector<1x8x512xbf16>,
    %c0_192 = arith.constant 0 : index
    %c0_193 = arith.constant 0 : index
    %c512_194 = arith.constant 512 : index
    %415 = vector.load %arg5[%c0_192, %c0_193, %c512_194] : memref<2x8x2048xf32, #tpu.memory_space<vmem>>, vector<1x8x512xf32>
    %416 = vector.shape_cast %415 : vector<1x8x512xf32> to vector<8x512xf32>
    %cst_195 = arith.constant dense<0.000000e+00> : vector<8x512xf32>
    %417 = tpu.matmul %403, %416, %cst_195 {dimension_numbers = #tpu.dot_dimension_numbers<[1], [0], [0], [1], [0, 0, 1, 1], [], []>} : vector<8x8xf32>, vector<8x512xf32>, vector<8x512xf32> -> vector<8x512xf32>
    %cst_196 = arith.constant 0.000000e+00 : f32
    %418 = vector.broadcast %cst_196 : f32 to vector<8x512xf32>
    %419 = arith.maximumf %417, %418 : vector<8x512xf32>
    %cst_197 = arith.constant dense<0.000000e+00> : vector<8x512xf32>
    %420 = tpu.matmul %404, %419, %cst_197 {dimension_numbers = #tpu.dot_dimension_numbers<[1], [0], [0], [1], [0, 0, 1, 1], [], []>} : vector<8x8xf32>, vector<8x512xf32>, vector<8x512xf32> -> vector<8x512xf32>
    %421 = arith.truncf %420 : vector<8x512xf32> to vector<8x512xbf16>
    %c0_198 = arith.constant 0 : index
    %c0_199 = arith.constant 0 : index
    %c512_200 = arith.constant 512 : index
    %422 = vector.load %arg4[%c0_198, %c0_199, %c512_200] : memref<2x8x2048xbf16, #tpu.memory_space<vmem>>, vector<1x8x512xbf16>
    %423 = vector.shape_cast %422 : vector<1x8x512xbf16> to vector<8x512xbf16>
    %424 = vector.shape_cast %421 : vector<8x512xbf16> to vector<1x8x512xbf16>
    tpu.vector_store %arg4[%c0_198, %c0_199, %c512_200], %424 {strides = array<i32>} : memref<2x8x2048xbf16, #tpu.memory_space<vmem>>, vector<1x8x512xbf16>,
    %c0_201 = arith.constant 0 : index
    %c0_202 = arith.constant 0 : index
    %c1024_203 = arith.constant 1024 : index
    %425 = vector.load %arg5[%c0_201, %c0_202, %c1024_203] : memref<2x8x2048xf32, #tpu.memory_space<vmem>>, vector<1x8x512xf32>
    %426 = vector.shape_cast %425 : vector<1x8x512xf32> to vector<8x512xf32>
    %cst_204 = arith.constant dense<0.000000e+00> : vector<8x512xf32>
    %427 = tpu.matmul %403, %426, %cst_204 {dimension_numbers = #tpu.dot_dimension_numbers<[1], [0], [0], [1], [0, 0, 1, 1], [], []>} : vector<8x8xf32>, vector<8x512xf32>, vector<8x512xf32> -> vector<8x512xf32>
    %cst_205 = arith.constant 0.000000e+00 : f32
    %428 = vector.broadcast %cst_205 : f32 to vector<8x512xf32>
    %429 = arith.maximumf %427, %428 : vector<8x512xf32>
    %cst_206 = arith.constant dense<0.000000e+00> : vector<8x512xf32>
    %430 = tpu.matmul %404, %429, %cst_206 {dimension_numbers = #tpu.dot_dimension_numbers<[1], [0], [0], [1], [0, 0, 1, 1], [], []>} : vector<8x8xf32>, vector<8x512xf32>, vector<8x512xf32> -> vector<8x512xf32>
    %431 = arith.truncf %430 : vector<8x512xf32> to vector<8x512xbf16>
    %c0_207 = arith.constant 0 : index
    %c0_208 = arith.constant 0 : index
    %c1024_209 = arith.constant 1024 : index
    %432 = vector.load %arg4[%c0_207, %c0_208, %c1024_209] : memref<2x8x2048xbf16, #tpu.memory_space<vmem>>, vector<1x8x512xbf16>
    %433 = vector.shape_cast %432 : vector<1x8x512xbf16> to vector<8x512xbf16>
    %434 = vector.shape_cast %431 : vector<8x512xbf16> to vector<1x8x512xbf16>
    tpu.vector_store %arg4[%c0_207, %c0_208, %c1024_209], %434 {strides = array<i32>} : memref<2x8x2048xbf16, #tpu.memory_space<vmem>>, vector<1x8x512xbf16>,
    %c0_210 = arith.constant 0 : index
    %c0_211 = arith.constant 0 : index
    %c1536_212 = arith.constant 1536 : index
    %435 = vector.load %arg5[%c0_210, %c0_211, %c1536_212] : memref<2x8x2048xf32, #tpu.memory_space<vmem>>, vector<1x8x512xf32>
    %436 = vector.shape_cast %435 : vector<1x8x512xf32> to vector<8x512xf32>
    %cst_213 = arith.constant dense<0.000000e+00> : vector<8x512xf32>
    %437 = tpu.matmul %403, %436, %cst_213 {dimension_numbers = #tpu.dot_dimension_numbers<[1], [0], [0], [1], [0, 0, 1, 1], [], []>} : vector<8x8xf32>, vector<8x512xf32>, vector<8x512xf32> -> vector<8x512xf32>
    %cst_214 = arith.constant 0.000000e+00 : f32
    %438 = vector.broadcast %cst_214 : f32 to vector<8x512xf32>
    %439 = arith.maximumf %437, %438 : vector<8x512xf32>
    %cst_215 = arith.constant dense<0.000000e+00> : vector<8x512xf32>
    %440 = tpu.matmul %404, %439, %cst_215 {dimension_numbers = #tpu.dot_dimension_numbers<[1], [0], [0], [1], [0, 0, 1, 1], [], []>} : vector<8x8xf32>, vector<8x512xf32>, vector<8x512xf32> -> vector<8x512xf32>
    %441 = arith.truncf %440 : vector<8x512xf32> to vector<8x512xbf16>
    %c0_216 = arith.constant 0 : index
    %c0_217 = arith.constant 0 : index
    %c1536_218 = arith.constant 1536 : index
    %442 = vector.load %arg4[%c0_216, %c0_217, %c1536_218] : memref<2x8x2048xbf16, #tpu.memory_space<vmem>>, vector<1x8x512xbf16>
    %443 = vector.shape_cast %442 : vector<1x8x512xbf16> to vector<8x512xbf16>
    %444 = vector.shape_cast %441 : vector<8x512xbf16> to vector<1x8x512xbf16>
    tpu.vector_store %arg4[%c0_216, %c0_217, %c1536_218], %444 {strides = array<i32>} : memref<2x8x2048xbf16, #tpu.memory_space<vmem>>, vector<1x8x512xbf16>,
    %c1_219 = arith.constant 1 : index
    %c0_220 = arith.constant 0 : index
    %c0_221 = arith.constant 0 : index
    %445 = vector.load %arg5[%c1_219, %c0_220, %c0_221] : memref<2x8x2048xf32, #tpu.memory_space<vmem>>, vector<1x8x512xf32>
    %446 = vector.shape_cast %445 : vector<1x8x512xf32> to vector<8x512xf32>
    %cst_222 = arith.constant dense<0.000000e+00> : vector<8x512xf32>
    %447 = tpu.matmul %403, %446, %cst_222 {dimension_numbers = #tpu.dot_dimension_numbers<[1], [0], [0], [1], [0, 0, 1, 1], [], []>} : vector<8x8xf32>, vector<8x512xf32>, vector<8x512xf32> -> vector<8x512xf32>
    %cst_223 = arith.constant 0.000000e+00 : f32
    %448 = vector.broadcast %cst_223 : f32 to vector<8x512xf32>
    %449 = arith.maximumf %447, %448 : vector<8x512xf32>
    %cst_224 = arith.constant dense<0.000000e+00> : vector<8x512xf32>
    %450 = tpu.matmul %404, %449, %cst_224 {dimension_numbers = #tpu.dot_dimension_numbers<[1], [0], [0], [1], [0, 0, 1, 1], [], []>} : vector<8x8xf32>, vector<8x512xf32>, vector<8x512xf32> -> vector<8x512xf32>
    %451 = arith.truncf %450 : vector<8x512xf32> to vector<8x512xbf16>
    %c1_225 = arith.constant 1 : index
    %c0_226 = arith.constant 0 : index
    %c0_227 = arith.constant 0 : index
    %452 = vector.load %arg4[%c1_225, %c0_226, %c0_227] : memref<2x8x2048xbf16, #tpu.memory_space<vmem>>, vector<1x8x512xbf16>
    %453 = vector.shape_cast %452 : vector<1x8x512xbf16> to vector<8x512xbf16>
    %454 = vector.shape_cast %451 : vector<8x512xbf16> to vector<1x8x512xbf16>
    tpu.vector_store %arg4[%c1_225, %c0_226, %c0_227], %454 {strides = array<i32>} : memref<2x8x2048xbf16, #tpu.memory_space<vmem>>, vector<1x8x512xbf16>,
    %c1_228 = arith.constant 1 : index
    %c0_229 = arith.constant 0 : index
    %c512_230 = arith.constant 512 : index
    %455 = vector.load %arg5[%c1_228, %c0_229, %c512_230] : memref<2x8x2048xf32, #tpu.memory_space<vmem>>, vector<1x8x512xf32>
    %456 = vector.shape_cast %455 : vector<1x8x512xf32> to vector<8x512xf32>
    %cst_231 = arith.constant dense<0.000000e+00> : vector<8x512xf32>
    %457 = tpu.matmul %403, %456, %cst_231 {dimension_numbers = #tpu.dot_dimension_numbers<[1], [0], [0], [1], [0, 0, 1, 1], [], []>} : vector<8x8xf32>, vector<8x512xf32>, vector<8x512xf32> -> vector<8x512xf32>
    %cst_232 = arith.constant 0.000000e+00 : f32
    %458 = vector.broadcast %cst_232 : f32 to vector<8x512xf32>
    %459 = arith.maximumf %457, %458 : vector<8x512xf32>
    %cst_233 = arith.constant dense<0.000000e+00> : vector<8x512xf32>
    %460 = tpu.matmul %404, %459, %cst_233 {dimension_numbers = #tpu.dot_dimension_numbers<[1], [0], [0], [1], [0, 0, 1, 1], [], []>} : vector<8x8xf32>, vector<8x512xf32>, vector<8x512xf32> -> vector<8x512xf32>
    %461 = arith.truncf %460 : vector<8x512xf32> to vector<8x512xbf16>
    %c1_234 = arith.constant 1 : index
    %c0_235 = arith.constant 0 : index
    %c512_236 = arith.constant 512 : index
    %462 = vector.load %arg4[%c1_234, %c0_235, %c512_236] : memref<2x8x2048xbf16, #tpu.memory_space<vmem>>, vector<1x8x512xbf16>
    %463 = vector.shape_cast %462 : vector<1x8x512xbf16> to vector<8x512xbf16>
    %464 = vector.shape_cast %461 : vector<8x512xbf16> to vector<1x8x512xbf16>
    tpu.vector_store %arg4[%c1_234, %c0_235, %c512_236], %464 {strides = array<i32>} : memref<2x8x2048xbf16, #tpu.memory_space<vmem>>, vector<1x8x512xbf16>,
    %c1_237 = arith.constant 1 : index
    %c0_238 = arith.constant 0 : index
    %c1024_239 = arith.constant 1024 : index
    %465 = vector.load %arg5[%c1_237, %c0_238, %c1024_239] : memref<2x8x2048xf32, #tpu.memory_space<vmem>>, vector<1x8x512xf32>
    %466 = vector.shape_cast %465 : vector<1x8x512xf32> to vector<8x512xf32>
    %cst_240 = arith.constant dense<0.000000e+00> : vector<8x512xf32>
    %467 = tpu.matmul %403, %466, %cst_240 {dimension_numbers = #tpu.dot_dimension_numbers<[1], [0], [0], [1], [0, 0, 1, 1], [], []>} : vector<8x8xf32>, vector<8x512xf32>, vector<8x512xf32> -> vector<8x512xf32>
    %cst_241 = arith.constant 0.000000e+00 : f32
    %468 = vector.broadcast %cst_241 : f32 to vector<8x512xf32>
    %469 = arith.maximumf %467, %468 : vector<8x512xf32>
    %cst_242 = arith.constant dense<0.000000e+00> : vector<8x512xf32>
    %470 = tpu.matmul %404, %469, %cst_242 {dimension_numbers = #tpu.dot_dimension_numbers<[1], [0], [0], [1], [0, 0, 1, 1], [], []>} : vector<8x8xf32>, vector<8x512xf32>, vector<8x512xf32> -> vector<8x512xf32>
    %471 = arith.truncf %470 : vector<8x512xf32> to vector<8x512xbf16>
    %c1_243 = arith.constant 1 : index
    %c0_244 = arith.constant 0 : index
    %c1024_245 = arith.constant 1024 : index
    %472 = vector.load %arg4[%c1_243, %c0_244, %c1024_245] : memref<2x8x2048xbf16, #tpu.memory_space<vmem>>, vector<1x8x512xbf16>
    %473 = vector.shape_cast %472 : vector<1x8x512xbf16> to vector<8x512xbf16>
    %474 = vector.shape_cast %471 : vector<8x512xbf16> to vector<1x8x512xbf16>
    tpu.vector_store %arg4[%c1_243, %c0_244, %c1024_245], %474 {strides = array<i32>} : memref<2x8x2048xbf16, #tpu.memory_space<vmem>>, vector<1x8x512xbf16>,
    %c1_246 = arith.constant 1 : index
    %c0_247 = arith.constant 0 : index
    %c1536_248 = arith.constant 1536 : index
    %475 = vector.load %arg5[%c1_246, %c0_247, %c1536_248] : memref<2x8x2048xf32, #tpu.memory_space<vmem>>, vector<1x8x512xf32>
    %476 = vector.shape_cast %475 : vector<1x8x512xf32> to vector<8x512xf32>
    %cst_249 = arith.constant dense<0.000000e+00> : vector<8x512xf32>
    %477 = tpu.matmul %403, %476, %cst_249 {dimension_numbers = #tpu.dot_dimension_numbers<[1], [0], [0], [1], [0, 0, 1, 1], [], []>} : vector<8x8xf32>, vector<8x512xf32>, vector<8x512xf32> -> vector<8x512xf32>
    %cst_250 = arith.constant 0.000000e+00 : f32
    %478 = vector.broadcast %cst_250 : f32 to vector<8x512xf32>
    %479 = arith.maximumf %477, %478 : vector<8x512xf32>
    %cst_251 = arith.constant dense<0.000000e+00> : vector<8x512xf32>
    %480 = tpu.matmul %404, %479, %cst_251 {dimension_numbers = #tpu.dot_dimension_numbers<[1], [0], [0], [1], [0, 0, 1, 1], [], []>} : vector<8x8xf32>, vector<8x512xf32>, vector<8x512xf32> -> vector<8x512xf32>
    %481 = arith.truncf %480 : vector<8x512xf32> to vector<8x512xbf16>
    %c1_252 = arith.constant 1 : index
    %c0_253 = arith.constant 0 : index
    %c1536_254 = arith.constant 1536 : index
    %482 = vector.load %arg4[%c1_252, %c0_253, %c1536_254] : memref<2x8x2048xbf16, #tpu.memory_space<vmem>>, vector<1x8x512xbf16>
    %483 = vector.shape_cast %482 : vector<1x8x512xbf16> to vector<8x512xbf16>
    %484 = vector.shape_cast %481 : vector<8x512xbf16> to vector<1x8x512xbf16>
    tpu.vector_store %arg4[%c1_252, %c0_253, %c1536_254], %484 {strides = array<i32>} : memref<2x8x2048xbf16, #tpu.memory_space<vmem>>, vector<1x8x512xbf16>,
    return
  }
}

</mosaic_0001>

<llo_original>
// kernel: tpu_custom_call.1
$region0: #{tpu_custom_call.1}
  #allocation0 [shape = 'u32[]', space=smem, size = 0x4, offset = 0x4, fixed_abs, tag = 'smem constant byte address 0x4 - core index']
  #allocation1 [shape = 'u32[72,128]{1,0:T(1,128)}', space=vmem, size = 0x9000, scoped, tag = 'internal scratch']
  #allocation2 [shape = 'f32[2,8,2048]{2,1,0:T(8,128)}', space=vmem, size = 0x20000, scoped, tag = 'scratch operand']
  %s0 = inlined_call_operand.hbm [shape: bf16[2,8,2048], index: 0, kind: input, shape index: {}]
  %s1 = inlined_call_operand.vmem [shape: bf16[2,16,256], index: 1, kind: input, shape index: {}]
  %s2 = inlined_call_operand.vmem [shape: bf16[40,24], index: 2, kind: input, shape index: {}]
  %s3 = inlined_call_operand.hbm [shape: f32[8,8], index: 3, kind: input, shape index: {}]
  %s4 = inlined_call_operand.hbm [shape: bf16[2,8,2048], index: 4, kind: output, shape index: {}]
  %s5 = sld [smem:[#allocation0]]
  $region34: #{tpu_custom_call.1} parent=0
    _
  %s7 = ssub.s32 1, %s5
  %s8 = scalar_select 0, %s7, %s5
  $region1: #{tpu_custom_call.1} parent=0
    #allocation3 [shape = 'u8[65536]{0}', space=vmem, size = 0x10000, scoped, tag = 'input window, operand 0, single buffered']
    #allocation4 [shape = 's32[1]{0}', space=sflag, size = 0x4, scoped, tag = 'scoped memory for tpu_custom_call.1']
    #allocation5 [shape = 's32[1]{0}', space=sflag, size = 0x4, scoped, tag = 'scoped memory for tpu_custom_call.1']
    #allocation6 [shape = 'u8[4096]{0}', space=vmem, size = 0x1000, scoped, tag = 'input window, operand 3, single buffered']
    #allocation7 [shape = 's32[1]{0}', space=sflag, size = 0x4, scoped, tag = 'scoped memory for tpu_custom_call.1']
    #allocation8 [shape = 'u8[65536]{0}', space=vmem, size = 0x10000, scoped, tag = 'output window, operand 0, single buffered']
    %9 = vsyncpa [#allocation4], 0
    %10 = vsyncpa [#allocation7], 0
    %11 = vsyncpa [#allocation5], 0
    // Predicated region
    $region2: #{tpu_custom_call.1} parent=1 // pred_check
      _
    $region3: #{tpu_custom_call.1} parent=1 // pred_check_branch
      %13 = sbr.rel (0) target = $region5
    $region4: #{tpu_custom_call.1} parent=1 // pred_region
      %15 = vsyncadd [#allocation4], 0
      %s16 = sshll.u32 %s0, 4
      %s17 = int_to_ptr.hbm [resolvable:$true] %s16
      %s18 = sshll.u32 [#allocation3], 4
      %s19 = int_to_ptr.vmem [resolvable:$true] %s18
      %24 = dma.hbm_to_vmem [thread:$0]  %s17, 2048, %s19, [#allocation4], 1024, 1024, 64
    $region5: #{tpu_custom_call.1} parent=1 // pred_fallthru
      _
    // Predicated region
    $region6: #{tpu_custom_call.1} parent=1 // pred_check
      _
    $region7: #{tpu_custom_call.1} parent=1 // pred_check_branch
      %26 = sbr.rel (0) target = $region9
    $region8: #{tpu_custom_call.1} parent=1 // pred_region
      _
    $region9: #{tpu_custom_call.1} parent=1 // pred_fallthru
      _
    // Predicated region
    $region10: #{tpu_custom_call.1} parent=1 // pred_check
      _
    $region11: #{tpu_custom_call.1} parent=1 // pred_check_branch
      %28 = sbr.rel (0) target = $region13
    $region12: #{tpu_custom_call.1} parent=1 // pred_region
      _
    $region13: #{tpu_custom_call.1} parent=1 // pred_fallthru
      _
    // Predicated region
    $region14: #{tpu_custom_call.1} parent=1 // pred_check
      _
    $region15: #{tpu_custom_call.1} parent=1 // pred_check_branch
      %30 = sbr.rel (0) target = $region17
    $region16: #{tpu_custom_call.1} parent=1 // pred_region
      %32 = vsyncadd [#allocation7], 0
      %s34 = sshll.u32 %s3, 4
      %s35 = int_to_ptr.hbm [resolvable:$true] %s34
      %s36 = sshll.u32 [#allocation6], 4
      %s37 = int_to_ptr.vmem [resolvable:$true] %s36
      %39 = dma.hbm_to_vmem [thread:$0]  %s35, 128, %s37, [#allocation7]
    $region17: #{tpu_custom_call.1} parent=1 // pred_fallthru
      _
    // Predicated region
    $region18: #{tpu_custom_call.1} parent=1 // pred_check
      _
    $region19: #{tpu_custom_call.1} parent=1 // pred_check_branch
      %41 = sbr.rel (0) target = $region21
    $region20: #{tpu_custom_call.1} parent=1 // pred_region
      %43 = dma.done [#allocation4], 2048
    $region21: #{tpu_custom_call.1} parent=1 // pred_fallthru
      _
    // Predicated region
    $region22: #{tpu_custom_call.1} parent=1 // pred_check
      _
    $region23: #{tpu_custom_call.1} parent=1 // pred_check_branch
      %45 = sbr.rel (0) target = $region25
    $region24: #{tpu_custom_call.1} parent=1 // pred_region
      %47 = dma.done [#allocation7], 128
    $region25: #{tpu_custom_call.1} parent=1 // pred_fallthru
      _
    %v49 = vld [vmem:[%s2] sm:$0xf]
    %v50 = vld [vmem:[%s2 + $0x4] sm:$0xf]
    %v51 = vld [vmem:[%s2 + $0x8] sm:$0xf]
    %v52 = vld [vmem:[%s2 + $0xc] sm:$0xf]
    %v53 = vld [vmem:[%s2 + $0x10] sm:$0xf]
    %v54 = vld [vmem:[%s1] sm:$0xff]
    %v55 = vld [vmem:[%s1 + $0x8] sm:$0xff]
    %s56 = scalar_lea.vmem %s1, 16
    %v57 = vld [vmem:[%s56] sm:$0xff]
    %v58 = vld [vmem:[%s56 + $0x8] sm:$0xff]
    %v59 = vld [vmem:[#allocation3] sm:$0xff]
    %v62 = vunpack.c.l.b16 %v54
    %v63 = vunpack.c.h.b16 %v54
    %v64 = vunpack.c.l.b16 %v55
    %v65 = vunpack.c.h.b16 %v55
    %v66 = vpack.c.b16 %v64, %v62
    %v67 = vpack.c.b16 %v65, %v63
    %v71 = vunpack.c.l.b16 %v59
    %v72 = vunpack.c.h.b16 %v59
    %v73 = vpack.c.b16 %v71, %v71
    %v74 = vpack.c.b16 %v72, %v72
    %v80 = vunpack.c.l.b16 %v49
    %v81 = vunpack.c.l.b16 %v50
    %v82 = vunpack.c.l.b16 %v51
    %v83 = vunpack.c.l.b16 %v52
    %v84 = vunpack.c.l.b16 %v53
    %v85 = vpack.c.b16 %v81, %v80
    %v86 = vpack.c.b16 %v83, %v82
    %v87 = vpack.c.b16 %v84, %v84
    %vm88 = vcmask 195584
    %v90 = vsel %vm88, %v85, 0
    %v93 = vsel %vm88, %v86, 0
    %v96 = vsel %vm88, %v87, 0
    %vm98 = vcmask 1043456
    %v100 = vsel %vm98, %v73, 0
    %v103 = vsel %vm98, %v74, 0
    %105 = vmatpush.bf16.msra.mxu0 0
    %106 = vmatpush.bf16.msra.mxu0 0
    %107 = vmatpush.bf16.msra.mxu0 0
    %108 = vmatpush.bf16.msra.mxu0 0
    %109 = vmatpush.bf16.msra.mxu0 0
    %110 = vmatpush.bf16.msra.mxu0 0
    %111 = vmatpush.bf16.msra.mxu0 %v100
    %112 = vmatpush.bf16.msra.mxu0 %v66
    %113 = vmatmul.bf16.gmra.mxu0 %v90
    %v114 = vpop.f32.mrf.mxu0
    %v115 = vadd.f32 0.0, %v114
    %v116 = vpop.f32.mrf.mxu0
    %v117 = vadd.f32 0.0, %v116
    %118 = vmatmul.bf16.gmra.mxu0 %v93
    %v119 = vpop.f32.mrf.mxu0
    %v120 = vadd.f32 0.0, %v119
    %v121 = vpop.f32.mrf.mxu0
    %v122 = vadd.f32 0.0, %v121
    %123 = vmatmul.bf16.gmra.mxu0 %v96
    %v124 = vpop.f32.mrf.mxu0
    %v125 = vadd.f32 0.0, %v124
    %v126 = vpop.f32.mrf.mxu0
    %127 = vdwg.mxu0
    %128 = vmatpush.bf16.msra.mxu0 0
    %129 = vmatpush.bf16.msra.mxu0 0
    %130 = vmatpush.bf16.msra.mxu0 0
    %131 = vmatpush.bf16.msra.mxu0 0
    %132 = vmatpush.bf16.msra.mxu0 0
    %133 = vmatpush.bf16.msra.mxu0 0
    %134 = vmatpush.bf16.msra.mxu0 %v103
    %135 = vmatpush.bf16.msra.mxu0 %v67
    %136 = vmatmul.bf16.gmra.mxu0 %v90
    %v137 = vpop.f32.mrf.mxu0
    %v138 = vadd.f32 0.0, %v137
    %v139 = vpop.f32.mrf.mxu0
    %v140 = vadd.f32 0.0, %v139
    %141 = vmatmul.bf16.gmra.mxu0 %v93
    %v142 = vpop.f32.mrf.mxu0
    %v143 = vadd.f32 0.0, %v142
    %v144 = vpop.f32.mrf.mxu0
    %v145 = vadd.f32 0.0, %v144
    %146 = vmatmul.bf16.gmra.mxu0 %v96
    %v147 = vpop.f32.mrf.mxu0
    %v148 = vadd.f32 0.0, %v147
    %v149 = vpop.f32.mrf.mxu0
    %150 = vdwg.mxu0
    %v151 = vmax.f32 %v115, 0.0
    %v152 = vmax.f32 %v138, 0.0
    %v153 = vmax.f32 %v117, 0.0
    %v154 = vmax.f32 %v140, 0.0
    %v155 = vmax.f32 %v120, 0.0
    %v156 = vmax.f32 %v143, 0.0
    %v157 = vmax.f32 %v122, 0.0
    %v158 = vmax.f32 %v145, 0.0
    %v159 = vmax.f32 %v125, 0.0
    %v160 = vmax.f32 %v148, 0.0
    %161 = vst [vmem:[#allocation2] sm:$0xff] %v159
    %162 = vst [vmem:[#allocation2 + $0x8] sm:$0xff] %v160
    %s163 = scalar_lea.vmem [#allocation3], 64
    %v164 = vld [vmem:[%s163] sm:$0xff]
    %v167 = vunpack.c.l.b16 %v57
    %v168 = vunpack.c.h.b16 %v57
    %v169 = vunpack.c.l.b16 %v58
    %v170 = vunpack.c.h.b16 %v58
    %v171 = vpack.c.b16 %v169, %v167
    %v172 = vpack.c.b16 %v170, %v168
    %v176 = vunpack.c.l.b16 %v164
    %v177 = vunpack.c.h.b16 %v164
    %v178 = vpack.c.b16 %v176, %v176
    %v179 = vpack.c.b16 %v177, %v177
    %v181 = vsel %vm98, %v178, 0
    %v184 = vsel %vm98, %v179, 0
    %186 = vmatpush.bf16.msra.mxu0 0
    %187 = vmatpush.bf16.msra.mxu0 0
    %188 = vmatpush.bf16.msra.mxu0 0
    %189 = vmatpush.bf16.msra.mxu0 0
    %190 = vmatpush.bf16.msra.mxu0 0
    %191 = vmatpush.bf16.msra.mxu0 0
    %192 = vmatpush.bf16.msra.mxu0 %v181
    %193 = vmatpush.bf16.msra.mxu0 %v171
    %194 = vmatmul.bf16.gmra.mxu0 %v90
    %v195 = vpop.f32.mrf.mxu0
    %v196 = vadd.f32 0.0, %v195
    %v197 = vpop.f32.mrf.mxu0
    %v198 = vadd.f32 0.0, %v197
    %199 = vmatmul.bf16.gmra.mxu0 %v93
    %v200 = vpop.f32.mrf.mxu0
    %v201 = vadd.f32 0.0, %v200
    %v202 = vpop.f32.mrf.mxu0
    %v203 = vadd.f32 0.0, %v202
    %204 = vmatmul.bf16.gmra.mxu0 %v96
    %v205 = vpop.f32.mrf.mxu0
    %v206 = vadd.f32 0.0, %v205
    %v207 = vpop.f32.mrf.mxu0
    %208 = vdwg.mxu0
    %209 = vmatpush.bf16.msra.mxu0 0
    %210 = vmatpush.bf16.msra.mxu0 0
    %211 = vmatpush.bf16.msra.mxu0 0
    %212 = vmatpush.bf16.msra.mxu0 0
    %213 = vmatpush.bf16.msra.mxu0 0
    %214 = vmatpush.bf16.msra.mxu0 0
    %215 = vmatpush.bf16.msra.mxu0 %v184
    %216 = vmatpush.bf16.msra.mxu0 %v172
    %217 = vmatmul.bf16.gmra.mxu0 %v90
    %v218 = vpop.f32.mrf.mxu0
    %v219 = vadd.f32 0.0, %v218
    %v220 = vpop.f32.mrf.mxu0
    %v221 = vadd.f32 0.0, %v220
    %222 = vmatmul.bf16.gmra.mxu0 %v93
    %v223 = vpop.f32.mrf.mxu0
    %v224 = vadd.f32 0.0, %v223
    %v225 = vpop.f32.mrf.mxu0
    %v226 = vadd.f32 0.0, %v225
    %227 = vmatmul.bf16.gmra.mxu0 %v96
    %v228 = vpop.f32.mrf.mxu0
    %v229 = vadd.f32 0.0, %v228
    %v230 = vpop.f32.mrf.mxu0
    %231 = vdwg.mxu0
    %v232 = vmax.f32 %v196, 0.0
    %v233 = vmax.f32 %v219, 0.0
    %v234 = vmax.f32 %v198, 0.0
    %v235 = vmax.f32 %v221, 0.0
    %v236 = vmax.f32 %v201, 0.0
    %v237 = vmax.f32 %v224, 0.0
    %v238 = vmax.f32 %v203, 0.0
    %v239 = vmax.f32 %v226, 0.0
    %v240 = vmax.f32 %v206, 0.0
    %v241 = vmax.f32 %v229, 0.0
    %s242 = scalar_lea.vmem [#allocation2], 128
    %243 = vst [vmem:[%s242] sm:$0xff] %v240
    %244 = vst [vmem:[%s242 + $0x8] sm:$0xff] %v241
    %v245 = vmul.f32 %v151, %v155
    %v246 = vmul.f32 %v152, %v156
    %v247 = vmul.f32 %v153, %v157
    %v248 = vmul.f32 %v154, %v158
    %v249 = vadd.f32 %v245, %v247
    %v250 = vrot.slane %v249, 4
    %v251 = vadd.f32 %v249, %v250
    %v252 = vrot.slane %v251, 2
    %v253 = vadd.f32 %v251, %v252
    %v254 = vrot.slane %v253, 1
    %v255 = vadd.f32 %v253, %v254
    %v256 = vadd.f32 %v246, %v248
    %v257 = vrot.slane %v256, 4
    %v258 = vadd.f32 %v256, %v257
    %v259 = vrot.slane %v258, 2
    %v260 = vadd.f32 %v258, %v259
    %v261 = vrot.slane %v260, 1
    %v262 = vadd.f32 %v260, %v261
    %v263 = vadd.f32 %v255, 0.0
    %v264 = vadd.f32 %v262, 0.0
    %v265 = vmul.f32 %v151, %v236
    %v266 = vmul.f32 %v152, %v237
    %v267 = vmul.f32 %v153, %v238
    %v268 = vmul.f32 %v154, %v239
    %v269 = vadd.f32 %v265, %v267
    %v270 = vrot.slane %v269, 4
    %v271 = vadd.f32 %v269, %v270
    %v272 = vrot.slane %v271, 2
    %v273 = vadd.f32 %v271, %v272
    %v274 = vrot.slane %v273, 1
    %v275 = vadd.f32 %v273, %v274
    %v276 = vadd.f32 %v266, %v268
    %v277 = vrot.slane %v276, 4
    %v278 = vadd.f32 %v276, %v277
    %v279 = vrot.slane %v278, 2
    %v280 = vadd.f32 %v278, %v279
    %v281 = vrot.slane %v280, 1
    %v282 = vadd.f32 %v280, %v281
    %v283 = vadd.f32 %v275, 0.0
    %v284 = vadd.f32 %v282, 0.0
    %v285 = vmul.f32 %v232, %v155
    %v286 = vmul.f32 %v233, %v156
    %v287 = vmul.f32 %v234, %v157
    %v288 = vmul.f32 %v235, %v158
    %v289 = vadd.f32 %v285, %v287
    %v290 = vrot.slane %v289, 4
    %v291 = vadd.f32 %v289, %v290
    %v292 = vrot.slane %v291, 2
    %v293 = vadd.f32 %v291, %v292
    %v294 = vrot.slane %v293, 1
    %v295 = vadd.f32 %v293, %v294
    %v296 = vadd.f32 %v286, %v288
    %v297 = vrot.slane %v296, 4
    %v298 = vadd.f32 %v296, %v297
    %v299 = vrot.slane %v298, 2
    %v300 = vadd.f32 %v298, %v299
    %v301 = vrot.slane %v300, 1
    %v302 = vadd.f32 %v300, %v301
    %v303 = vadd.f32 %v295, 0.0
    %v304 = vadd.f32 %v302, 0.0
    %v305 = vmul.f32 %v232, %v236
    %v306 = vmul.f32 %v233, %v237
    %v307 = vmul.f32 %v234, %v238
    %v308 = vmul.f32 %v235, %v239
    %v309 = vadd.f32 %v305, %v307
    %v310 = vrot.slane %v309, 4
    %v311 = vadd.f32 %v309, %v310
    %v312 = vrot.slane %v311, 2
    %v313 = vadd.f32 %v311, %v312
    %v314 = vrot.slane %v313, 1
    %v315 = vadd.f32 %v313, %v314
    %v316 = vadd.f32 %v306, %v308
    %v317 = vrot.slane %v316, 4
    %v318 = vadd.f32 %v316, %v317
    %v319 = vrot.slane %v318, 2
    %v320 = vadd.f32 %v318, %v319
    %v321 = vrot.slane %v320, 1
    %v322 = vadd.f32 %v320, %v321
    %v323 = vadd.f32 %v315, 0.0
    %v324 = vadd.f32 %v322, 0.0
    %v325 = vld [vmem:[#allocation3 + $0x8] sm:$0xff]
    %v327 = vunpack.c.l.b16 %v325
    %v328 = vunpack.c.h.b16 %v325
    %v329 = vpack.c.b16 %v327, %v327
    %v330 = vpack.c.b16 %v328, %v328
    %v332 = vsel %vm98, %v329, 0
    %v335 = vsel %vm98, %v330, 0
    %337 = vmatpush.bf16.msra.mxu0 0
    %338 = vmatpush.bf16.msra.mxu0 0
    %339 = vmatpush.bf16.msra.mxu0 0
    %340 = vmatpush.bf16.msra.mxu0 0
    %341 = vmatpush.bf16.msra.mxu0 0
    %342 = vmatpush.bf16.msra.mxu0 0
    %343 = vmatpush.bf16.msra.mxu0 %v332
    %344 = vmatpush.bf16.msra.mxu0 %v66
    %345 = vmatmul.bf16.gmra.mxu0 %v90
    %v346 = vpop.f32.mrf.mxu0
    %v347 = vadd.f32 0.0, %v346
    %v348 = vpop.f32.mrf.mxu0
    %v349 = vadd.f32 0.0, %v348
    %350 = vmatmul.bf16.gmra.mxu0 %v93
    %v351 = vpop.f32.mrf.mxu0
    %v352 = vadd.f32 0.0, %v351
    %v353 = vpop.f32.mrf.mxu0
    %v354 = vadd.f32 0.0, %v353
    %355 = vmatmul.bf16.gmra.mxu0 %v96
    %v356 = vpop.f32.mrf.mxu0
    %v357 = vadd.f32 0.0, %v356
    %v358 = vpop.f32.mrf.mxu0
    %359 = vdwg.mxu0
    %360 = vmatpush.bf16.msra.mxu0 0
    %361 = vmatpush.bf16.msra.mxu0 0
    %362 = vmatpush.bf16.msra.mxu0 0
    %363 = vmatpush.bf16.msra.mxu0 0
    %364 = vmatpush.bf16.msra.mxu0 0
    %365 = vmatpush.bf16.msra.mxu0 0
    %366 = vmatpush.bf16.msra.mxu0 %v335
    %367 = vmatpush.bf16.msra.mxu0 %v67
    %368 = vmatmul.bf16.gmra.mxu0 %v90
    %v369 = vpop.f32.mrf.mxu0
    %v370 = vadd.f32 0.0, %v369
    %v371 = vpop.f32.mrf.mxu0
    %v372 = vadd.f32 0.0, %v371
    %373 = vmatmul.bf16.gmra.mxu0 %v93
    %v374 = vpop.f32.mrf.mxu0
    %v375 = vadd.f32 0.0, %v374
    %v376 = vpop.f32.mrf.mxu0
    %v377 = vadd.f32 0.0, %v376
    %378 = vmatmul.bf16.gmra.mxu0 %v96
    %v379 = vpop.f32.mrf.mxu0
    %v380 = vadd.f32 0.0, %v379
    %v381 = vpop.f32.mrf.mxu0
    %382 = vdwg.mxu0
    %v383 = vmax.f32 %v347, 0.0
    %v384 = vmax.f32 %v370, 0.0
    %v385 = vmax.f32 %v349, 0.0
    %v386 = vmax.f32 %v372, 0.0
    %v387 = vmax.f32 %v352, 0.0
    %v388 = vmax.f32 %v375, 0.0
    %v389 = vmax.f32 %v354, 0.0
    %v390 = vmax.f32 %v377, 0.0
    %v391 = vmax.f32 %v357, 0.0
    %v392 = vmax.f32 %v380, 0.0
    %393 = vst [vmem:[#allocation2 + $0x10] sm:$0xff] %v391
    %394 = vst [vmem:[#allocation2 + $0x18] sm:$0xff] %v392
    %v395 = vld [vmem:[%s163 + $0x8] sm:$0xff]
    %v397 = vunpack.c.l.b16 %v395
    %v398 = vunpack.c.h.b16 %v395
    %v399 = vpack.c.b16 %v397, %v397
    %v400 = vpack.c.b16 %v398, %v398
    %v402 = vsel %vm98, %v399, 0
    %v405 = vsel %vm98, %v400, 0
    %407 = vmatpush.bf16.msra.mxu0 0
    %408 = vmatpush.bf16.msra.mxu0 0
    %409 = vmatpush.bf16.msra.mxu0 0
    %410 = vmatpush.bf16.msra.mxu0 0
    %411 = vmatpush.bf16.msra.mxu0 0
    %412 = vmatpush.bf16.msra.mxu0 0
    %413 = vmatpush.bf16.msra.mxu0 %v402
    %414 = vmatpush.bf16.msra.mxu0 %v171
    %415 = vmatmul.bf16.gmra.mxu0 %v90
    %v416 = vpop.f32.mrf.mxu0
    %v417 = vadd.f32 0.0, %v416
    %v418 = vpop.f32.mrf.mxu0
    %v419 = vadd.f32 0.0, %v418
    %420 = vmatmul.bf16.gmra.mxu0 %v93
    %v421 = vpop.f32.mrf.mxu0
    %v422 = vadd.f32 0.0, %v421
    %v423 = vpop.f32.mrf.mxu0
    %v424 = vadd.f32 0.0, %v423
    %425 = vmatmul.bf16.gmra.mxu0 %v96
    %v426 = vpop.f32.mrf.mxu0
    %v427 = vadd.f32 0.0, %v426
    %v428 = vpop.f32.mrf.mxu0
    %429 = vdwg.mxu0
    %430 = vmatpush.bf16.msra.mxu0 0
    %431 = vmatpush.bf16.msra.mxu0 0
    %432 = vmatpush.bf16.msra.mxu0 0
    %433 = vmatpush.bf16.msra.mxu0 0
    %434 = vmatpush.bf16.msra.mxu0 0
    %435 = vmatpush.bf16.msra.mxu0 0
    %436 = vmatpush.bf16.msra.mxu0 %v405
    %437 = vmatpush.bf16.msra.mxu0 %v172
    %438 = vmatmul.bf16.gmra.mxu0 %v90
    %v439 = vpop.f32.mrf.mxu0
    %v440 = vadd.f32 0.0, %v439
    %v441 = vpop.f32.mrf.mxu0
    %v442 = vadd.f32 0.0, %v441
    %443 = vmatmul.bf16.gmra.mxu0 %v93
    %v444 = vpop.f32.mrf.mxu0
    %v445 = vadd.f32 0.0, %v444
    %v446 = vpop.f32.mrf.mxu0
    %v447 = vadd.f32 0.0, %v446
    %448 = vmatmul.bf16.gmra.mxu0 %v96
    %v449 = vpop.f32.mrf.mxu0
    %v450 = vadd.f32 0.0, %v449
    %v451 = vpop.f32.mrf.mxu0
    %452 = vdwg.mxu0
    %v453 = vmax.f32 %v417, 0.0
    %v454 = vmax.f32 %v440, 0.0
    %v455 = vmax.f32 %v419, 0.0
    %v456 = vmax.f32 %v442, 0.0
    %v457 = vmax.f32 %v422, 0.0
    %v458 = vmax.f32 %v445, 0.0
    %v459 = vmax.f32 %v424, 0.0
    %v460 = vmax.f32 %v447, 0.0
    %v461 = vmax.f32 %v427, 0.0
    %v462 = vmax.f32 %v450, 0.0
    %463 = vst [vmem:[%s242 + $0x10] sm:$0xff] %v461
    %464 = vst [vmem:[%s242 + $0x18] sm:$0xff] %v462
    %v465 = vmul.f32 %v383, %v387
    %v466 = vmul.f32 %v384, %v388
    %v467 = vmul.f32 %v385, %v389
    %v468 = vmul.f32 %v386, %v390
    %v469 = vadd.f32 %v465, %v467
    %v470 = vrot.slane %v469, 4
    %v471 = vadd.f32 %v469, %v470
    %v472 = vrot.slane %v471, 2
    %v473 = vadd.f32 %v471, %v472
    %v474 = vrot.slane %v473, 1
    %v475 = vadd.f32 %v473, %v474
    %v476 = vadd.f32 %v466, %v468
    %v477 = vrot.slane %v476, 4
    %v478 = vadd.f32 %v476, %v477
    %v479 = vrot.slane %v478, 2
    %v480 = vadd.f32 %v478, %v479
    %v481 = vrot.slane %v480, 1
    %v482 = vadd.f32 %v480, %v481
    %v483 = vadd.f32 %v263, %v475
    %v484 = vadd.f32 %v264, %v482
    %v485 = vmul.f32 %v383, %v457
    %v486 = vmul.f32 %v384, %v458
    %v487 = vmul.f32 %v385, %v459
    %v488 = vmul.f32 %v386, %v460
    %v489 = vadd.f32 %v485, %v487
    %v490 = vrot.slane %v489, 4
    %v491 = vadd.f32 %v489, %v490
    %v492 = vrot.slane %v491, 2
    %v493 = vadd.f32 %v491, %v492
    %v494 = vrot.slane %v493, 1
    %v495 = vadd.f32 %v493, %v494
    %v496 = vadd.f32 %v486, %v488
    %v497 = vrot.slane %v496, 4
    %v498 = vadd.f32 %v496, %v497
    %v499 = vrot.slane %v498, 2
    %v500 = vadd.f32 %v498, %v499
    %v501 = vrot.slane %v500, 1
    %v502 = vadd.f32 %v500, %v501
    %v503 = vadd.f32 %v283, %v495
    %v504 = vadd.f32 %v284, %v502
    %v505 = vmul.f32 %v453, %v387
    %v506 = vmul.f32 %v454, %v388
    %v507 = vmul.f32 %v455, %v389
    %v508 = vmul.f32 %v456, %v390
    %v509 = vadd.f32 %v505, %v507
    %v510 = vrot.slane %v509, 4
    %v511 = vadd.f32 %v509, %v510
    %v512 = vrot.slane %v511, 2
    %v513 = vadd.f32 %v511, %v512
    %v514 = vrot.slane %v513, 1
    %v515 = vadd.f32 %v513, %v514
    %v516 = vadd.f32 %v506, %v508
    %v517 = vrot.slane %v516, 4
    %v518 = vadd.f32 %v516, %v517
    %v519 = vrot.slane %v518, 2
    %v520 = vadd.f32 %v518, %v519
    %v521 = vrot.slane %v520, 1
    %v522 = vadd.f32 %v520, %v521
    %v523 = vadd.f32 %v303, %v515
    %v524 = vadd.f32 %v304, %v522
    %v525 = vmul.f32 %v453, %v457
    %v526 = vmul.f32 %v454, %v458
    %v527 = vmul.f32 %v455, %v459
    %v528 = vmul.f32 %v456, %v460
    %v529 = vadd.f32 %v525, %v527
    %v530 = vrot.slane %v529, 4
    %v531 = vadd.f32 %v529, %v530
    %v532 = vrot.slane %v531, 2
    %v533 = vadd.f32 %v531, %v532
    %v534 = vrot.slane %v533, 1
    %v535 = vadd.f32 %v533, %v534
    %v536 = vadd.f32 %v526, %v528
    %v537 = vrot.slane %v536, 4
    %v538 = vadd.f32 %v536, %v537
    %v539 = vrot.slane %v538, 2
    %v540 = vadd.f32 %v538, %v539
    %v541 = vrot.slane %v540, 1
    %v542 = vadd.f32 %v540, %v541
    %v543 = vadd.f32 %v323, %v535
    %v544 = vadd.f32 %v324, %v542
    %v545 = vld [vmem:[#allocation3 + $0x10] sm:$0xff]
    %v547 = vunpack.c.l.b16 %v545
    %v548 = vunpack.c.h.b16 %v545
    %v549 = vpack.c.b16 %v547, %v547
    %v550 = vpack.c.b16 %v548, %v548
    %v552 = vsel %vm98, %v549, 0
    %v555 = vsel %vm98, %v550, 0
    %557 = vmatpush.bf16.msra.mxu0 0
    %558 = vmatpush.bf16.msra.mxu0 0
    %559 = vmatpush.bf16.msra.mxu0 0
    %560 = vmatpush.bf16.msra.mxu0 0
    %561 = vmatpush.bf16.msra.mxu0 0
    %562 = vmatpush.bf16.msra.mxu0 0
    %563 = vmatpush.bf16.msra.mxu0 %v552
    %564 = vmatpush.bf16.msra.mxu0 %v66
    %565 = vmatmul.bf16.gmra.mxu0 %v90
    %v566 = vpop.f32.mrf.mxu0
    %v567 = vadd.f32 0.0, %v566
    %v568 = vpop.f32.mrf.mxu0
    %v569 = vadd.f32 0.0, %v568
    %570 = vmatmul.bf16.gmra.mxu0 %v93
    %v571 = vpop.f32.mrf.mxu0
    %v572 = vadd.f32 0.0, %v571
    %v573 = vpop.f32.mrf.mxu0
    %v574 = vadd.f32 0.0, %v573
    %575 = vmatmul.bf16.gmra.mxu0 %v96
    %v576 = vpop.f32.mrf.mxu0
    %v577 = vadd.f32 0.0, %v576
    %v578 = vpop.f32.mrf.mxu0
    %579 = vdwg.mxu0
    %580 = vmatpush.bf16.msra.mxu0 0
    %581 = vmatpush.bf16.msra.mxu0 0
    %582 = vmatpush.bf16.msra.mxu0 0
    %583 = vmatpush.bf16.msra.mxu0 0
    %584 = vmatpush.bf16.msra.mxu0 0
    %585 = vmatpush.bf16.msra.mxu0 0
    %586 = vmatpush.bf16.msra.mxu0 %v555
    %587 = vmatpush.bf16.msra.mxu0 %v67
    %588 = vmatmul.bf16.gmra.mxu0 %v90
    %v589 = vpop.f32.mrf.mxu0
    %v590 = vadd.f32 0.0, %v589
    %v591 = vpop.f32.mrf.mxu0
    %v592 = vadd.f32 0.0, %v591
    %593 = vmatmul.bf16.gmra.mxu0 %v93
    %v594 = vpop.f32.mrf.mxu0
    %v595 = vadd.f32 0.0, %v594
    %v596 = vpop.f32.mrf.mxu0
    %v597 = vadd.f32 0.0, %v596
    %598 = vmatmul.bf16.gmra.mxu0 %v96
    %v599 = vpop.f32.mrf.mxu0
    %v600 = vadd.f32 0.0, %v599
    %v601 = vpop.f32.mrf.mxu0
    %602 = vdwg.mxu0
    %v603 = vmax.f32 %v567, 0.0
    %v604 = vmax.f32 %v590, 0.0
    %v605 = vmax.f32 %v569, 0.0
    %v606 = vmax.f32 %v592, 0.0
    %v607 = vmax.f32 %v572, 0.0
    %v608 = vmax.f32 %v595, 0.0
    %v609 = vmax.f32 %v574, 0.0
    %v610 = vmax.f32 %v597, 0.0
    %v611 = vmax.f32 %v577, 0.0
    %v612 = vmax.f32 %v600, 0.0
    %613 = vst [vmem:[#allocation2 + $0x20] sm:$0xff] %v611
    %614 = vst [vmem:[#allocation2 + $0x28] sm:$0xff] %v612
    %v615 = vld [vmem:[%s163 + $0x10] sm:$0xff]
    %v617 = vunpack.c.l.b16 %v615
    %v618 = vunpack.c.h.b16 %v615
    %v619 = vpack.c.b16 %v617, %v617
    %v620 = vpack.c.b16 %v618, %v618
    %v622 = vsel %vm98, %v619, 0
    %v625 = vsel %vm98, %v620, 0
    %627 = vmatpush.bf16.msra.mxu0 0
    %628 = vmatpush.bf16.msra.mxu0 0
    %629 = vmatpush.bf16.msra.mxu0 0
    %630 = vmatpush.bf16.msra.mxu0 0
    %631 = vmatpush.bf16.msra.mxu0 0
    %632 = vmatpush.bf16.msra.mxu0 0
    %633 = vmatpush.bf16.msra.mxu0 %v622
    %634 = vmatpush.bf16.msra.mxu0 %v171
    %635 = vmatmul.bf16.gmra.mxu0 %v90
    %v636 = vpop.f32.mrf.mxu0
    %v637 = vadd.f32 0.0, %v636
    %v638 = vpop.f32.mrf.mxu0
    %v639 = vadd.f32 0.0, %v638
    %640 = vmatmul.bf16.gmra.mxu0 %v93
    %v641 = vpop.f32.mrf.mxu0
    %v642 = vadd.f32 0.0, %v641
    %v643 = vpop.f32.mrf.mxu0
    %v644 = vadd.f32 0.0, %v643
    %645 = vmatmul.bf16.gmra.mxu0 %v96
    %v646 = vpop.f32.mrf.mxu0
    %v647 = vadd.f32 0.0, %v646
    %v648 = vpop.f32.mrf.mxu0
    %649 = vdwg.mxu0
    %650 = vmatpush.bf16.msra.mxu0 0
    %651 = vmatpush.bf16.msra.mxu0 0
    %652 = vmatpush.bf16.msra.mxu0 0
    %653 = vmatpush.bf16.msra.mxu0 0
    %654 = vmatpush.bf16.msra.mxu0 0
    %655 = vmatpush.bf16.msra.mxu0 0
    %656 = vmatpush.bf16.msra.mxu0 %v625
    %657 = vmatpush.bf16.msra.mxu0 %v172
    %658 = vmatmul.bf16.gmra.mxu0 %v90
    %v659 = vpop.f32.mrf.mxu0
    %v660 = vadd.f32 0.0, %v659
    %v661 = vpop.f32.mrf.mxu0
    %v662 = vadd.f32 0.0, %v661
    %663 = vmatmul.bf16.gmra.mxu0 %v93
    %v664 = vpop.f32.mrf.mxu0
    %v665 = vadd.f32 0.0, %v664
    %v666 = vpop.f32.mrf.mxu0
    %v667 = vadd.f32 0.0, %v666
    %668 = vmatmul.bf16.gmra.mxu0 %v96
    %v669 = vpop.f32.mrf.mxu0
    %v670 = vadd.f32 0.0, %v669
    %v671 = vpop.f32.mrf.mxu0
    %672 = vdwg.mxu0
    %v673 = vmax.f32 %v637, 0.0
    %v674 = vmax.f32 %v660, 0.0
    %v675 = vmax.f32 %v639, 0.0
    %v676 = vmax.f32 %v662, 0.0
    %v677 = vmax.f32 %v642, 0.0
    %v678 = vmax.f32 %v665, 0.0
    %v679 = vmax.f32 %v644, 0.0
    %v680 = vmax.f32 %v667, 0.0
    %v681 = vmax.f32 %v647, 0.0
    %v682 = vmax.f32 %v670, 0.0
    %683 = vst [vmem:[%s242 + $0x20] sm:$0xff] %v681
    %684 = vst [vmem:[%s242 + $0x28] sm:$0xff] %v682
    %v685 = vmul.f32 %v603, %v607
    %v686 = vmul.f32 %v604, %v608
    %v687 = vmul.f32 %v605, %v609
    %v688 = vmul.f32 %v606, %v610
    %v689 = vadd.f32 %v685, %v687
    %v690 = vrot.slane %v689, 4
    %v691 = vadd.f32 %v689, %v690
    %v692 = vrot.slane %v691, 2
    %v693 = vadd.f32 %v691, %v692
    %v694 = vrot.slane %v693, 1
    %v695 = vadd.f32 %v693, %v694
    %v696 = vadd.f32 %v686, %v688
    %v697 = vrot.slane %v696, 4
    %v698 = vadd.f32 %v696, %v697
    %v699 = vrot.slane %v698, 2
    %v700 = vadd.f32 %v698, %v699
    %v701 = vrot.slane %v700, 1
    %v702 = vadd.f32 %v700, %v701
    %v703 = vadd.f32 %v483, %v695
    %v704 = vadd.f32 %v484, %v702
    %v705 = vmul.f32 %v603, %v677
    %v706 = vmul.f32 %v604, %v678
    %v707 = vmul.f32 %v605, %v679
    %v708 = vmul.f32 %v606, %v680
    %v709 = vadd.f32 %v705, %v707
    %v710 = vrot.slane %v709, 4
    %v711 = vadd.f32 %v709, %v710
    %v712 = vrot.slane %v711, 2
    %v713 = vadd.f32 %v711, %v712
    %v714 = vrot.slane %v713, 1
    %v715 = vadd.f32 %v713, %v714
    %v716 = vadd.f32 %v706, %v708
    %v717 = vrot.slane %v716, 4
    %v718 = vadd.f32 %v716, %v717
    %v719 = vrot.slane %v718, 2
    %v720 = vadd.f32 %v718, %v719
    %v721 = vrot.slane %v720, 1
    %v722 = vadd.f32 %v720, %v721
    %v723 = vadd.f32 %v503, %v715
    %v724 = vadd.f32 %v504, %v722
    %v725 = vmul.f32 %v673, %v607
    %v726 = vmul.f32 %v674, %v608
    %v727 = vmul.f32 %v675, %v609
    %v728 = vmul.f32 %v676, %v610
    %v729 = vadd.f32 %v725, %v727
    %v730 = vrot.slane %v729, 4
    %v731 = vadd.f32 %v729, %v730
    %v732 = vrot.slane %v731, 2
    %v733 = vadd.f32 %v731, %v732
    %v734 = vrot.slane %v733, 1
    %v735 = vadd.f32 %v733, %v734
    %v736 = vadd.f32 %v726, %v728
    %v737 = vrot.slane %v736, 4
    %v738 = vadd.f32 %v736, %v737
    %v739 = vrot.slane %v738, 2
    %v740 = vadd.f32 %v738, %v739
    %v741 = vrot.slane %v740, 1
    %v742 = vadd.f32 %v740, %v741
    %v743 = vadd.f32 %v523, %v735
    %v744 = vadd.f32 %v524, %v742
    %v745 = vmul.f32 %v673, %v677
    %v746 = vmul.f32 %v674, %v678
    %v747 = vmul.f32 %v675, %v679
    %v748 = vmul.f32 %v676, %v680
    %v749 = vadd.f32 %v745, %v747
    %v750 = vrot.slane %v749, 4
    %v751 = vadd.f32 %v749, %v750
    %v752 = vrot.slane %v751, 2
    %v753 = vadd.f32 %v751, %v752
    %v754 = vrot.slane %v753, 1
    %v755 = vadd.f32 %v753, %v754
    %v756 = vadd.f32 %v746, %v748
    %v757 = vrot.slane %v756, 4
    %v758 = vadd.f32 %v756, %v757
    %v759 = vrot.slane %v758, 2
    %v760 = vadd.f32 %v758, %v759
    %v761 = vrot.slane %v760, 1
    %v762 = vadd.f32 %v760, %v761
    %v763 = vadd.f32 %v543, %v755
    %v764 = vadd.f32 %v544, %v762
    %v765 = vld [vmem:[#allocation3 + $0x18] sm:$0xff]
    %v767 = vunpack.c.l.b16 %v765
    %v768 = vunpack.c.h.b16 %v765
    %v769 = vpack.c.b16 %v767, %v767
    %v770 = vpack.c.b16 %v768, %v768
    %v772 = vsel %vm98, %v769, 0
    %v775 = vsel %vm98, %v770, 0
    %777 = vmatpush.bf16.msra.mxu0 0
    %778 = vmatpush.bf16.msra.mxu0 0
    %779 = vmatpush.bf16.msra.mxu0 0
    %780 = vmatpush.bf16.msra.mxu0 0
    %781 = vmatpush.bf16.msra.mxu0 0
    %782 = vmatpush.bf16.msra.mxu0 0
    %783 = vmatpush.bf16.msra.mxu0 %v772
    %784 = vmatpush.bf16.msra.mxu0 %v66
    %785 = vmatmul.bf16.gmra.mxu0 %v90
    %v786 = vpop.f32.mrf.mxu0
    %v787 = vadd.f32 0.0, %v786
    %v788 = vpop.f32.mrf.mxu0
    %v789 = vadd.f32 0.0, %v788
    %790 = vmatmul.bf16.gmra.mxu0 %v93
    %v791 = vpop.f32.mrf.mxu0
    %v792 = vadd.f32 0.0, %v791
    %v793 = vpop.f32.mrf.mxu0
    %v794 = vadd.f32 0.0, %v793
    %795 = vmatmul.bf16.gmra.mxu0 %v96
    %v796 = vpop.f32.mrf.mxu0
    %v797 = vadd.f32 0.0, %v796
    %v798 = vpop.f32.mrf.mxu0
    %799 = vdwg.mxu0
    %800 = vmatpush.bf16.msra.mxu0 0
    %801 = vmatpush.bf16.msra.mxu0 0
    %802 = vmatpush.bf16.msra.mxu0 0
    %803 = vmatpush.bf16.msra.mxu0 0
    %804 = vmatpush.bf16.msra.mxu0 0
    %805 = vmatpush.bf16.msra.mxu0 0
    %806 = vmatpush.bf16.msra.mxu0 %v775
    %807 = vmatpush.bf16.msra.mxu0 %v67
    %808 = vmatmul.bf16.gmra.mxu0 %v90
    %v809 = vpop.f32.mrf.mxu0
    %v810 = vadd.f32 0.0, %v809
    %v811 = vpop.f32.mrf.mxu0
    %v812 = vadd.f32 0.0, %v811
    %813 = vmatmul.bf16.gmra.mxu0 %v93
    %v814 = vpop.f32.mrf.mxu0
    %v815 = vadd.f32 0.0, %v814
    %v816 = vpop.f32.mrf.mxu0
    %v817 = vadd.f32 0.0, %v816
    %818 = vmatmul.bf16.gmra.mxu0 %v96
    %v819 = vpop.f32.mrf.mxu0
    %v820 = vadd.f32 0.0, %v819
    %v821 = vpop.f32.mrf.mxu0
    %822 = vdwg.mxu0
    %v823 = vmax.f32 %v787, 0.0
    %v824 = vmax.f32 %v810, 0.0
    %v825 = vmax.f32 %v789, 0.0
    %v826 = vmax.f32 %v812, 0.0
    %v827 = vmax.f32 %v792, 0.0
    %v828 = vmax.f32 %v815, 0.0
    %v829 = vmax.f32 %v794, 0.0
    %v830 = vmax.f32 %v817, 0.0
    %v831 = vmax.f32 %v797, 0.0
    %v832 = vmax.f32 %v820, 0.0
    %833 = vst [vmem:[#allocation2 + $0x30] sm:$0xff] %v831
    %834 = vst [vmem:[#allocation2 + $0x38] sm:$0xff] %v832
    %v835 = vld [vmem:[%s163 + $0x18] sm:$0xff]
    %v837 = vunpack.c.l.b16 %v835
    %v838 = vunpack.c.h.b16 %v835
    %v839 = vpack.c.b16 %v837, %v837
    %v840 = vpack.c.b16 %v838, %v838
    %v842 = vsel %vm98, %v839, 0
    %v845 = vsel %vm98, %v840, 0
    %847 = vmatpush.bf16.msra.mxu0 0
    %848 = vmatpush.bf16.msra.mxu0 0
    %849 = vmatpush.bf16.msra.mxu0 0
    %850 = vmatpush.bf16.msra.mxu0 0
    %851 = vmatpush.bf16.msra.mxu0 0
    %852 = vmatpush.bf16.msra.mxu0 0
    %853 = vmatpush.bf16.msra.mxu0 %v842
    %854 = vmatpush.bf16.msra.mxu0 %v171
    %855 = vmatmul.bf16.gmra.mxu0 %v90
    %v856 = vpop.f32.mrf.mxu0
    %v857 = vadd.f32 0.0, %v856
    %v858 = vpop.f32.mrf.mxu0
    %v859 = vadd.f32 0.0, %v858
    %860 = vmatmul.bf16.gmra.mxu0 %v93
    %v861 = vpop.f32.mrf.mxu0
    %v862 = vadd.f32 0.0, %v861
    %v863 = vpop.f32.mrf.mxu0
    %v864 = vadd.f32 0.0, %v863
    %865 = vmatmul.bf16.gmra.mxu0 %v96
    %v866 = vpop.f32.mrf.mxu0
    %v867 = vadd.f32 0.0, %v866
    %v868 = vpop.f32.mrf.mxu0
    %869 = vdwg.mxu0
    %870 = vmatpush.bf16.msra.mxu0 0
    %871 = vmatpush.bf16.msra.mxu0 0
    %872 = vmatpush.bf16.msra.mxu0 0
    %873 = vmatpush.bf16.msra.mxu0 0
    %874 = vmatpush.bf16.msra.mxu0 0
    %875 = vmatpush.bf16.msra.mxu0 0
    %876 = vmatpush.bf16.msra.mxu0 %v845
    %877 = vmatpush.bf16.msra.mxu0 %v172
    %878 = vmatmul.bf16.gmra.mxu0 %v90
    %v879 = vpop.f32.mrf.mxu0
    %v880 = vadd.f32 0.0, %v879
    %v881 = vpop.f32.mrf.mxu0
    %v882 = vadd.f32 0.0, %v881
    %883 = vmatmul.bf16.gmra.mxu0 %v93
    %v884 = vpop.f32.mrf.mxu0
    %v885 = vadd.f32 0.0, %v884
    %v886 = vpop.f32.mrf.mxu0
    %v887 = vadd.f32 0.0, %v886
    %888 = vmatmul.bf16.gmra.mxu0 %v96
    %v889 = vpop.f32.mrf.mxu0
    %v890 = vadd.f32 0.0, %v889
    %v891 = vpop.f32.mrf.mxu0
    %892 = vdwg.mxu0
    %v893 = vmax.f32 %v857, 0.0
    %v894 = vmax.f32 %v880, 0.0
    %v895 = vmax.f32 %v859, 0.0
    %v896 = vmax.f32 %v882, 0.0
    %v897 = vmax.f32 %v862, 0.0
    %v898 = vmax.f32 %v885, 0.0
    %v899 = vmax.f32 %v864, 0.0
    %v900 = vmax.f32 %v887, 0.0
    %v901 = vmax.f32 %v867, 0.0
    %v902 = vmax.f32 %v890, 0.0
    %903 = vst [vmem:[%s242 + $0x30] sm:$0xff] %v901
    %904 = vst [vmem:[%s242 + $0x38] sm:$0xff] %v902
    %v905 = vmul.f32 %v823, %v827
    %v906 = vmul.f32 %v824, %v828
    %v907 = vmul.f32 %v825, %v829
    %v908 = vmul.f32 %v826, %v830
    %v909 = vadd.f32 %v905, %v907
    %v910 = vrot.slane %v909, 4
    %v911 = vadd.f32 %v909, %v910
    %v912 = vrot.slane %v911, 2
    %v913 = vadd.f32 %v911, %v912
    %v914 = vrot.slane %v913, 1
    %v915 = vadd.f32 %v913, %v914
    %v916 = vadd.f32 %v906, %v908
    %v917 = vrot.slane %v916, 4
    %v918 = vadd.f32 %v916, %v917
    %v919 = vrot.slane %v918, 2
    %v920 = vadd.f32 %v918, %v919
    %v921 = vrot.slane %v920, 1
    %v922 = vadd.f32 %v920, %v921
    %v923 = vadd.f32 %v703, %v915
    %v924 = vadd.f32 %v704, %v922
    %v925 = vmul.f32 %v823, %v897
    %v926 = vmul.f32 %v824, %v898
    %v927 = vmul.f32 %v825, %v899
    %v928 = vmul.f32 %v826, %v900
    %v929 = vadd.f32 %v925, %v927
    %v930 = vrot.slane %v929, 4
    %v931 = vadd.f32 %v929, %v930
    %v932 = vrot.slane %v931, 2
    %v933 = vadd.f32 %v931, %v932
    %v934 = vrot.slane %v933, 1
    %v935 = vadd.f32 %v933, %v934
    %v936 = vadd.f32 %v926, %v928
    %v937 = vrot.slane %v936, 4
    %v938 = vadd.f32 %v936, %v937
    %v939 = vrot.slane %v938, 2
    %v940 = vadd.f32 %v938, %v939
    %v941 = vrot.slane %v940, 1
    %v942 = vadd.f32 %v940, %v941
    %v943 = vadd.f32 %v723, %v935
    %v944 = vadd.f32 %v724, %v942
    %v945 = vmul.f32 %v893, %v827
    %v946 = vmul.f32 %v894, %v828
    %v947 = vmul.f32 %v895, %v829
    %v948 = vmul.f32 %v896, %v830
    %v949 = vadd.f32 %v945, %v947
    %v950 = vrot.slane %v949, 4
    %v951 = vadd.f32 %v949, %v950
    %v952 = vrot.slane %v951, 2
    %v953 = vadd.f32 %v951, %v952
    %v954 = vrot.slane %v953, 1
    %v955 = vadd.f32 %v953, %v954
    %v956 = vadd.f32 %v946, %v948
    %v957 = vrot.slane %v956, 4
    %v958 = vadd.f32 %v956, %v957
    %v959 = vrot.slane %v958, 2
    %v960 = vadd.f32 %v958, %v959
    %v961 = vrot.slane %v960, 1
    %v962 = vadd.f32 %v960, %v961
    %v963 = vadd.f32 %v743, %v955
    %v964 = vadd.f32 %v744, %v962
    %v965 = vmul.f32 %v893, %v897
    %v966 = vmul.f32 %v894, %v898
    %v967 = vmul.f32 %v895, %v899
    %v968 = vmul.f32 %v896, %v900
    %v969 = vadd.f32 %v965, %v967
    %v970 = vrot.slane %v969, 4
    %v971 = vadd.f32 %v969, %v970
    %v972 = vrot.slane %v971, 2
    %v973 = vadd.f32 %v971, %v972
    %v974 = vrot.slane %v973, 1
    %v975 = vadd.f32 %v973, %v974
    %v976 = vadd.f32 %v966, %v968
    %v977 = vrot.slane %v976, 4
    %v978 = vadd.f32 %v976, %v977
    %v979 = vrot.slane %v978, 2
    %v980 = vadd.f32 %v978, %v979
    %v981 = vrot.slane %v980, 1
    %v982 = vadd.f32 %v980, %v981
    %v983 = vadd.f32 %v763, %v975
    %v984 = vadd.f32 %v764, %v982
    %v985 = vld [vmem:[#allocation3 + $0x20] sm:$0xff]
    %v987 = vunpack.c.l.b16 %v985
    %v988 = vunpack.c.h.b16 %v985
    %v989 = vpack.c.b16 %v987, %v987
    %v990 = vpack.c.b16 %v988, %v988
    %v992 = vsel %vm98, %v989, 0
    %v995 = vsel %vm98, %v990, 0
    %997 = vmatpush.bf16.msra.mxu0 0
    %998 = vmatpush.bf16.msra.mxu0 0
    %999 = vmatpush.bf16.msra.mxu0 0
    %1000 = vmatpush.bf16.msra.mxu0 0
    %1001 = vmatpush.bf16.msra.mxu0 0
    %1002 = vmatpush.bf16.msra.mxu0 0
    %1003 = vmatpush.bf16.msra.mxu0 %v992
    %1004 = vmatpush.bf16.msra.mxu0 %v66
    %1005 = vmatmul.bf16.gmra.mxu0 %v90
    %v1006 = vpop.f32.mrf.mxu0
    %v1007 = vadd.f32 0.0, %v1006
    %v1008 = vpop.f32.mrf.mxu0
    %v1009 = vadd.f32 0.0, %v1008
    %1010 = vmatmul.bf16.gmra.mxu0 %v93
    %v1011 = vpop.f32.mrf.mxu0
    %v1012 = vadd.f32 0.0, %v1011
    %v1013 = vpop.f32.mrf.mxu0
    %v1014 = vadd.f32 0.0, %v1013
    %1015 = vmatmul.bf16.gmra.mxu0 %v96
    %v1016 = vpop.f32.mrf.mxu0
    %v1017 = vadd.f32 0.0, %v1016
    %v1018 = vpop.f32.mrf.mxu0
    %1019 = vdwg.mxu0
    %1020 = vmatpush.bf16.msra.mxu0 0
    %1021 = vmatpush.bf16.msra.mxu0 0
    %1022 = vmatpush.bf16.msra.mxu0 0
    %1023 = vmatpush.bf16.msra.mxu0 0
    %1024 = vmatpush.bf16.msra.mxu0 0
    %1025 = vmatpush.bf16.msra.mxu0 0
    %1026 = vmatpush.bf16.msra.mxu0 %v995
    %1027 = vmatpush.bf16.msra.mxu0 %v67
    %1028 = vmatmul.bf16.gmra.mxu0 %v90
    %v1029 = vpop.f32.mrf.mxu0
    %v1030 = vadd.f32 0.0, %v1029
    %v1031 = vpop.f32.mrf.mxu0
    %v1032 = vadd.f32 0.0, %v1031
    %1033 = vmatmul.bf16.gmra.mxu0 %v93
    %v1034 = vpop.f32.mrf.mxu0
    %v1035 = vadd.f32 0.0, %v1034
    %v1036 = vpop.f32.mrf.mxu0
    %v1037 = vadd.f32 0.0, %v1036
    %1038 = vmatmul.bf16.gmra.mxu0 %v96
    %v1039 = vpop.f32.mrf.mxu0
    %v1040 = vadd.f32 0.0, %v1039
    %v1041 = vpop.f32.mrf.mxu0
    %1042 = vdwg.mxu0
    %v1043 = vmax.f32 %v1007, 0.0
    %v1044 = vmax.f32 %v1030, 0.0
    %v1045 = vmax.f32 %v1009, 0.0
    %v1046 = vmax.f32 %v1032, 0.0
    %v1047 = vmax.f32 %v1012, 0.0
    %v1048 = vmax.f32 %v1035, 0.0
    %v1049 = vmax.f32 %v1014, 0.0
    %v1050 = vmax.f32 %v1037, 0.0
    %v1051 = vmax.f32 %v1017, 0.0
    %v1052 = vmax.f32 %v1040, 0.0
    %1053 = vst [vmem:[#allocation2 + $0x40] sm:$0xff] %v1051
    %1054 = vst [vmem:[#allocation2 + $0x48] sm:$0xff] %v1052
    %v1055 = vld [vmem:[%s163 + $0x20] sm:$0xff]
    %v1057 = vunpack.c.l.b16 %v1055
    %v1058 = vunpack.c.h.b16 %v1055
    %v1059 = vpack.c.b16 %v1057, %v1057
    %v1060 = vpack.c.b16 %v1058, %v1058
    %v1062 = vsel %vm98, %v1059, 0
    %v1065 = vsel %vm98, %v1060, 0
    %1067 = vmatpush.bf16.msra.mxu0 0
    %1068 = vmatpush.bf16.msra.mxu0 0
    %1069 = vmatpush.bf16.msra.mxu0 0
    %1070 = vmatpush.bf16.msra.mxu0 0
    %1071 = vmatpush.bf16.msra.mxu0 0
    %1072 = vmatpush.bf16.msra.mxu0 0
    %1073 = vmatpush.bf16.msra.mxu0 %v1062
    %1074 = vmatpush.bf16.msra.mxu0 %v171
    %1075 = vmatmul.bf16.gmra.mxu0 %v90
    %v1076 = vpop.f32.mrf.mxu0
    %v1077 = vadd.f32 0.0, %v1076
    %v1078 = vpop.f32.mrf.mxu0
    %v1079 = vadd.f32 0.0, %v1078
    %1080 = vmatmul.bf16.gmra.mxu0 %v93
    %v1081 = vpop.f32.mrf.mxu0
    %v1082 = vadd.f32 0.0, %v1081
    %v1083 = vpop.f32.mrf.mxu0
    %v1084 = vadd.f32 0.0, %v1083
    %1085 = vmatmul.bf16.gmra.mxu0 %v96
    %v1086 = vpop.f32.mrf.mxu0
    %v1087 = vadd.f32 0.0, %v1086
    %v1088 = vpop.f32.mrf.mxu0
    %1089 = vdwg.mxu0
    %1090 = vmatpush.bf16.msra.mxu0 0
    %1091 = vmatpush.bf16.msra.mxu0 0
    %1092 = vmatpush.bf16.msra.mxu0 0
    %1093 = vmatpush.bf16.msra.mxu0 0
    %1094 = vmatpush.bf16.msra.mxu0 0
    %1095 = vmatpush.bf16.msra.mxu0 0
    %1096 = vmatpush.bf16.msra.mxu0 %v1065
    %1097 = vmatpush.bf16.msra.mxu0 %v172
    %1098 = vmatmul.bf16.gmra.mxu0 %v90
    %v1099 = vpop.f32.mrf.mxu0
    %v1100 = vadd.f32 0.0, %v1099
    %v1101 = vpop.f32.mrf.mxu0
    %v1102 = vadd.f32 0.0, %v1101
    %1103 = vmatmul.bf16.gmra.mxu0 %v93
    %v1104 = vpop.f32.mrf.mxu0
    %v1105 = vadd.f32 0.0, %v1104
    %v1106 = vpop.f32.mrf.mxu0
    %v1107 = vadd.f32 0.0, %v1106
    %1108 = vmatmul.bf16.gmra.mxu0 %v96
    %v1109 = vpop.f32.mrf.mxu0
    %v1110 = vadd.f32 0.0, %v1109
    %v1111 = vpop.f32.mrf.mxu0
    %1112 = vdwg.mxu0
    %v1113 = vmax.f32 %v1077, 0.0
    %v1114 = vmax.f32 %v1100, 0.0
    %v1115 = vmax.f32 %v1079, 0.0
    %v1116 = vmax.f32 %v1102, 0.0
    %v1117 = vmax.f32 %v1082, 0.0
    %v1118 = vmax.f32 %v1105, 0.0
    %v1119 = vmax.f32 %v1084, 0.0
    %v1120 = vmax.f32 %v1107, 0.0
    %v1121 = vmax.f32 %v1087, 0.0
    %v1122 = vmax.f32 %v1110, 0.0
    %1123 = vst [vmem:[%s242 + $0x40] sm:$0xff] %v1121
    %1124 = vst [vmem:[%s242 + $0x48] sm:$0xff] %v1122
    %v1125 = vmul.f32 %v1043, %v1047
    %v1126 = vmul.f32 %v1044, %v1048
    %v1127 = vmul.f32 %v1045, %v1049
    %v1128 = vmul.f32 %v1046, %v1050
    %v1129 = vadd.f32 %v1125, %v1127
    %v1130 = vrot.slane %v1129, 4
    %v1131 = vadd.f32 %v1129, %v1130
    %v1132 = vrot.slane %v1131, 2
    %v1133 = vadd.f32 %v1131, %v1132
    %v1134 = vrot.slane %v1133, 1
    %v1135 = vadd.f32 %v1133, %v1134
    %v1136 = vadd.f32 %v1126, %v1128
    %v1137 = vrot.slane %v1136, 4
    %v1138 = vadd.f32 %v1136, %v1137
    %v1139 = vrot.slane %v1138, 2
    %v1140 = vadd.f32 %v1138, %v1139
    %v1141 = vrot.slane %v1140, 1
    %v1142 = vadd.f32 %v1140, %v1141
    %v1143 = vadd.f32 %v923, %v1135
    %v1144 = vadd.f32 %v924, %v1142
    %v1145 = vmul.f32 %v1043, %v1117
    %v1146 = vmul.f32 %v1044, %v1118
    %v1147 = vmul.f32 %v1045, %v1119
    %v1148 = vmul.f32 %v1046, %v1120
    %v1149 = vadd.f32 %v1145, %v1147
    %v1150 = vrot.slane %v1149, 4
    %v1151 = vadd.f32 %v1149, %v1150
    %v1152 = vrot.slane %v1151, 2
    %v1153 = vadd.f32 %v1151, %v1152
    %v1154 = vrot.slane %v1153, 1
    %v1155 = vadd.f32 %v1153, %v1154
    %v1156 = vadd.f32 %v1146, %v1148
    %v1157 = vrot.slane %v1156, 4
    %v1158 = vadd.f32 %v1156, %v1157
    %v1159 = vrot.slane %v1158, 2
    %v1160 = vadd.f32 %v1158, %v1159
    %v1161 = vrot.slane %v1160, 1
    %v1162 = vadd.f32 %v1160, %v1161
    %v1163 = vadd.f32 %v943, %v1155
    %v1164 = vadd.f32 %v944, %v1162
    %v1165 = vmul.f32 %v1113, %v1047
    %v1166 = vmul.f32 %v1114, %v1048
    %v1167 = vmul.f32 %v1115, %v1049
    %v1168 = vmul.f32 %v1116, %v1050
    %v1169 = vadd.f32 %v1165, %v1167
    %v1170 = vrot.slane %v1169, 4
    %v1171 = vadd.f32 %v1169, %v1170
    %v1172 = vrot.slane %v1171, 2
    %v1173 = vadd.f32 %v1171, %v1172
    %v1174 = vrot.slane %v1173, 1
    %v1175 = vadd.f32 %v1173, %v1174
    %v1176 = vadd.f32 %v1166, %v1168
    %v1177 = vrot.slane %v1176, 4
    %v1178 = vadd.f32 %v1176, %v1177
    %v1179 = vrot.slane %v1178, 2
    %v1180 = vadd.f32 %v1178, %v1179
    %v1181 = vrot.slane %v1180, 1
    %v1182 = vadd.f32 %v1180, %v1181
    %v1183 = vadd.f32 %v963, %v1175
    %v1184 = vadd.f32 %v964, %v1182
    %v1185 = vmul.f32 %v1113, %v1117
    %v1186 = vmul.f32 %v1114, %v1118
    %v1187 = vmul.f32 %v1115, %v1119
    %v1188 = vmul.f32 %v1116, %v1120
    %v1189 = vadd.f32 %v1185, %v1187
    %v1190 = vrot.slane %v1189, 4
    %v1191 = vadd.f32 %v1189, %v1190
    %v1192 = vrot.slane %v1191, 2
    %v1193 = vadd.f32 %v1191, %v1192
    %v1194 = vrot.slane %v1193, 1
    %v1195 = vadd.f32 %v1193, %v1194
    %v1196 = vadd.f32 %v1186, %v1188
    %v1197 = vrot.slane %v1196, 4
    %v1198 = vadd.f32 %v1196, %v1197
    %v1199 = vrot.slane %v1198, 2
    %v1200 = vadd.f32 %v1198, %v1199
    %v1201 = vrot.slane %v1200, 1
    %v1202 = vadd.f32 %v1200, %v1201
    %v1203 = vadd.f32 %v983, %v1195
    %v1204 = vadd.f32 %v984, %v1202
    %v1205 = vld [vmem:[#allocation3 + $0x28] sm:$0xff]
    %v1207 = vunpack.c.l.b16 %v1205
    %v1208 = vunpack.c.h.b16 %v1205
    %v1209 = vpack.c.b16 %v1207, %v1207
    %v1210 = vpack.c.b16 %v1208, %v1208
    %v1212 = vsel %vm98, %v1209, 0
    %v1215 = vsel %vm98, %v1210, 0
    %1217 = vmatpush.bf16.msra.mxu0 0
    %1218 = vmatpush.bf16.msra.mxu0 0
    %1219 = vmatpush.bf16.msra.mxu0 0
    %1220 = vmatpush.bf16.msra.mxu0 0
    %1221 = vmatpush.bf16.msra.mxu0 0
    %1222 = vmatpush.bf16.msra.mxu0 0
    %1223 = vmatpush.bf16.msra.mxu0 %v1212
    %1224 = vmatpush.bf16.msra.mxu0 %v66
    %1225 = vmatmul.bf16.gmra.mxu0 %v90
    %v1226 = vpop.f32.mrf.mxu0
    %v1227 = vadd.f32 0.0, %v1226
    %v1228 = vpop.f32.mrf.mxu0
    %v1229 = vadd.f32 0.0, %v1228
    %1230 = vmatmul.bf16.gmra.mxu0 %v93
    %v1231 = vpop.f32.mrf.mxu0
    %v1232 = vadd.f32 0.0, %v1231
    %v1233 = vpop.f32.mrf.mxu0
    %v1234 = vadd.f32 0.0, %v1233
    %1235 = vmatmul.bf16.gmra.mxu0 %v96
    %v1236 = vpop.f32.mrf.mxu0
    %v1237 = vadd.f32 0.0, %v1236
    %v1238 = vpop.f32.mrf.mxu0
    %1239 = vdwg.mxu0
    %1240 = vmatpush.bf16.msra.mxu0 0
    %1241 = vmatpush.bf16.msra.mxu0 0
    %1242 = vmatpush.bf16.msra.mxu0 0
    %1243 = vmatpush.bf16.msra.mxu0 0
    %1244 = vmatpush.bf16.msra.mxu0 0
    %1245 = vmatpush.bf16.msra.mxu0 0
    %1246 = vmatpush.bf16.msra.mxu0 %v1215
    %1247 = vmatpush.bf16.msra.mxu0 %v67
    %1248 = vmatmul.bf16.gmra.mxu0 %v90
    %v1249 = vpop.f32.mrf.mxu0
    %v1250 = vadd.f32 0.0, %v1249
    %v1251 = vpop.f32.mrf.mxu0
    %v1252 = vadd.f32 0.0, %v1251
    %1253 = vmatmul.bf16.gmra.mxu0 %v93
    %v1254 = vpop.f32.mrf.mxu0
    %v1255 = vadd.f32 0.0, %v1254
    %v1256 = vpop.f32.mrf.mxu0
    %v1257 = vadd.f32 0.0, %v1256
    %1258 = vmatmul.bf16.gmra.mxu0 %v96
    %v1259 = vpop.f32.mrf.mxu0
    %v1260 = vadd.f32 0.0, %v1259
    %v1261 = vpop.f32.mrf.mxu0
    %1262 = vdwg.mxu0
    %v1263 = vmax.f32 %v1227, 0.0
    %v1264 = vmax.f32 %v1250, 0.0
    %v1265 = vmax.f32 %v1229, 0.0
    %v1266 = vmax.f32 %v1252, 0.0
    %v1267 = vmax.f32 %v1232, 0.0
    %v1268 = vmax.f32 %v1255, 0.0
    %v1269 = vmax.f32 %v1234, 0.0
    %v1270 = vmax.f32 %v1257, 0.0
    %v1271 = vmax.f32 %v1237, 0.0
    %v1272 = vmax.f32 %v1260, 0.0
    %1273 = vst [vmem:[#allocation2 + $0x50] sm:$0xff] %v1271
    %1274 = vst [vmem:[#allocation2 + $0x58] sm:$0xff] %v1272
    %v1275 = vld [vmem:[%s163 + $0x28] sm:$0xff]
    %v1277 = vunpack.c.l.b16 %v1275
    %v1278 = vunpack.c.h.b16 %v1275
    %v1279 = vpack.c.b16 %v1277, %v1277
    %v1280 = vpack.c.b16 %v1278, %v1278
    %v1282 = vsel %vm98, %v1279, 0
    %v1285 = vsel %vm98, %v1280, 0
    %1287 = vmatpush.bf16.msra.mxu0 0
    %1288 = vmatpush.bf16.msra.mxu0 0
    %1289 = vmatpush.bf16.msra.mxu0 0
    %1290 = vmatpush.bf16.msra.mxu0 0
    %1291 = vmatpush.bf16.msra.mxu0 0
    %1292 = vmatpush.bf16.msra.mxu0 0
    %1293 = vmatpush.bf16.msra.mxu0 %v1282
    %1294 = vmatpush.bf16.msra.mxu0 %v171
    %1295 = vmatmul.bf16.gmra.mxu0 %v90
    %v1296 = vpop.f32.mrf.mxu0
    %v1297 = vadd.f32 0.0, %v1296
    %v1298 = vpop.f32.mrf.mxu0
    %v1299 = vadd.f32 0.0, %v1298
    %1300 = vmatmul.bf16.gmra.mxu0 %v93
    %v1301 = vpop.f32.mrf.mxu0
    %v1302 = vadd.f32 0.0, %v1301
    %v1303 = vpop.f32.mrf.mxu0
    %v1304 = vadd.f32 0.0, %v1303
    %1305 = vmatmul.bf16.gmra.mxu0 %v96
    %v1306 = vpop.f32.mrf.mxu0
    %v1307 = vadd.f32 0.0, %v1306
    %v1308 = vpop.f32.mrf.mxu0
    %1309 = vdwg.mxu0
    %1310 = vmatpush.bf16.msra.mxu0 0
    %1311 = vmatpush.bf16.msra.mxu0 0
    %1312 = vmatpush.bf16.msra.mxu0 0
    %1313 = vmatpush.bf16.msra.mxu0 0
    %1314 = vmatpush.bf16.msra.mxu0 0
    %1315 = vmatpush.bf16.msra.mxu0 0
    %1316 = vmatpush.bf16.msra.mxu0 %v1285
    %1317 = vmatpush.bf16.msra.mxu0 %v172
    %1318 = vmatmul.bf16.gmra.mxu0 %v90
    %v1319 = vpop.f32.mrf.mxu0
    %v1320 = vadd.f32 0.0, %v1319
    %v1321 = vpop.f32.mrf.mxu0
    %v1322 = vadd.f32 0.0, %v1321
    %1323 = vmatmul.bf16.gmra.mxu0 %v93
    %v1324 = vpop.f32.mrf.mxu0
    %v1325 = vadd.f32 0.0, %v1324
    %v1326 = vpop.f32.mrf.mxu0
    %v1327 = vadd.f32 0.0, %v1326
    %1328 = vmatmul.bf16.gmra.mxu0 %v96
    %v1329 = vpop.f32.mrf.mxu0
    %v1330 = vadd.f32 0.0, %v1329
    %v1331 = vpop.f32.mrf.mxu0
    %1332 = vdwg.mxu0
    %v1333 = vmax.f32 %v1297, 0.0
    %v1334 = vmax.f32 %v1320, 0.0
    %v1335 = vmax.f32 %v1299, 0.0
    %v1336 = vmax.f32 %v1322, 0.0
    %v1337 = vmax.f32 %v1302, 0.0
    %v1338 = vmax.f32 %v1325, 0.0
    %v1339 = vmax.f32 %v1304, 0.0
    %v1340 = vmax.f32 %v1327, 0.0
    %v1341 = vmax.f32 %v1307, 0.0
    %v1342 = vmax.f32 %v1330, 0.0
    %1343 = vst [vmem:[%s242 + $0x50] sm:$0xff] %v1341
    %1344 = vst [vmem:[%s242 + $0x58] sm:$0xff] %v1342
    %v1345 = vmul.f32 %v1263, %v1267
    %v1346 = vmul.f32 %v1264, %v1268
    %v1347 = vmul.f32 %v1265, %v1269
    %v1348 = vmul.f32 %v1266, %v1270
    %v1349 = vadd.f32 %v1345, %v1347
    %v1350 = vrot.slane %v1349, 4
    %v1351 = vadd.f32 %v1349, %v1350
    %v1352 = vrot.slane %v1351, 2
    %v1353 = vadd.f32 %v1351, %v1352
    %v1354 = vrot.slane %v1353, 1
    %v1355 = vadd.f32 %v1353, %v1354
    %v1356 = vadd.f32 %v1346, %v1348
    %v1357 = vrot.slane %v1356, 4
    %v1358 = vadd.f32 %v1356, %v1357
    %v1359 = vrot.slane %v1358, 2
    %v1360 = vadd.f32 %v1358, %v1359
    %v1361 = vrot.slane %v1360, 1
    %v1362 = vadd.f32 %v1360, %v1361
    %v1363 = vadd.f32 %v1143, %v1355
    %v1364 = vadd.f32 %v1144, %v1362
    %v1365 = vmul.f32 %v1263, %v1337
    %v1366 = vmul.f32 %v1264, %v1338
    %v1367 = vmul.f32 %v1265, %v1339
    %v1368 = vmul.f32 %v1266, %v1340
    %v1369 = vadd.f32 %v1365, %v1367
    %v1370 = vrot.slane %v1369, 4
    %v1371 = vadd.f32 %v1369, %v1370
    %v1372 = vrot.slane %v1371, 2
    %v1373 = vadd.f32 %v1371, %v1372
    %v1374 = vrot.slane %v1373, 1
    %v1375 = vadd.f32 %v1373, %v1374
    %v1376 = vadd.f32 %v1366, %v1368
    %v1377 = vrot.slane %v1376, 4
    %v1378 = vadd.f32 %v1376, %v1377
    %v1379 = vrot.slane %v1378, 2
    %v1380 = vadd.f32 %v1378, %v1379
    %v1381 = vrot.slane %v1380, 1
    %v1382 = vadd.f32 %v1380, %v1381
    %v1383 = vadd.f32 %v1163, %v1375
    %v1384 = vadd.f32 %v1164, %v1382
    %v1385 = vmul.f32 %v1333, %v1267
    %v1386 = vmul.f32 %v1334, %v1268
    %v1387 = vmul.f32 %v1335, %v1269
    %v1388 = vmul.f32 %v1336, %v1270
    %v1389 = vadd.f32 %v1385, %v1387
    %v1390 = vrot.slane %v1389, 4
    %v1391 = vadd.f32 %v1389, %v1390
    %v1392 = vrot.slane %v1391, 2
    %v1393 = vadd.f32 %v1391, %v1392
    %v1394 = vrot.slane %v1393, 1
    %v1395 = vadd.f32 %v1393, %v1394
    %v1396 = vadd.f32 %v1386, %v1388
    %v1397 = vrot.slane %v1396, 4
    %v1398 = vadd.f32 %v1396, %v1397
    %v1399 = vrot.slane %v1398, 2
    %v1400 = vadd.f32 %v1398, %v1399
    %v1401 = vrot.slane %v1400, 1
    %v1402 = vadd.f32 %v1400, %v1401
    %v1403 = vadd.f32 %v1183, %v1395
    %v1404 = vadd.f32 %v1184, %v1402
    %v1405 = vmul.f32 %v1333, %v1337
    %v1406 = vmul.f32 %v1334, %v1338
    %v1407 = vmul.f32 %v1335, %v1339
    %v1408 = vmul.f32 %v1336, %v1340
    %v1409 = vadd.f32 %v1405, %v1407
    %v1410 = vrot.slane %v1409, 4
    %v1411 = vadd.f32 %v1409, %v1410
    %v1412 = vrot.slane %v1411, 2
    %v1413 = vadd.f32 %v1411, %v1412
    %v1414 = vrot.slane %v1413, 1
    %v1415 = vadd.f32 %v1413, %v1414
    %v1416 = vadd.f32 %v1406, %v1408
    %v1417 = vrot.slane %v1416, 4
    %v1418 = vadd.f32 %v1416, %v1417
    %v1419 = vrot.slane %v1418, 2
    %v1420 = vadd.f32 %v1418, %v1419
    %v1421 = vrot.slane %v1420, 1
    %v1422 = vadd.f32 %v1420, %v1421
    %v1423 = vadd.f32 %v1203, %v1415
    %v1424 = vadd.f32 %v1204, %v1422
    %v1425 = vld [vmem:[#allocation3 + $0x30] sm:$0xff]
    %v1427 = vunpack.c.l.b16 %v1425
    %v1428 = vunpack.c.h.b16 %v1425
    %v1429 = vpack.c.b16 %v1427, %v1427
    %v1430 = vpack.c.b16 %v1428, %v1428
    %v1432 = vsel %vm98, %v1429, 0
    %v1435 = vsel %vm98, %v1430, 0
    %1437 = vmatpush.bf16.msra.mxu0 0
    %1438 = vmatpush.bf16.msra.mxu0 0
    %1439 = vmatpush.bf16.msra.mxu0 0
    %1440 = vmatpush.bf16.msra.mxu0 0
    %1441 = vmatpush.bf16.msra.mxu0 0
    %1442 = vmatpush.bf16.msra.mxu0 0
    %1443 = vmatpush.bf16.msra.mxu0 %v1432
    %1444 = vmatpush.bf16.msra.mxu0 %v66
    %1445 = vmatmul.bf16.gmra.mxu0 %v90
    %v1446 = vpop.f32.mrf.mxu0
    %v1447 = vadd.f32 0.0, %v1446
    %v1448 = vpop.f32.mrf.mxu0
    %v1449 = vadd.f32 0.0, %v1448
    %1450 = vmatmul.bf16.gmra.mxu0 %v93
    %v1451 = vpop.f32.mrf.mxu0
    %v1452 = vadd.f32 0.0, %v1451
    %v1453 = vpop.f32.mrf.mxu0
    %v1454 = vadd.f32 0.0, %v1453
    %1455 = vmatmul.bf16.gmra.mxu0 %v96
    %v1456 = vpop.f32.mrf.mxu0
    %v1457 = vadd.f32 0.0, %v1456
    %v1458 = vpop.f32.mrf.mxu0
    %1459 = vdwg.mxu0
    %1460 = vmatpush.bf16.msra.mxu0 0
    %1461 = vmatpush.bf16.msra.mxu0 0
    %1462 = vmatpush.bf16.msra.mxu0 0
    %1463 = vmatpush.bf16.msra.mxu0 0
    %1464 = vmatpush.bf16.msra.mxu0 0
    %1465 = vmatpush.bf16.msra.mxu0 0
    %1466 = vmatpush.bf16.msra.mxu0 %v1435
    %1467 = vmatpush.bf16.msra.mxu0 %v67
    %1468 = vmatmul.bf16.gmra.mxu0 %v90
    %v1469 = vpop.f32.mrf.mxu0
    %v1470 = vadd.f32 0.0, %v1469
    %v1471 = vpop.f32.mrf.mxu0
    %v1472 = vadd.f32 0.0, %v1471
    %1473 = vmatmul.bf16.gmra.mxu0 %v93
    %v1474 = vpop.f32.mrf.mxu0
    %v1475 = vadd.f32 0.0, %v1474
    %v1476 = vpop.f32.mrf.mxu0
    %v1477 = vadd.f32 0.0, %v1476
    %1478 = vmatmul.bf16.gmra.mxu0 %v96
    %v1479 = vpop.f32.mrf.mxu0
    %v1480 = vadd.f32 0.0, %v1479
    %v1481 = vpop.f32.mrf.mxu0
    %1482 = vdwg.mxu0
    %v1483 = vmax.f32 %v1447, 0.0
    %v1484 = vmax.f32 %v1470, 0.0
    %v1485 = vmax.f32 %v1449, 0.0
    %v1486 = vmax.f32 %v1472, 0.0
    %v1487 = vmax.f32 %v1452, 0.0
    %v1488 = vmax.f32 %v1475, 0.0
    %v1489 = vmax.f32 %v1454, 0.0
    %v1490 = vmax.f32 %v1477, 0.0
    %v1491 = vmax.f32 %v1457, 0.0
    %v1492 = vmax.f32 %v1480, 0.0
    %1493 = vst [vmem:[#allocation2 + $0x60] sm:$0xff] %v1491
    %1494 = vst [vmem:[#allocation2 + $0x68] sm:$0xff] %v1492
    %v1495 = vld [vmem:[%s163 + $0x30] sm:$0xff]
    %v1497 = vunpack.c.l.b16 %v1495
    %v1498 = vunpack.c.h.b16 %v1495
    %v1499 = vpack.c.b16 %v1497, %v1497
    %v1500 = vpack.c.b16 %v1498, %v1498
    %v1502 = vsel %vm98, %v1499, 0
    %v1505 = vsel %vm98, %v1500, 0
    %1507 = vmatpush.bf16.msra.mxu0 0
    %1508 = vmatpush.bf16.msra.mxu0 0
    %1509 = vmatpush.bf16.msra.mxu0 0
    %1510 = vmatpush.bf16.msra.mxu0 0
    %1511 = vmatpush.bf16.msra.mxu0 0
    %1512 = vmatpush.bf16.msra.mxu0 0
    %1513 = vmatpush.bf16.msra.mxu0 %v1502
    %1514 = vmatpush.bf16.msra.mxu0 %v171
    %1515 = vmatmul.bf16.gmra.mxu0 %v90
    %v1516 = vpop.f32.mrf.mxu0
    %v1517 = vadd.f32 0.0, %v1516
    %v1518 = vpop.f32.mrf.mxu0
    %v1519 = vadd.f32 0.0, %v1518
    %1520 = vmatmul.bf16.gmra.mxu0 %v93
    %v1521 = vpop.f32.mrf.mxu0
    %v1522 = vadd.f32 0.0, %v1521
    %v1523 = vpop.f32.mrf.mxu0
    %v1524 = vadd.f32 0.0, %v1523
    %1525 = vmatmul.bf16.gmra.mxu0 %v96
    %v1526 = vpop.f32.mrf.mxu0
    %v1527 = vadd.f32 0.0, %v1526
    %v1528 = vpop.f32.mrf.mxu0
    %1529 = vdwg.mxu0
    %1530 = vmatpush.bf16.msra.mxu0 0
    %1531 = vmatpush.bf16.msra.mxu0 0
    %1532 = vmatpush.bf16.msra.mxu0 0
    %1533 = vmatpush.bf16.msra.mxu0 0
    %1534 = vmatpush.bf16.msra.mxu0 0
    %1535 = vmatpush.bf16.msra.mxu0 0
    %1536 = vmatpush.bf16.msra.mxu0 %v1505
    %1537 = vmatpush.bf16.msra.mxu0 %v172
    %1538 = vmatmul.bf16.gmra.mxu0 %v90
    %v1539 = vpop.f32.mrf.mxu0
    %v1540 = vadd.f32 0.0, %v1539
    %v1541 = vpop.f32.mrf.mxu0
    %v1542 = vadd.f32 0.0, %v1541
    %1543 = vmatmul.bf16.gmra.mxu0 %v93
    %v1544 = vpop.f32.mrf.mxu0
    %v1545 = vadd.f32 0.0, %v1544
    %v1546 = vpop.f32.mrf.mxu0
    %v1547 = vadd.f32 0.0, %v1546
    %1548 = vmatmul.bf16.gmra.mxu0 %v96
    %v1549 = vpop.f32.mrf.mxu0
    %v1550 = vadd.f32 0.0, %v1549
    %v1551 = vpop.f32.mrf.mxu0
    %1552 = vdwg.mxu0
    %v1553 = vmax.f32 %v1517, 0.0
    %v1554 = vmax.f32 %v1540, 0.0
    %v1555 = vmax.f32 %v1519, 0.0
    %v1556 = vmax.f32 %v1542, 0.0
    %v1557 = vmax.f32 %v1522, 0.0
    %v1558 = vmax.f32 %v1545, 0.0
    %v1559 = vmax.f32 %v1524, 0.0
    %v1560 = vmax.f32 %v1547, 0.0
    %v1561 = vmax.f32 %v1527, 0.0
    %v1562 = vmax.f32 %v1550, 0.0
    %1563 = vst [vmem:[%s242 + $0x60] sm:$0xff] %v1561
    %1564 = vst [vmem:[%s242 + $0x68] sm:$0xff] %v1562
    %v1565 = vmul.f32 %v1483, %v1487
    %v1566 = vmul.f32 %v1484, %v1488
    %v1567 = vmul.f32 %v1485, %v1489
    %v1568 = vmul.f32 %v1486, %v1490
    %v1569 = vadd.f32 %v1565, %v1567
    %v1570 = vrot.slane %v1569, 4
    %v1571 = vadd.f32 %v1569, %v1570
    %v1572 = vrot.slane %v1571, 2
    %v1573 = vadd.f32 %v1571, %v1572
    %v1574 = vrot.slane %v1573, 1
    %v1575 = vadd.f32 %v1573, %v1574
    %v1576 = vadd.f32 %v1566, %v1568
    %v1577 = vrot.slane %v1576, 4
    %v1578 = vadd.f32 %v1576, %v1577
    %v1579 = vrot.slane %v1578, 2
    %v1580 = vadd.f32 %v1578, %v1579
    %v1581 = vrot.slane %v1580, 1
    %v1582 = vadd.f32 %v1580, %v1581
    %v1583 = vadd.f32 %v1363, %v1575
    %v1584 = vadd.f32 %v1364, %v1582
    %v1585 = vmul.f32 %v1483, %v1557
    %v1586 = vmul.f32 %v1484, %v1558
    %v1587 = vmul.f32 %v1485, %v1559
    %v1588 = vmul.f32 %v1486, %v1560
    %v1589 = vadd.f32 %v1585, %v1587
    %v1590 = vrot.slane %v1589, 4
    %v1591 = vadd.f32 %v1589, %v1590
    %v1592 = vrot.slane %v1591, 2
    %v1593 = vadd.f32 %v1591, %v1592
    %v1594 = vrot.slane %v1593, 1
    %v1595 = vadd.f32 %v1593, %v1594
    %v1596 = vadd.f32 %v1586, %v1588
    %v1597 = vrot.slane %v1596, 4
    %v1598 = vadd.f32 %v1596, %v1597
    %v1599 = vrot.slane %v1598, 2
    %v1600 = vadd.f32 %v1598, %v1599
    %v1601 = vrot.slane %v1600, 1
    %v1602 = vadd.f32 %v1600, %v1601
    %v1603 = vadd.f32 %v1383, %v1595
    %v1604 = vadd.f32 %v1384, %v1602
    %v1605 = vmul.f32 %v1553, %v1487
    %v1606 = vmul.f32 %v1554, %v1488
    %v1607 = vmul.f32 %v1555, %v1489
    %v1608 = vmul.f32 %v1556, %v1490
    %v1609 = vadd.f32 %v1605, %v1607
    %v1610 = vrot.slane %v1609, 4
    %v1611 = vadd.f32 %v1609, %v1610
    %v1612 = vrot.slane %v1611, 2
    %v1613 = vadd.f32 %v1611, %v1612
    %v1614 = vrot.slane %v1613, 1
    %v1615 = vadd.f32 %v1613, %v1614
    %v1616 = vadd.f32 %v1606, %v1608
    %v1617 = vrot.slane %v1616, 4
    %v1618 = vadd.f32 %v1616, %v1617
    %v1619 = vrot.slane %v1618, 2
    %v1620 = vadd.f32 %v1618, %v1619
    %v1621 = vrot.slane %v1620, 1
    %v1622 = vadd.f32 %v1620, %v1621
    %v1623 = vadd.f32 %v1403, %v1615
    %v1624 = vadd.f32 %v1404, %v1622
    %v1625 = vmul.f32 %v1553, %v1557
    %v1626 = vmul.f32 %v1554, %v1558
    %v1627 = vmul.f32 %v1555, %v1559
    %v1628 = vmul.f32 %v1556, %v1560
    %v1629 = vadd.f32 %v1625, %v1627
    %v1630 = vrot.slane %v1629, 4
    %v1631 = vadd.f32 %v1629, %v1630
    %v1632 = vrot.slane %v1631, 2
    %v1633 = vadd.f32 %v1631, %v1632
    %v1634 = vrot.slane %v1633, 1
    %v1635 = vadd.f32 %v1633, %v1634
    %v1636 = vadd.f32 %v1626, %v1628
    %v1637 = vrot.slane %v1636, 4
    %v1638 = vadd.f32 %v1636, %v1637
    %v1639 = vrot.slane %v1638, 2
    %v1640 = vadd.f32 %v1638, %v1639
    %v1641 = vrot.slane %v1640, 1
    %v1642 = vadd.f32 %v1640, %v1641
    %v1643 = vadd.f32 %v1423, %v1635
    %v1644 = vadd.f32 %v1424, %v1642
    %v1645 = vld [vmem:[#allocation3 + $0x38] sm:$0xff]
    %v1647 = vunpack.c.l.b16 %v1645
    %v1648 = vunpack.c.h.b16 %v1645
    %v1649 = vpack.c.b16 %v1647, %v1647
    %v1650 = vpack.c.b16 %v1648, %v1648
    %v1652 = vsel %vm98, %v1649, 0
    %v1655 = vsel %vm98, %v1650, 0
    %1657 = vmatpush.bf16.msra.mxu0 0
    %1658 = vmatpush.bf16.msra.mxu0 0
    %1659 = vmatpush.bf16.msra.mxu0 0
    %1660 = vmatpush.bf16.msra.mxu0 0
    %1661 = vmatpush.bf16.msra.mxu0 0
    %1662 = vmatpush.bf16.msra.mxu0 0
    %1663 = vmatpush.bf16.msra.mxu0 %v1652
    %1664 = vmatpush.bf16.msra.mxu0 %v66
    %1665 = vmatmul.bf16.gmra.mxu0 %v90
    %v1666 = vpop.f32.mrf.mxu0
    %v1667 = vadd.f32 0.0, %v1666
    %v1668 = vpop.f32.mrf.mxu0
    %v1669 = vadd.f32 0.0, %v1668
    %1670 = vmatmul.bf16.gmra.mxu0 %v93
    %v1671 = vpop.f32.mrf.mxu0
    %v1672 = vadd.f32 0.0, %v1671
    %v1673 = vpop.f32.mrf.mxu0
    %v1674 = vadd.f32 0.0, %v1673
    %1675 = vmatmul.bf16.gmra.mxu0 %v96
    %v1676 = vpop.f32.mrf.mxu0
    %v1677 = vadd.f32 0.0, %v1676
    %v1678 = vpop.f32.mrf.mxu0
    %1679 = vdwg.mxu0
    %1680 = vmatpush.bf16.msra.mxu0 0
    %1681 = vmatpush.bf16.msra.mxu0 0
    %1682 = vmatpush.bf16.msra.mxu0 0
    %1683 = vmatpush.bf16.msra.mxu0 0
    %1684 = vmatpush.bf16.msra.mxu0 0
    %1685 = vmatpush.bf16.msra.mxu0 0
    %1686 = vmatpush.bf16.msra.mxu0 %v1655
    %1687 = vmatpush.bf16.msra.mxu0 %v67
    %1688 = vmatmul.bf16.gmra.mxu0 %v90
    %v1689 = vpop.f32.mrf.mxu0
    %v1690 = vadd.f32 0.0, %v1689
    %v1691 = vpop.f32.mrf.mxu0
    %v1692 = vadd.f32 0.0, %v1691
    %1693 = vmatmul.bf16.gmra.mxu0 %v93
    %v1694 = vpop.f32.mrf.mxu0
    %v1695 = vadd.f32 0.0, %v1694
    %v1696 = vpop.f32.mrf.mxu0
    %v1697 = vadd.f32 0.0, %v1696
    %1698 = vmatmul.bf16.gmra.mxu0 %v96
    %v1699 = vpop.f32.mrf.mxu0
    %v1700 = vadd.f32 0.0, %v1699
    %v1701 = vpop.f32.mrf.mxu0
    %1702 = vdwg.mxu0
    %v1703 = vmax.f32 %v1667, 0.0
    %v1704 = vmax.f32 %v1690, 0.0
    %v1705 = vmax.f32 %v1669, 0.0
    %v1706 = vmax.f32 %v1692, 0.0
    %v1707 = vmax.f32 %v1672, 0.0
    %v1708 = vmax.f32 %v1695, 0.0
    %v1709 = vmax.f32 %v1674, 0.0
    %v1710 = vmax.f32 %v1697, 0.0
    %v1711 = vmax.f32 %v1677, 0.0
    %v1712 = vmax.f32 %v1700, 0.0
    %1713 = vst [vmem:[#allocation2 + $0x70] sm:$0xff] %v1711
    %1714 = vst [vmem:[#allocation2 + $0x78] sm:$0xff] %v1712
    %v1715 = vld [vmem:[%s163 + $0x38] sm:$0xff]
    %v1717 = vunpack.c.l.b16 %v1715
    %v1718 = vunpack.c.h.b16 %v1715
    %v1719 = vpack.c.b16 %v1717, %v1717
    %v1720 = vpack.c.b16 %v1718, %v1718
    %v1722 = vsel %vm98, %v1719, 0
    %v1725 = vsel %vm98, %v1720, 0
    %1727 = vmatpush.bf16.msra.mxu0 0
    %1728 = vmatpush.bf16.msra.mxu0 0
    %1729 = vmatpush.bf16.msra.mxu0 0
    %1730 = vmatpush.bf16.msra.mxu0 0
    %1731 = vmatpush.bf16.msra.mxu0 0
    %1732 = vmatpush.bf16.msra.mxu0 0
    %1733 = vmatpush.bf16.msra.mxu0 %v1722
    %1734 = vmatpush.bf16.msra.mxu0 %v171
    %1735 = vmatmul.bf16.gmra.mxu0 %v90
    %v1736 = vpop.f32.mrf.mxu0
    %v1737 = vadd.f32 0.0, %v1736
    %v1738 = vpop.f32.mrf.mxu0
    %v1739 = vadd.f32 0.0, %v1738
    %1740 = vmatmul.bf16.gmra.mxu0 %v93
    %v1741 = vpop.f32.mrf.mxu0
    %v1742 = vadd.f32 0.0, %v1741
    %v1743 = vpop.f32.mrf.mxu0
    %v1744 = vadd.f32 0.0, %v1743
    %1745 = vmatmul.bf16.gmra.mxu0 %v96
    %v1746 = vpop.f32.mrf.mxu0
    %v1747 = vadd.f32 0.0, %v1746
    %v1748 = vpop.f32.mrf.mxu0
    %1749 = vdwg.mxu0
    %1750 = vmatpush.bf16.msra.mxu0 0
    %1751 = vmatpush.bf16.msra.mxu0 0
    %1752 = vmatpush.bf16.msra.mxu0 0
    %1753 = vmatpush.bf16.msra.mxu0 0
    %1754 = vmatpush.bf16.msra.mxu0 0
    %1755 = vmatpush.bf16.msra.mxu0 0
    %1756 = vmatpush.bf16.msra.mxu0 %v1725
    %1757 = vmatpush.bf16.msra.mxu0 %v172
    %1758 = vmatmul.bf16.gmra.mxu0 %v90
    %v1759 = vpop.f32.mrf.mxu0
    %v1760 = vadd.f32 0.0, %v1759
    %v1761 = vpop.f32.mrf.mxu0
    %v1762 = vadd.f32 0.0, %v1761
    %1763 = vmatmul.bf16.gmra.mxu0 %v93
    %v1764 = vpop.f32.mrf.mxu0
    %v1765 = vadd.f32 0.0, %v1764
    %v1766 = vpop.f32.mrf.mxu0
    %v1767 = vadd.f32 0.0, %v1766
    %1768 = vmatmul.bf16.gmra.mxu0 %v96
    %v1769 = vpop.f32.mrf.mxu0
    %v1770 = vadd.f32 0.0, %v1769
    %v1771 = vpop.f32.mrf.mxu0
    %1772 = vdwg.mxu0
    %v1773 = vmax.f32 %v1737, 0.0
    %v1774 = vmax.f32 %v1760, 0.0
    %v1775 = vmax.f32 %v1739, 0.0
    %v1776 = vmax.f32 %v1762, 0.0
    %v1777 = vmax.f32 %v1742, 0.0
    %v1778 = vmax.f32 %v1765, 0.0
    %v1779 = vmax.f32 %v1744, 0.0
    %v1780 = vmax.f32 %v1767, 0.0
    %v1781 = vmax.f32 %v1747, 0.0
    %v1782 = vmax.f32 %v1770, 0.0
    %1783 = vst [vmem:[%s242 + $0x70] sm:$0xff] %v1781
    %1784 = vst [vmem:[%s242 + $0x78] sm:$0xff] %v1782
    %v1785 = vmul.f32 %v1703, %v1707
    %v1786 = vmul.f32 %v1704, %v1708
    %v1787 = vmul.f32 %v1705, %v1709
    %v1788 = vmul.f32 %v1706, %v1710
    %v1789 = vadd.f32 %v1785, %v1787
    %v1790 = vrot.slane %v1789, 4
    %v1791 = vadd.f32 %v1789, %v1790
    %v1792 = vrot.slane %v1791, 2
    %v1793 = vadd.f32 %v1791, %v1792
    %v1794 = vrot.slane %v1793, 1
    %v1795 = vadd.f32 %v1793, %v1794
    %v1796 = vadd.f32 %v1786, %v1788
    %v1797 = vrot.slane %v1796, 4
    %v1798 = vadd.f32 %v1796, %v1797
    %v1799 = vrot.slane %v1798, 2
    %v1800 = vadd.f32 %v1798, %v1799
    %v1801 = vrot.slane %v1800, 1
    %v1802 = vadd.f32 %v1800, %v1801
    %v1803 = vadd.f32 %v1583, %v1795
    %v1804 = vadd.f32 %v1584, %v1802
    %v1805 = vmul.f32 %v1703, %v1777
    %v1806 = vmul.f32 %v1704, %v1778
    %v1807 = vmul.f32 %v1705, %v1779
    %v1808 = vmul.f32 %v1706, %v1780
    %v1809 = vadd.f32 %v1805, %v1807
    %v1810 = vrot.slane %v1809, 4
    %v1811 = vadd.f32 %v1809, %v1810
    %v1812 = vrot.slane %v1811, 2
    %v1813 = vadd.f32 %v1811, %v1812
    %v1814 = vrot.slane %v1813, 1
    %v1815 = vadd.f32 %v1813, %v1814
    %v1816 = vadd.f32 %v1806, %v1808
    %v1817 = vrot.slane %v1816, 4
    %v1818 = vadd.f32 %v1816, %v1817
    %v1819 = vrot.slane %v1818, 2
    %v1820 = vadd.f32 %v1818, %v1819
    %v1821 = vrot.slane %v1820, 1
    %v1822 = vadd.f32 %v1820, %v1821
    %v1823 = vadd.f32 %v1603, %v1815
    %v1824 = vadd.f32 %v1604, %v1822
    %v1825 = vmul.f32 %v1773, %v1707
    %v1826 = vmul.f32 %v1774, %v1708
    %v1827 = vmul.f32 %v1775, %v1709
    %v1828 = vmul.f32 %v1776, %v1710
    %v1829 = vadd.f32 %v1825, %v1827
    %v1830 = vrot.slane %v1829, 4
    %v1831 = vadd.f32 %v1829, %v1830
    %v1832 = vrot.slane %v1831, 2
    %v1833 = vadd.f32 %v1831, %v1832
    %v1834 = vrot.slane %v1833, 1
    %v1835 = vadd.f32 %v1833, %v1834
    %v1836 = vadd.f32 %v1826, %v1828
    %v1837 = vrot.slane %v1836, 4
    %v1838 = vadd.f32 %v1836, %v1837
    %v1839 = vrot.slane %v1838, 2
    %v1840 = vadd.f32 %v1838, %v1839
    %v1841 = vrot.slane %v1840, 1
    %v1842 = vadd.f32 %v1840, %v1841
    %v1843 = vadd.f32 %v1623, %v1835
    %v1844 = vadd.f32 %v1624, %v1842
    %v1845 = vmul.f32 %v1773, %v1777
    %v1846 = vmul.f32 %v1774, %v1778
    %v1847 = vmul.f32 %v1775, %v1779
    %v1848 = vmul.f32 %v1776, %v1780
    %v1849 = vadd.f32 %v1845, %v1847
    %v1850 = vrot.slane %v1849, 4
    %v1851 = vadd.f32 %v1849, %v1850
    %v1852 = vrot.slane %v1851, 2
    %v1853 = vadd.f32 %v1851, %v1852
    %v1854 = vrot.slane %v1853, 1
    %v1855 = vadd.f32 %v1853, %v1854
    %v1856 = vadd.f32 %v1846, %v1848
    %v1857 = vrot.slane %v1856, 4
    %v1858 = vadd.f32 %v1856, %v1857
    %v1859 = vrot.slane %v1858, 2
    %v1860 = vadd.f32 %v1858, %v1859
    %v1861 = vrot.slane %v1860, 1
    %v1862 = vadd.f32 %v1860, %v1861
    %v1863 = vadd.f32 %v1643, %v1855
    %v1864 = vadd.f32 %v1644, %v1862
    %v1865 = vlaneseq
    %v1866 = vshrl.u32 %v1865, 7
    %v1867 = vlaneseq
    %v1868 = vand.u32 %v1867, 127
    %vm1869 = vcmask 1040384
    %v1870 = vsel %vm1869, %v1803, 0.0
    %v1871 = vsel %vm1869, %v1804, 0.0
    %v1872 = vadd.f32 %v1870, %v1871
    %1873 = vadd.xlane.f32.xlu0 %v1872
    %v1874 = vpop.xlane.xlu0 %1873
    %v1875 = vrot.slane %v1874, 4
    %v1876 = vadd.f32 %v1874, %v1875
    %v1877 = vrot.slane %v1876, 2
    %v1878 = vadd.f32 %v1876, %v1877
    %v1879 = vrot.slane %v1878, 1
    %v1880 = vadd.f32 %v1878, %v1879
    %s1881 = vtos %v1880
    %s1882 = smax.f32 %s1881, 0.0
    %vm1883 = vcmp.eq.s32.totalorder %v1866, 0
    %vm1884 = vcmp.eq.s32.totalorder %v1868, 0
    %vm1885 = vmand %vm1883, %vm1884
    %v1886 = vstv %s1882
    %v1887 = vsel %vm1885, %v1886, 0.0
    %v1888 = vadd.f32 %v1887, 0.0
    %v1889 = vsel %vm1869, %v1823, 0.0
    %v1890 = vsel %vm1869, %v1824, 0.0
    %v1891 = vadd.f32 %v1889, %v1890
    %1892 = vadd.xlane.f32.xlu0 %v1891
    %v1893 = vpop.xlane.xlu0 %1892
    %v1894 = vrot.slane %v1893, 4
    %v1895 = vadd.f32 %v1893, %v1894
    %v1896 = vrot.slane %v1895, 2
    %v1897 = vadd.f32 %v1895, %v1896
    %v1898 = vrot.slane %v1897, 1
    %v1899 = vadd.f32 %v1897, %v1898
    %s1900 = vtos %v1899
    %s1901 = smax.f32 %s1900, 0.0
    %vm1902 = vcmp.eq.s32.totalorder %v1868, 1
    %vm1903 = vmand %vm1883, %vm1902
    %v1904 = vstv %s1901
    %v1905 = vsel %vm1903, %v1904, 0.0
    %v1906 = vadd.f32 %v1888, %v1905
    %v1907 = vsel %vm1869, %v1843, 0.0
    %v1908 = vsel %vm1869, %v1844, 0.0
    %v1909 = vadd.f32 %v1907, %v1908
    %1910 = vadd.xlane.f32.xlu0 %v1909
    %v1911 = vpop.xlane.xlu0 %1910
    %v1912 = vrot.slane %v1911, 4
    %v1913 = vadd.f32 %v1911, %v1912
    %v1914 = vrot.slane %v1913, 2
    %v1915 = vadd.f32 %v1913, %v1914
    %v1916 = vrot.slane %v1915, 1
    %v1917 = vadd.f32 %v1915, %v1916
    %s1918 = vtos %v1917
    %s1919 = smax.f32 %s1918, 0.0
    %vm1920 = vcmp.eq.s32.totalorder %v1866, 1
    %vm1921 = vmand %vm1920, %vm1884
    %v1922 = vstv %s1919
    %v1923 = vsel %vm1921, %v1922, 0.0
    %v1924 = vadd.f32 %v1906, %v1923
    %v1925 = vsel %vm1869, %v1863, 0.0
    %v1926 = vsel %vm1869, %v1864, 0.0
    %v1927 = vadd.f32 %v1925, %v1926
    %1928 = vadd.xlane.f32.xlu0 %v1927
    %v1929 = vpop.xlane.xlu0 %1928
    %v1930 = vrot.slane %v1929, 4
    %v1931 = vadd.f32 %v1929, %v1930
    %v1932 = vrot.slane %v1931, 2
    %v1933 = vadd.f32 %v1931, %v1932
    %v1934 = vrot.slane %v1933, 1
    %v1935 = vadd.f32 %v1933, %v1934
    %s1936 = vtos %v1935
    %s1937 = smax.f32 %s1936, 0.0
    %vm1938 = vmand %vm1920, %vm1902
    %v1939 = vstv %s1937
    %v1940 = vsel %vm1938, %v1939, 0.0
    %v1941 = vadd.f32 %v1924, %v1940
    %v1942 = vld [vmem:[#allocation6] sm:$0xff]
    %v1943 = vld [vmem:[#allocation2] sm:$0xff]
    %v1944 = vld [vmem:[#allocation2 + $0x8] sm:$0xff]
    %v1945 = vld [vmem:[#allocation2 + $0x10] sm:$0xff]
    %v1946 = vld [vmem:[#allocation2 + $0x18] sm:$0xff]
    %vm1947 = vcmask 64512
    %v1949 = vsel %vm1947, %v1941, 0
    %1951 = vmatpush.msra.mxu0 0.0
    %1952 = vmatpush.msra.mxu0 0.0
    %1953 = vmatpush.msra.mxu0 0.0
    %1954 = vmatpush.msra.mxu0 0.0
    %1955 = vmatpush.msra.mxu0 0.0
    %1956 = vmatpush.msra.mxu0 0.0
    %1957 = vmatpush.msra.mxu0 0.0
    %1958 = vmatpush.msra.mxu0 0.0
    %1959 = vmatpush.msra.mxu0 0.0
    %1960 = vmatpush.msra.mxu0 0.0
    %1961 = vmatpush.msra.mxu0 0.0
    %1962 = vmatpush.msra.mxu0 0.0
    %1963 = vmatpush.msra.mxu0 0.0
    %1964 = vmatpush.msra.mxu0 0.0
    %1965 = vmatpush.msra.mxu0 0.0
    %1966 = vmatpush.msra.mxu0 %v1943
    %1967 = vmatmul.f32.gmra.mxu0 %v1949
    %v1968 = vpop.f32.mrf.mxu0
    %v1969 = vadd.f32 0.0, %v1968
    %1970 = vdwg.mxu0
    %1971 = vmatpush.msra.mxu0 0.0
    %1972 = vmatpush.msra.mxu0 0.0
    %1973 = vmatpush.msra.mxu0 0.0
    %1974 = vmatpush.msra.mxu0 0.0
    %1975 = vmatpush.msra.mxu0 0.0
    %1976 = vmatpush.msra.mxu0 0.0
    %1977 = vmatpush.msra.mxu0 0.0
    %1978 = vmatpush.msra.mxu0 0.0
    %1979 = vmatpush.msra.mxu0 0.0
    %1980 = vmatpush.msra.mxu0 0.0
    %1981 = vmatpush.msra.mxu0 0.0
    %1982 = vmatpush.msra.mxu0 0.0
    %1983 = vmatpush.msra.mxu0 0.0
    %1984 = vmatpush.msra.mxu0 0.0
    %1985 = vmatpush.msra.mxu0 0.0
    %1986 = vmatpush.msra.mxu0 %v1944
    %1987 = vmatmul.f32.gmra.mxu0 %v1949
    %v1988 = vpop.f32.mrf.mxu0
    %v1989 = vadd.f32 0.0, %v1988
    %1990 = vdwg.mxu0
    %1991 = vmatpush.msra.mxu0 0.0
    %1992 = vmatpush.msra.mxu0 0.0
    %1993 = vmatpush.msra.mxu0 0.0
    %1994 = vmatpush.msra.mxu0 0.0
    %1995 = vmatpush.msra.mxu0 0.0
    %1996 = vmatpush.msra.mxu0 0.0
    %1997 = vmatpush.msra.mxu0 0.0
    %1998 = vmatpush.msra.mxu0 0.0
    %1999 = vmatpush.msra.mxu0 0.0
    %2000 = vmatpush.msra.mxu0 0.0
    %2001 = vmatpush.msra.mxu0 0.0
    %2002 = vmatpush.msra.mxu0 0.0
    %2003 = vmatpush.msra.mxu0 0.0
    %2004 = vmatpush.msra.mxu0 0.0
    %2005 = vmatpush.msra.mxu0 0.0
    %2006 = vmatpush.msra.mxu0 %v1945
    %2007 = vmatmul.f32.gmra.mxu0 %v1949
    %v2008 = vpop.f32.mrf.mxu0
    %v2009 = vadd.f32 0.0, %v2008
    %2010 = vdwg.mxu0
    %2011 = vmatpush.msra.mxu0 0.0
    %2012 = vmatpush.msra.mxu0 0.0
    %2013 = vmatpush.msra.mxu0 0.0
    %2014 = vmatpush.msra.mxu0 0.0
    %2015 = vmatpush.msra.mxu0 0.0
    %2016 = vmatpush.msra.mxu0 0.0
    %2017 = vmatpush.msra.mxu0 0.0
    %2018 = vmatpush.msra.mxu0 0.0
    %2019 = vmatpush.msra.mxu0 0.0
    %2020 = vmatpush.msra.mxu0 0.0
    %2021 = vmatpush.msra.mxu0 0.0
    %2022 = vmatpush.msra.mxu0 0.0
    %2023 = vmatpush.msra.mxu0 0.0
    %2024 = vmatpush.msra.mxu0 0.0
    %2025 = vmatpush.msra.mxu0 0.0
    %2026 = vmatpush.msra.mxu0 %v1946
    %2027 = vmatmul.f32.gmra.mxu0 %v1949
    %v2028 = vpop.f32.mrf.mxu0
    %v2029 = vadd.f32 0.0, %v2028
    %2030 = vdwg.mxu0
    %v2031 = vmax.f32 %v1969, 0.0
    %v2032 = vmax.f32 %v1989, 0.0
    %v2033 = vmax.f32 %v2009, 0.0
    %v2034 = vmax.f32 %v2029, 0.0
    %v2036 = vsel %vm1947, %v1942, 0
    %2038 = vmatpush.msra.mxu0 0.0
    %2039 = vmatpush.msra.mxu0 0.0
    %2040 = vmatpush.msra.mxu0 0.0
    %2041 = vmatpush.msra.mxu0 0.0
    %2042 = vmatpush.msra.mxu0 0.0
    %2043 = vmatpush.msra.mxu0 0.0
    %2044 = vmatpush.msra.mxu0 0.0
    %2045 = vmatpush.msra.mxu0 0.0
    %2046 = vmatpush.msra.mxu0 0.0
    %2047 = vmatpush.msra.mxu0 0.0
    %2048 = vmatpush.msra.mxu0 0.0
    %2049 = vmatpush.msra.mxu0 0.0
    %2050 = vmatpush.msra.mxu0 0.0
    %2051 = vmatpush.msra.mxu0 0.0
    %2052 = vmatpush.msra.mxu0 0.0
    %2053 = vmatpush.msra.mxu0 %v2031
    %2054 = vmatmul.f32.gmra.mxu0 %v2036
    %v2055 = vpop.f32.mrf.mxu0
    %v2056 = vadd.f32 0.0, %v2055
    %2057 = vdwg.mxu0
    %2058 = vmatpush.msra.mxu0 0.0
    %2059 = vmatpush.msra.mxu0 0.0
    %2060 = vmatpush.msra.mxu0 0.0
    %2061 = vmatpush.msra.mxu0 0.0
    %2062 = vmatpush.msra.mxu0 0.0
    %2063 = vmatpush.msra.mxu0 0.0
    %2064 = vmatpush.msra.mxu0 0.0
    %2065 = vmatpush.msra.mxu0 0.0
    %2066 = vmatpush.msra.mxu0 0.0
    %2067 = vmatpush.msra.mxu0 0.0
    %2068 = vmatpush.msra.mxu0 0.0
    %2069 = vmatpush.msra.mxu0 0.0
    %2070 = vmatpush.msra.mxu0 0.0
    %2071 = vmatpush.msra.mxu0 0.0
    %2072 = vmatpush.msra.mxu0 0.0
    %2073 = vmatpush.msra.mxu0 %v2032
    %2074 = vmatmul.f32.gmra.mxu0 %v2036
    %v2075 = vpop.f32.mrf.mxu0
    %v2076 = vadd.f32 0.0, %v2075
    %2077 = vdwg.mxu0
    %2078 = vmatpush.msra.mxu0 0.0
    %2079 = vmatpush.msra.mxu0 0.0
    %2080 = vmatpush.msra.mxu0 0.0
    %2081 = vmatpush.msra.mxu0 0.0
    %2082 = vmatpush.msra.mxu0 0.0
    %2083 = vmatpush.msra.mxu0 0.0
    %2084 = vmatpush.msra.mxu0 0.0
    %2085 = vmatpush.msra.mxu0 0.0
    %2086 = vmatpush.msra.mxu0 0.0
    %2087 = vmatpush.msra.mxu0 0.0
    %2088 = vmatpush.msra.mxu0 0.0
    %2089 = vmatpush.msra.mxu0 0.0
    %2090 = vmatpush.msra.mxu0 0.0
    %2091 = vmatpush.msra.mxu0 0.0
    %2092 = vmatpush.msra.mxu0 0.0
    %2093 = vmatpush.msra.mxu0 %v2033
    %2094 = vmatmul.f32.gmra.mxu0 %v2036
    %v2095 = vpop.f32.mrf.mxu0
    %v2096 = vadd.f32 0.0, %v2095
    %2097 = vdwg.mxu0
    %2098 = vmatpush.msra.mxu0 0.0
    %2099 = vmatpush.msra.mxu0 0.0
    %2100 = vmatpush.msra.mxu0 0.0
    %2101 = vmatpush.msra.mxu0 0.0
    %2102 = vmatpush.msra.mxu0 0.0
    %2103 = vmatpush.msra.mxu0 0.0
    %2104 = vmatpush.msra.mxu0 0.0
    %2105 = vmatpush.msra.mxu0 0.0
    %2106 = vmatpush.msra.mxu0 0.0
    %2107 = vmatpush.msra.mxu0 0.0
    %2108 = vmatpush.msra.mxu0 0.0
    %2109 = vmatpush.msra.mxu0 0.0
    %2110 = vmatpush.msra.mxu0 0.0
    %2111 = vmatpush.msra.mxu0 0.0
    %2112 = vmatpush.msra.mxu0 0.0
    %2113 = vmatpush.msra.mxu0 %v2034
    %2114 = vmatmul.f32.gmra.mxu0 %v2036
    %v2115 = vpop.f32.mrf.mxu0
    %v2116 = vadd.f32 0.0, %v2115
    %2117 = vdwg.mxu0
    %v2118 = vpack.c.bf16 %v2076, %v2056
    %v2119 = vpack.c.bf16 %v2116, %v2096
    %2120 = vst [vmem:[#allocation8] sm:$0xff] %v2118
    %2121 = vst [vmem:[#allocation8 + $0x8] sm:$0xff] %v2119
    %v2122 = vld [vmem:[#allocation2 + $0x20] sm:$0xff]
    %v2123 = vld [vmem:[#allocation2 + $0x28] sm:$0xff]
    %v2124 = vld [vmem:[#allocation2 + $0x30] sm:$0xff]
    %v2125 = vld [vmem:[#allocation2 + $0x38] sm:$0xff]
    %2126 = vmatpush.msra.mxu0 0.0
    %2127 = vmatpush.msra.mxu0 0.0
    %2128 = vmatpush.msra.mxu0 0.0
    %2129 = vmatpush.msra.mxu0 0.0
    %2130 = vmatpush.msra.mxu0 0.0
    %2131 = vmatpush.msra.mxu0 0.0
    %2132 = vmatpush.msra.mxu0 0.0
    %2133 = vmatpush.msra.mxu0 0.0
    %2134 = vmatpush.msra.mxu0 0.0
    %2135 = vmatpush.msra.mxu0 0.0
    %2136 = vmatpush.msra.mxu0 0.0
    %2137 = vmatpush.msra.mxu0 0.0
    %2138 = vmatpush.msra.mxu0 0.0
    %2139 = vmatpush.msra.mxu0 0.0
    %2140 = vmatpush.msra.mxu0 0.0
    %2141 = vmatpush.msra.mxu0 %v2122
    %2142 = vmatmul.f32.gmra.mxu0 %v1949
    %v2143 = vpop.f32.mrf.mxu0
    %v2144 = vadd.f32 0.0, %v2143
    %2145 = vdwg.mxu0
    %2146 = vmatpush.msra.mxu0 0.0
    %2147 = vmatpush.msra.mxu0 0.0
    %2148 = vmatpush.msra.mxu0 0.0
    %2149 = vmatpush.msra.mxu0 0.0
    %2150 = vmatpush.msra.mxu0 0.0
    %2151 = vmatpush.msra.mxu0 0.0
    %2152 = vmatpush.msra.mxu0 0.0
    %2153 = vmatpush.msra.mxu0 0.0
    %2154 = vmatpush.msra.mxu0 0.0
    %2155 = vmatpush.msra.mxu0 0.0
    %2156 = vmatpush.msra.mxu0 0.0
    %2157 = vmatpush.msra.mxu0 0.0
    %2158 = vmatpush.msra.mxu0 0.0
    %2159 = vmatpush.msra.mxu0 0.0
    %2160 = vmatpush.msra.mxu0 0.0
    %2161 = vmatpush.msra.mxu0 %v2123
    %2162 = vmatmul.f32.gmra.mxu0 %v1949
    %v2163 = vpop.f32.mrf.mxu0
    %v2164 = vadd.f32 0.0, %v2163
    %2165 = vdwg.mxu0
    %2166 = vmatpush.msra.mxu0 0.0
    %2167 = vmatpush.msra.mxu0 0.0
    %2168 = vmatpush.msra.mxu0 0.0
    %2169 = vmatpush.msra.mxu0 0.0
    %2170 = vmatpush.msra.mxu0 0.0
    %2171 = vmatpush.msra.mxu0 0.0
    %2172 = vmatpush.msra.mxu0 0.0
    %2173 = vmatpush.msra.mxu0 0.0
    %2174 = vmatpush.msra.mxu0 0.0
    %2175 = vmatpush.msra.mxu0 0.0
    %2176 = vmatpush.msra.mxu0 0.0
    %2177 = vmatpush.msra.mxu0 0.0
    %2178 = vmatpush.msra.mxu0 0.0
    %2179 = vmatpush.msra.mxu0 0.0
    %2180 = vmatpush.msra.mxu0 0.0
    %2181 = vmatpush.msra.mxu0 %v2124
    %2182 = vmatmul.f32.gmra.mxu0 %v1949
    %v2183 = vpop.f32.mrf.mxu0
    %v2184 = vadd.f32 0.0, %v2183
    %2185 = vdwg.mxu0
    %2186 = vmatpush.msra.mxu0 0.0
    %2187 = vmatpush.msra.mxu0 0.0
    %2188 = vmatpush.msra.mxu0 0.0
    %2189 = vmatpush.msra.mxu0 0.0
    %2190 = vmatpush.msra.mxu0 0.0
    %2191 = vmatpush.msra.mxu0 0.0
    %2192 = vmatpush.msra.mxu0 0.0
    %2193 = vmatpush.msra.mxu0 0.0
    %2194 = vmatpush.msra.mxu0 0.0
    %2195 = vmatpush.msra.mxu0 0.0
    %2196 = vmatpush.msra.mxu0 0.0
    %2197 = vmatpush.msra.mxu0 0.0
    %2198 = vmatpush.msra.mxu0 0.0
    %2199 = vmatpush.msra.mxu0 0.0
    %2200 = vmatpush.msra.mxu0 0.0
    %2201 = vmatpush.msra.mxu0 %v2125
    %2202 = vmatmul.f32.gmra.mxu0 %v1949
    %v2203 = vpop.f32.mrf.mxu0
    %v2204 = vadd.f32 0.0, %v2203
    %2205 = vdwg.mxu0
    %v2206 = vmax.f32 %v2144, 0.0
    %v2207 = vmax.f32 %v2164, 0.0
    %v2208 = vmax.f32 %v2184, 0.0
    %v2209 = vmax.f32 %v2204, 0.0
    %2210 = vmatpush.msra.mxu0 0.0
    %2211 = vmatpush.msra.mxu0 0.0
    %2212 = vmatpush.msra.mxu0 0.0
    %2213 = vmatpush.msra.mxu0 0.0
    %2214 = vmatpush.msra.mxu0 0.0
    %2215 = vmatpush.msra.mxu0 0.0
    %2216 = vmatpush.msra.mxu0 0.0
    %2217 = vmatpush.msra.mxu0 0.0
    %2218 = vmatpush.msra.mxu0 0.0
    %2219 = vmatpush.msra.mxu0 0.0
    %2220 = vmatpush.msra.mxu0 0.0
    %2221 = vmatpush.msra.mxu0 0.0
    %2222 = vmatpush.msra.mxu0 0.0
    %2223 = vmatpush.msra.mxu0 0.0
    %2224 = vmatpush.msra.mxu0 0.0
    %2225 = vmatpush.msra.mxu0 %v2206
    %2226 = vmatmul.f32.gmra.mxu0 %v2036
    %v2227 = vpop.f32.mrf.mxu0
    %v2228 = vadd.f32 0.0, %v2227
    %2229 = vdwg.mxu0
    %2230 = vmatpush.msra.mxu0 0.0
    %2231 = vmatpush.msra.mxu0 0.0
    %2232 = vmatpush.msra.mxu0 0.0
    %2233 = vmatpush.msra.mxu0 0.0
    %2234 = vmatpush.msra.mxu0 0.0
    %2235 = vmatpush.msra.mxu0 0.0
    %2236 = vmatpush.msra.mxu0 0.0
    %2237 = vmatpush.msra.mxu0 0.0
    %2238 = vmatpush.msra.mxu0 0.0
    %2239 = vmatpush.msra.mxu0 0.0
    %2240 = vmatpush.msra.mxu0 0.0
    %2241 = vmatpush.msra.mxu0 0.0
    %2242 = vmatpush.msra.mxu0 0.0
    %2243 = vmatpush.msra.mxu0 0.0
    %2244 = vmatpush.msra.mxu0 0.0
    %2245 = vmatpush.msra.mxu0 %v2207
    %2246 = vmatmul.f32.gmra.mxu0 %v2036
    %v2247 = vpop.f32.mrf.mxu0
    %v2248 = vadd.f32 0.0, %v2247
    %2249 = vdwg.mxu0
    %2250 = vmatpush.msra.mxu0 0.0
    %2251 = vmatpush.msra.mxu0 0.0
    %2252 = vmatpush.msra.mxu0 0.0
    %2253 = vmatpush.msra.mxu0 0.0
    %2254 = vmatpush.msra.mxu0 0.0
    %2255 = vmatpush.msra.mxu0 0.0
    %2256 = vmatpush.msra.mxu0 0.0
    %2257 = vmatpush.msra.mxu0 0.0
    %2258 = vmatpush.msra.mxu0 0.0
    %2259 = vmatpush.msra.mxu0 0.0
    %2260 = vmatpush.msra.mxu0 0.0
    %2261 = vmatpush.msra.mxu0 0.0
    %2262 = vmatpush.msra.mxu0 0.0
    %2263 = vmatpush.msra.mxu0 0.0
    %2264 = vmatpush.msra.mxu0 0.0
    %2265 = vmatpush.msra.mxu0 %v2208
    %2266 = vmatmul.f32.gmra.mxu0 %v2036
    %v2267 = vpop.f32.mrf.mxu0
    %v2268 = vadd.f32 0.0, %v2267
    %2269 = vdwg.mxu0
    %2270 = vmatpush.msra.mxu0 0.0
    %2271 = vmatpush.msra.mxu0 0.0
    %2272 = vmatpush.msra.mxu0 0.0
    %2273 = vmatpush.msra.mxu0 0.0
    %2274 = vmatpush.msra.mxu0 0.0
    %2275 = vmatpush.msra.mxu0 0.0
    %2276 = vmatpush.msra.mxu0 0.0
    %2277 = vmatpush.msra.mxu0 0.0
    %2278 = vmatpush.msra.mxu0 0.0
    %2279 = vmatpush.msra.mxu0 0.0
    %2280 = vmatpush.msra.mxu0 0.0
    %2281 = vmatpush.msra.mxu0 0.0
    %2282 = vmatpush.msra.mxu0 0.0
    %2283 = vmatpush.msra.mxu0 0.0
    %2284 = vmatpush.msra.mxu0 0.0
    %2285 = vmatpush.msra.mxu0 %v2209
    %2286 = vmatmul.f32.gmra.mxu0 %v2036
    %v2287 = vpop.f32.mrf.mxu0
    %v2288 = vadd.f32 0.0, %v2287
    %2289 = vdwg.mxu0
    %v2290 = vpack.c.bf16 %v2248, %v2228
    %v2291 = vpack.c.bf16 %v2288, %v2268
    %2292 = vst [vmem:[#allocation8 + $0x10] sm:$0xff] %v2290
    %2293 = vst [vmem:[#allocation8 + $0x18] sm:$0xff] %v2291
    %v2294 = vld [vmem:[#allocation2 + $0x40] sm:$0xff]
    %v2295 = vld [vmem:[#allocation2 + $0x48] sm:$0xff]
    %v2296 = vld [vmem:[#allocation2 + $0x50] sm:$0xff]
    %v2297 = vld [vmem:[#allocation2 + $0x58] sm:$0xff]
    %2298 = vmatpush.msra.mxu0 0.0
    %2299 = vmatpush.msra.mxu0 0.0
    %2300 = vmatpush.msra.mxu0 0.0
    %2301 = vmatpush.msra.mxu0 0.0
    %2302 = vmatpush.msra.mxu0 0.0
    %2303 = vmatpush.msra.mxu0 0.0
    %2304 = vmatpush.msra.mxu0 0.0
    %2305 = vmatpush.msra.mxu0 0.0
    %2306 = vmatpush.msra.mxu0 0.0
    %2307 = vmatpush.msra.mxu0 0.0
    %2308 = vmatpush.msra.mxu0 0.0
    %2309 = vmatpush.msra.mxu0 0.0
    %2310 = vmatpush.msra.mxu0 0.0
    %2311 = vmatpush.msra.mxu0 0.0
    %2312 = vmatpush.msra.mxu0 0.0
    %2313 = vmatpush.msra.mxu0 %v2294
    %2314 = vmatmul.f32.gmra.mxu0 %v1949
    %v2315 = vpop.f32.mrf.mxu0
    %v2316 = vadd.f32 0.0, %v2315
    %2317 = vdwg.mxu0
    %2318 = vmatpush.msra.mxu0 0.0
    %2319 = vmatpush.msra.mxu0 0.0
    %2320 = vmatpush.msra.mxu0 0.0
    %2321 = vmatpush.msra.mxu0 0.0
    %2322 = vmatpush.msra.mxu0 0.0
    %2323 = vmatpush.msra.mxu0 0.0
    %2324 = vmatpush.msra.mxu0 0.0
    %2325 = vmatpush.msra.mxu0 0.0
    %2326 = vmatpush.msra.mxu0 0.0
    %2327 = vmatpush.msra.mxu0 0.0
    %2328 = vmatpush.msra.mxu0 0.0
    %2329 = vmatpush.msra.mxu0 0.0
    %2330 = vmatpush.msra.mxu0 0.0
    %2331 = vmatpush.msra.mxu0 0.0
    %2332 = vmatpush.msra.mxu0 0.0
    %2333 = vmatpush.msra.mxu0 %v2295
    %2334 = vmatmul.f32.gmra.mxu0 %v1949
    %v2335 = vpop.f32.mrf.mxu0
    %v2336 = vadd.f32 0.0, %v2335
    %2337 = vdwg.mxu0
    %2338 = vmatpush.msra.mxu0 0.0
    %2339 = vmatpush.msra.mxu0 0.0
    %2340 = vmatpush.msra.mxu0 0.0
    %2341 = vmatpush.msra.mxu0 0.0
    %2342 = vmatpush.msra.mxu0 0.0
    %2343 = vmatpush.msra.mxu0 0.0
    %2344 = vmatpush.msra.mxu0 0.0
    %2345 = vmatpush.msra.mxu0 0.0
    %2346 = vmatpush.msra.mxu0 0.0
    %2347 = vmatpush.msra.mxu0 0.0
    %2348 = vmatpush.msra.mxu0 0.0
    %2349 = vmatpush.msra.mxu0 0.0
    %2350 = vmatpush.msra.mxu0 0.0
    %2351 = vmatpush.msra.mxu0 0.0
    %2352 = vmatpush.msra.mxu0 0.0
    %2353 = vmatpush.msra.mxu0 %v2296
    %2354 = vmatmul.f32.gmra.mxu0 %v1949
    %v2355 = vpop.f32.mrf.mxu0
    %v2356 = vadd.f32 0.0, %v2355
    %2357 = vdwg.mxu0
    %2358 = vmatpush.msra.mxu0 0.0
    %2359 = vmatpush.msra.mxu0 0.0
    %2360 = vmatpush.msra.mxu0 0.0
    %2361 = vmatpush.msra.mxu0 0.0
    %2362 = vmatpush.msra.mxu0 0.0
    %2363 = vmatpush.msra.mxu0 0.0
    %2364 = vmatpush.msra.mxu0 0.0
    %2365 = vmatpush.msra.mxu0 0.0
    %2366 = vmatpush.msra.mxu0 0.0
    %2367 = vmatpush.msra.mxu0 0.0
    %2368 = vmatpush.msra.mxu0 0.0
    %2369 = vmatpush.msra.mxu0 0.0
    %2370 = vmatpush.msra.mxu0 0.0
    %2371 = vmatpush.msra.mxu0 0.0
    %2372 = vmatpush.msra.mxu0 0.0
    %2373 = vmatpush.msra.mxu0 %v2297
    %2374 = vmatmul.f32.gmra.mxu0 %v1949
    %v2375 = vpop.f32.mrf.mxu0
    %v2376 = vadd.f32 0.0, %v2375
    %2377 = vdwg.mxu0
    %v2378 = vmax.f32 %v2316, 0.0
    %v2379 = vmax.f32 %v2336, 0.0
    %v2380 = vmax.f32 %v2356, 0.0
    %v2381 = vmax.f32 %v2376, 0.0
    %2382 = vmatpush.msra.mxu0 0.0
    %2383 = vmatpush.msra.mxu0 0.0
    %2384 = vmatpush.msra.mxu0 0.0
    %2385 = vmatpush.msra.mxu0 0.0
    %2386 = vmatpush.msra.mxu0 0.0
    %2387 = vmatpush.msra.mxu0 0.0
    %2388 = vmatpush.msra.mxu0 0.0
    %2389 = vmatpush.msra.mxu0 0.0
    %2390 = vmatpush.msra.mxu0 0.0
    %2391 = vmatpush.msra.mxu0 0.0
    %2392 = vmatpush.msra.mxu0 0.0
    %2393 = vmatpush.msra.mxu0 0.0
    %2394 = vmatpush.msra.mxu0 0.0
    %2395 = vmatpush.msra.mxu0 0.0
    %2396 = vmatpush.msra.mxu0 0.0
    %2397 = vmatpush.msra.mxu0 %v2378
    %2398 = vmatmul.f32.gmra.mxu0 %v2036
    %v2399 = vpop.f32.mrf.mxu0
    %v2400 = vadd.f32 0.0, %v2399
    %2401 = vdwg.mxu0
    %2402 = vmatpush.msra.mxu0 0.0
    %2403 = vmatpush.msra.mxu0 0.0
    %2404 = vmatpush.msra.mxu0 0.0
    %2405 = vmatpush.msra.mxu0 0.0
    %2406 = vmatpush.msra.mxu0 0.0
    %2407 = vmatpush.msra.mxu0 0.0
    %2408 = vmatpush.msra.mxu0 0.0
    %2409 = vmatpush.msra.mxu0 0.0
    %2410 = vmatpush.msra.mxu0 0.0
    %2411 = vmatpush.msra.mxu0 0.0
    %2412 = vmatpush.msra.mxu0 0.0
    %2413 = vmatpush.msra.mxu0 0.0
    %2414 = vmatpush.msra.mxu0 0.0
    %2415 = vmatpush.msra.mxu0 0.0
    %2416 = vmatpush.msra.mxu0 0.0
    %2417 = vmatpush.msra.mxu0 %v2379
    %2418 = vmatmul.f32.gmra.mxu0 %v2036
    %v2419 = vpop.f32.mrf.mxu0
    %v2420 = vadd.f32 0.0, %v2419
    %2421 = vdwg.mxu0
    %2422 = vmatpush.msra.mxu0 0.0
    %2423 = vmatpush.msra.mxu0 0.0
    %2424 = vmatpush.msra.mxu0 0.0
    %2425 = vmatpush.msra.mxu0 0.0
    %2426 = vmatpush.msra.mxu0 0.0
    %2427 = vmatpush.msra.mxu0 0.0
    %2428 = vmatpush.msra.mxu0 0.0
    %2429 = vmatpush.msra.mxu0 0.0
    %2430 = vmatpush.msra.mxu0 0.0
    %2431 = vmatpush.msra.mxu0 0.0
    %2432 = vmatpush.msra.mxu0 0.0
    %2433 = vmatpush.msra.mxu0 0.0
    %2434 = vmatpush.msra.mxu0 0.0
    %2435 = vmatpush.msra.mxu0 0.0
    %2436 = vmatpush.msra.mxu0 0.0
    %2437 = vmatpush.msra.mxu0 %v2380
    %2438 = vmatmul.f32.gmra.mxu0 %v2036
    %v2439 = vpop.f32.mrf.mxu0
    %v2440 = vadd.f32 0.0, %v2439
    %2441 = vdwg.mxu0
    %2442 = vmatpush.msra.mxu0 0.0
    %2443 = vmatpush.msra.mxu0 0.0
    %2444 = vmatpush.msra.mxu0 0.0
    %2445 = vmatpush.msra.mxu0 0.0
    %2446 = vmatpush.msra.mxu0 0.0
    %2447 = vmatpush.msra.mxu0 0.0
    %2448 = vmatpush.msra.mxu0 0.0
    %2449 = vmatpush.msra.mxu0 0.0
    %2450 = vmatpush.msra.mxu0 0.0
    %2451 = vmatpush.msra.mxu0 0.0
    %2452 = vmatpush.msra.mxu0 0.0
    %2453 = vmatpush.msra.mxu0 0.0
    %2454 = vmatpush.msra.mxu0 0.0
    %2455 = vmatpush.msra.mxu0 0.0
    %2456 = vmatpush.msra.mxu0 0.0
    %2457 = vmatpush.msra.mxu0 %v2381
    %2458 = vmatmul.f32.gmra.mxu0 %v2036
    %v2459 = vpop.f32.mrf.mxu0
    %v2460 = vadd.f32 0.0, %v2459
    %2461 = vdwg.mxu0
    %v2462 = vpack.c.bf16 %v2420, %v2400
    %v2463 = vpack.c.bf16 %v2460, %v2440
    %2464 = vst [vmem:[#allocation8 + $0x20] sm:$0xff] %v2462
    %2465 = vst [vmem:[#allocation8 + $0x28] sm:$0xff] %v2463
    %v2466 = vld [vmem:[#allocation2 + $0x60] sm:$0xff]
    %v2467 = vld [vmem:[#allocation2 + $0x68] sm:$0xff]
    %v2468 = vld [vmem:[#allocation2 + $0x70] sm:$0xff]
    %v2469 = vld [vmem:[#allocation2 + $0x78] sm:$0xff]
    %2470 = vmatpush.msra.mxu0 0.0
    %2471 = vmatpush.msra.mxu0 0.0
    %2472 = vmatpush.msra.mxu0 0.0
    %2473 = vmatpush.msra.mxu0 0.0
    %2474 = vmatpush.msra.mxu0 0.0
    %2475 = vmatpush.msra.mxu0 0.0
    %2476 = vmatpush.msra.mxu0 0.0
    %2477 = vmatpush.msra.mxu0 0.0
    %2478 = vmatpush.msra.mxu0 0.0
    %2479 = vmatpush.msra.mxu0 0.0
    %2480 = vmatpush.msra.mxu0 0.0
    %2481 = vmatpush.msra.mxu0 0.0
    %2482 = vmatpush.msra.mxu0 0.0
    %2483 = vmatpush.msra.mxu0 0.0
    %2484 = vmatpush.msra.mxu0 0.0
    %2485 = vmatpush.msra.mxu0 %v2466
    %2486 = vmatmul.f32.gmra.mxu0 %v1949
    %v2487 = vpop.f32.mrf.mxu0
    %v2488 = vadd.f32 0.0, %v2487
    %2489 = vdwg.mxu0
    %2490 = vmatpush.msra.mxu0 0.0
    %2491 = vmatpush.msra.mxu0 0.0
    %2492 = vmatpush.msra.mxu0 0.0
    %2493 = vmatpush.msra.mxu0 0.0
    %2494 = vmatpush.msra.mxu0 0.0
    %2495 = vmatpush.msra.mxu0 0.0
    %2496 = vmatpush.msra.mxu0 0.0
    %2497 = vmatpush.msra.mxu0 0.0
    %2498 = vmatpush.msra.mxu0 0.0
    %2499 = vmatpush.msra.mxu0 0.0
    %2500 = vmatpush.msra.mxu0 0.0
    %2501 = vmatpush.msra.mxu0 0.0
    %2502 = vmatpush.msra.mxu0 0.0
    %2503 = vmatpush.msra.mxu0 0.0
    %2504 = vmatpush.msra.mxu0 0.0
    %2505 = vmatpush.msra.mxu0 %v2467
    %2506 = vmatmul.f32.gmra.mxu0 %v1949
    %v2507 = vpop.f32.mrf.mxu0
    %v2508 = vadd.f32 0.0, %v2507
    %2509 = vdwg.mxu0
    %2510 = vmatpush.msra.mxu0 0.0
    %2511 = vmatpush.msra.mxu0 0.0
    %2512 = vmatpush.msra.mxu0 0.0
    %2513 = vmatpush.msra.mxu0 0.0
    %2514 = vmatpush.msra.mxu0 0.0
    %2515 = vmatpush.msra.mxu0 0.0
    %2516 = vmatpush.msra.mxu0 0.0
    %2517 = vmatpush.msra.mxu0 0.0
    %2518 = vmatpush.msra.mxu0 0.0
    %2519 = vmatpush.msra.mxu0 0.0
    %2520 = vmatpush.msra.mxu0 0.0
    %2521 = vmatpush.msra.mxu0 0.0
    %2522 = vmatpush.msra.mxu0 0.0
    %2523 = vmatpush.msra.mxu0 0.0
    %2524 = vmatpush.msra.mxu0 0.0
    %2525 = vmatpush.msra.mxu0 %v2468
    %2526 = vmatmul.f32.gmra.mxu0 %v1949
    %v2527 = vpop.f32.mrf.mxu0
    %v2528 = vadd.f32 0.0, %v2527
    %2529 = vdwg.mxu0
    %2530 = vmatpush.msra.mxu0 0.0
    %2531 = vmatpush.msra.mxu0 0.0
    %2532 = vmatpush.msra.mxu0 0.0
    %2533 = vmatpush.msra.mxu0 0.0
    %2534 = vmatpush.msra.mxu0 0.0
    %2535 = vmatpush.msra.mxu0 0.0
    %2536 = vmatpush.msra.mxu0 0.0
    %2537 = vmatpush.msra.mxu0 0.0
    %2538 = vmatpush.msra.mxu0 0.0
    %2539 = vmatpush.msra.mxu0 0.0
    %2540 = vmatpush.msra.mxu0 0.0
    %2541 = vmatpush.msra.mxu0 0.0
    %2542 = vmatpush.msra.mxu0 0.0
    %2543 = vmatpush.msra.mxu0 0.0
    %2544 = vmatpush.msra.mxu0 0.0
    %2545 = vmatpush.msra.mxu0 %v2469
    %2546 = vmatmul.f32.gmra.mxu0 %v1949
    %v2547 = vpop.f32.mrf.mxu0
    %v2548 = vadd.f32 0.0, %v2547
    %2549 = vdwg.mxu0
    %v2550 = vmax.f32 %v2488, 0.0
    %v2551 = vmax.f32 %v2508, 0.0
    %v2552 = vmax.f32 %v2528, 0.0
    %v2553 = vmax.f32 %v2548, 0.0
    %2554 = vmatpush.msra.mxu0 0.0
    %2555 = vmatpush.msra.mxu0 0.0
    %2556 = vmatpush.msra.mxu0 0.0
    %2557 = vmatpush.msra.mxu0 0.0
    %2558 = vmatpush.msra.mxu0 0.0
    %2559 = vmatpush.msra.mxu0 0.0
    %2560 = vmatpush.msra.mxu0 0.0
    %2561 = vmatpush.msra.mxu0 0.0
    %2562 = vmatpush.msra.mxu0 0.0
    %2563 = vmatpush.msra.mxu0 0.0
    %2564 = vmatpush.msra.mxu0 0.0
    %2565 = vmatpush.msra.mxu0 0.0
    %2566 = vmatpush.msra.mxu0 0.0
    %2567 = vmatpush.msra.mxu0 0.0
    %2568 = vmatpush.msra.mxu0 0.0
    %2569 = vmatpush.msra.mxu0 %v2550
    %2570 = vmatmul.f32.gmra.mxu0 %v2036
    %v2571 = vpop.f32.mrf.mxu0
    %v2572 = vadd.f32 0.0, %v2571
    %2573 = vdwg.mxu0
    %2574 = vmatpush.msra.mxu0 0.0
    %2575 = vmatpush.msra.mxu0 0.0
    %2576 = vmatpush.msra.mxu0 0.0
    %2577 = vmatpush.msra.mxu0 0.0
    %2578 = vmatpush.msra.mxu0 0.0
    %2579 = vmatpush.msra.mxu0 0.0
    %2580 = vmatpush.msra.mxu0 0.0
    %2581 = vmatpush.msra.mxu0 0.0
    %2582 = vmatpush.msra.mxu0 0.0
    %2583 = vmatpush.msra.mxu0 0.0
    %2584 = vmatpush.msra.mxu0 0.0
    %2585 = vmatpush.msra.mxu0 0.0
    %2586 = vmatpush.msra.mxu0 0.0
    %2587 = vmatpush.msra.mxu0 0.0
    %2588 = vmatpush.msra.mxu0 0.0
    %2589 = vmatpush.msra.mxu0 %v2551
    %2590 = vmatmul.f32.gmra.mxu0 %v2036
    %v2591 = vpop.f32.mrf.mxu0
    %v2592 = vadd.f32 0.0, %v2591
    %2593 = vdwg.mxu0
    %2594 = vmatpush.msra.mxu0 0.0
    %2595 = vmatpush.msra.mxu0 0.0
    %2596 = vmatpush.msra.mxu0 0.0
    %2597 = vmatpush.msra.mxu0 0.0
    %2598 = vmatpush.msra.mxu0 0.0
    %2599 = vmatpush.msra.mxu0 0.0
    %2600 = vmatpush.msra.mxu0 0.0
    %2601 = vmatpush.msra.mxu0 0.0
    %2602 = vmatpush.msra.mxu0 0.0
    %2603 = vmatpush.msra.mxu0 0.0
    %2604 = vmatpush.msra.mxu0 0.0
    %2605 = vmatpush.msra.mxu0 0.0
    %2606 = vmatpush.msra.mxu0 0.0
    %2607 = vmatpush.msra.mxu0 0.0
    %2608 = vmatpush.msra.mxu0 0.0
    %2609 = vmatpush.msra.mxu0 %v2552
    %2610 = vmatmul.f32.gmra.mxu0 %v2036
    %v2611 = vpop.f32.mrf.mxu0
    %v2612 = vadd.f32 0.0, %v2611
    %2613 = vdwg.mxu0
    %2614 = vmatpush.msra.mxu0 0.0
    %2615 = vmatpush.msra.mxu0 0.0
    %2616 = vmatpush.msra.mxu0 0.0
    %2617 = vmatpush.msra.mxu0 0.0
    %2618 = vmatpush.msra.mxu0 0.0
    %2619 = vmatpush.msra.mxu0 0.0
    %2620 = vmatpush.msra.mxu0 0.0
    %2621 = vmatpush.msra.mxu0 0.0
    %2622 = vmatpush.msra.mxu0 0.0
    %2623 = vmatpush.msra.mxu0 0.0
    %2624 = vmatpush.msra.mxu0 0.0
    %2625 = vmatpush.msra.mxu0 0.0
    %2626 = vmatpush.msra.mxu0 0.0
    %2627 = vmatpush.msra.mxu0 0.0
    %2628 = vmatpush.msra.mxu0 0.0
    %2629 = vmatpush.msra.mxu0 %v2553
    %2630 = vmatmul.f32.gmra.mxu0 %v2036
    %v2631 = vpop.f32.mrf.mxu0
    %v2632 = vadd.f32 0.0, %v2631
    %2633 = vdwg.mxu0
    %v2634 = vpack.c.bf16 %v2592, %v2572
    %v2635 = vpack.c.bf16 %v2632, %v2612
    %2636 = vst [vmem:[#allocation8 + $0x30] sm:$0xff] %v2634
    %2637 = vst [vmem:[#allocation8 + $0x38] sm:$0xff] %v2635
    %v2638 = vld [vmem:[%s242] sm:$0xff]
    %v2639 = vld [vmem:[%s242 + $0x8] sm:$0xff]
    %v2640 = vld [vmem:[%s242 + $0x10] sm:$0xff]
    %v2641 = vld [vmem:[%s242 + $0x18] sm:$0xff]
    %2642 = vmatpush.msra.mxu0 0.0
    %2643 = vmatpush.msra.mxu0 0.0
    %2644 = vmatpush.msra.mxu0 0.0
    %2645 = vmatpush.msra.mxu0 0.0
    %2646 = vmatpush.msra.mxu0 0.0
    %2647 = vmatpush.msra.mxu0 0.0
    %2648 = vmatpush.msra.mxu0 0.0
    %2649 = vmatpush.msra.mxu0 0.0
    %2650 = vmatpush.msra.mxu0 0.0
    %2651 = vmatpush.msra.mxu0 0.0
    %2652 = vmatpush.msra.mxu0 0.0
    %2653 = vmatpush.msra.mxu0 0.0
    %2654 = vmatpush.msra.mxu0 0.0
    %2655 = vmatpush.msra.mxu0 0.0
    %2656 = vmatpush.msra.mxu0 0.0
    %2657 = vmatpush.msra.mxu0 %v2638
    %2658 = vmatmul.f32.gmra.mxu0 %v1949
    %v2659 = vpop.f32.mrf.mxu0
    %v2660 = vadd.f32 0.0, %v2659
    %2661 = vdwg.mxu0
    %2662 = vmatpush.msra.mxu0 0.0
    %2663 = vmatpush.msra.mxu0 0.0
    %2664 = vmatpush.msra.mxu0 0.0
    %2665 = vmatpush.msra.mxu0 0.0
    %2666 = vmatpush.msra.mxu0 0.0
    %2667 = vmatpush.msra.mxu0 0.0
    %2668 = vmatpush.msra.mxu0 0.0
    %2669 = vmatpush.msra.mxu0 0.0
    %2670 = vmatpush.msra.mxu0 0.0
    %2671 = vmatpush.msra.mxu0 0.0
    %2672 = vmatpush.msra.mxu0 0.0
    %2673 = vmatpush.msra.mxu0 0.0
    %2674 = vmatpush.msra.mxu0 0.0
    %2675 = vmatpush.msra.mxu0 0.0
    %2676 = vmatpush.msra.mxu0 0.0
    %2677 = vmatpush.msra.mxu0 %v2639
    %2678 = vmatmul.f32.gmra.mxu0 %v1949
    %v2679 = vpop.f32.mrf.mxu0
    %v2680 = vadd.f32 0.0, %v2679
    %2681 = vdwg.mxu0
    %2682 = vmatpush.msra.mxu0 0.0
    %2683 = vmatpush.msra.mxu0 0.0
    %2684 = vmatpush.msra.mxu0 0.0
    %2685 = vmatpush.msra.mxu0 0.0
    %2686 = vmatpush.msra.mxu0 0.0
    %2687 = vmatpush.msra.mxu0 0.0
    %2688 = vmatpush.msra.mxu0 0.0
    %2689 = vmatpush.msra.mxu0 0.0
    %2690 = vmatpush.msra.mxu0 0.0
    %2691 = vmatpush.msra.mxu0 0.0
    %2692 = vmatpush.msra.mxu0 0.0
    %2693 = vmatpush.msra.mxu0 0.0
    %2694 = vmatpush.msra.mxu0 0.0
    %2695 = vmatpush.msra.mxu0 0.0
    %2696 = vmatpush.msra.mxu0 0.0
    %2697 = vmatpush.msra.mxu0 %v2640
    %2698 = vmatmul.f32.gmra.mxu0 %v1949
    %v2699 = vpop.f32.mrf.mxu0
    %v2700 = vadd.f32 0.0, %v2699
    %2701 = vdwg.mxu0
    %2702 = vmatpush.msra.mxu0 0.0
    %2703 = vmatpush.msra.mxu0 0.0
    %2704 = vmatpush.msra.mxu0 0.0
    %2705 = vmatpush.msra.mxu0 0.0
    %2706 = vmatpush.msra.mxu0 0.0
    %2707 = vmatpush.msra.mxu0 0.0
    %2708 = vmatpush.msra.mxu0 0.0
    %2709 = vmatpush.msra.mxu0 0.0
    %2710 = vmatpush.msra.mxu0 0.0
    %2711 = vmatpush.msra.mxu0 0.0
    %2712 = vmatpush.msra.mxu0 0.0
    %2713 = vmatpush.msra.mxu0 0.0
    %2714 = vmatpush.msra.mxu0 0.0
    %2715 = vmatpush.msra.mxu0 0.0
    %2716 = vmatpush.msra.mxu0 0.0
    %2717 = vmatpush.msra.mxu0 %v2641
    %2718 = vmatmul.f32.gmra.mxu0 %v1949
    %v2719 = vpop.f32.mrf.mxu0
    %v2720 = vadd.f32 0.0, %v2719
    %2721 = vdwg.mxu0
    %v2722 = vmax.f32 %v2660, 0.0
    %v2723 = vmax.f32 %v2680, 0.0
    %v2724 = vmax.f32 %v2700, 0.0
    %v2725 = vmax.f32 %v2720, 0.0
    %2726 = vmatpush.msra.mxu0 0.0
    %2727 = vmatpush.msra.mxu0 0.0
    %2728 = vmatpush.msra.mxu0 0.0
    %2729 = vmatpush.msra.mxu0 0.0
    %2730 = vmatpush.msra.mxu0 0.0
    %2731 = vmatpush.msra.mxu0 0.0
    %2732 = vmatpush.msra.mxu0 0.0
    %2733 = vmatpush.msra.mxu0 0.0
    %2734 = vmatpush.msra.mxu0 0.0
    %2735 = vmatpush.msra.mxu0 0.0
    %2736 = vmatpush.msra.mxu0 0.0
    %2737 = vmatpush.msra.mxu0 0.0
    %2738 = vmatpush.msra.mxu0 0.0
    %2739 = vmatpush.msra.mxu0 0.0
    %2740 = vmatpush.msra.mxu0 0.0
    %2741 = vmatpush.msra.mxu0 %v2722
    %2742 = vmatmul.f32.gmra.mxu0 %v2036
    %v2743 = vpop.f32.mrf.mxu0
    %v2744 = vadd.f32 0.0, %v2743
    %2745 = vdwg.mxu0
    %2746 = vmatpush.msra.mxu0 0.0
    %2747 = vmatpush.msra.mxu0 0.0
    %2748 = vmatpush.msra.mxu0 0.0
    %2749 = vmatpush.msra.mxu0 0.0
    %2750 = vmatpush.msra.mxu0 0.0
    %2751 = vmatpush.msra.mxu0 0.0
    %2752 = vmatpush.msra.mxu0 0.0
    %2753 = vmatpush.msra.mxu0 0.0
    %2754 = vmatpush.msra.mxu0 0.0
    %2755 = vmatpush.msra.mxu0 0.0
    %2756 = vmatpush.msra.mxu0 0.0
    %2757 = vmatpush.msra.mxu0 0.0
    %2758 = vmatpush.msra.mxu0 0.0
    %2759 = vmatpush.msra.mxu0 0.0
    %2760 = vmatpush.msra.mxu0 0.0
    %2761 = vmatpush.msra.mxu0 %v2723
    %2762 = vmatmul.f32.gmra.mxu0 %v2036
    %v2763 = vpop.f32.mrf.mxu0
    %v2764 = vadd.f32 0.0, %v2763
    %2765 = vdwg.mxu0
    %2766 = vmatpush.msra.mxu0 0.0
    %2767 = vmatpush.msra.mxu0 0.0
    %2768 = vmatpush.msra.mxu0 0.0
    %2769 = vmatpush.msra.mxu0 0.0
    %2770 = vmatpush.msra.mxu0 0.0
    %2771 = vmatpush.msra.mxu0 0.0
    %2772 = vmatpush.msra.mxu0 0.0
    %2773 = vmatpush.msra.mxu0 0.0
    %2774 = vmatpush.msra.mxu0 0.0
    %2775 = vmatpush.msra.mxu0 0.0
    %2776 = vmatpush.msra.mxu0 0.0
    %2777 = vmatpush.msra.mxu0 0.0
    %2778 = vmatpush.msra.mxu0 0.0
    %2779 = vmatpush.msra.mxu0 0.0
    %2780 = vmatpush.msra.mxu0 0.0
    %2781 = vmatpush.msra.mxu0 %v2724
    %2782 = vmatmul.f32.gmra.mxu0 %v2036
    %v2783 = vpop.f32.mrf.mxu0
    %v2784 = vadd.f32 0.0, %v2783
    %2785 = vdwg.mxu0
    %2786 = vmatpush.msra.mxu0 0.0
    %2787 = vmatpush.msra.mxu0 0.0
    %2788 = vmatpush.msra.mxu0 0.0
    %2789 = vmatpush.msra.mxu0 0.0
    %2790 = vmatpush.msra.mxu0 0.0
    %2791 = vmatpush.msra.mxu0 0.0
    %2792 = vmatpush.msra.mxu0 0.0
    %2793 = vmatpush.msra.mxu0 0.0
    %2794 = vmatpush.msra.mxu0 0.0
    %2795 = vmatpush.msra.mxu0 0.0
    %2796 = vmatpush.msra.mxu0 0.0
    %2797 = vmatpush.msra.mxu0 0.0
    %2798 = vmatpush.msra.mxu0 0.0
    %2799 = vmatpush.msra.mxu0 0.0
    %2800 = vmatpush.msra.mxu0 0.0
    %2801 = vmatpush.msra.mxu0 %v2725
    %2802 = vmatmul.f32.gmra.mxu0 %v2036
    %v2803 = vpop.f32.mrf.mxu0
    %v2804 = vadd.f32 0.0, %v2803
    %2805 = vdwg.mxu0
    %v2806 = vpack.c.bf16 %v2764, %v2744
    %v2807 = vpack.c.bf16 %v2804, %v2784
    %s2808 = scalar_lea.vmem [#allocation8], 64
    %2809 = vst [vmem:[%s2808] sm:$0xff] %v2806
    %2810 = vst [vmem:[%s2808 + $0x8] sm:$0xff] %v2807
    %v2811 = vld [vmem:[%s242 + $0x20] sm:$0xff]
    %v2812 = vld [vmem:[%s242 + $0x28] sm:$0xff]
    %v2813 = vld [vmem:[%s242 + $0x30] sm:$0xff]
    %v2814 = vld [vmem:[%s242 + $0x38] sm:$0xff]
    %2815 = vmatpush.msra.mxu0 0.0
    %2816 = vmatpush.msra.mxu0 0.0
    %2817 = vmatpush.msra.mxu0 0.0
    %2818 = vmatpush.msra.mxu0 0.0
    %2819 = vmatpush.msra.mxu0 0.0
    %2820 = vmatpush.msra.mxu0 0.0
    %2821 = vmatpush.msra.mxu0 0.0
    %2822 = vmatpush.msra.mxu0 0.0
    %2823 = vmatpush.msra.mxu0 0.0
    %2824 = vmatpush.msra.mxu0 0.0
    %2825 = vmatpush.msra.mxu0 0.0
    %2826 = vmatpush.msra.mxu0 0.0
    %2827 = vmatpush.msra.mxu0 0.0
    %2828 = vmatpush.msra.mxu0 0.0
    %2829 = vmatpush.msra.mxu0 0.0
    %2830 = vmatpush.msra.mxu0 %v2811
    %2831 = vmatmul.f32.gmra.mxu0 %v1949
    %v2832 = vpop.f32.mrf.mxu0
    %v2833 = vadd.f32 0.0, %v2832
    %2834 = vdwg.mxu0
    %2835 = vmatpush.msra.mxu0 0.0
    %2836 = vmatpush.msra.mxu0 0.0
    %2837 = vmatpush.msra.mxu0 0.0
    %2838 = vmatpush.msra.mxu0 0.0
    %2839 = vmatpush.msra.mxu0 0.0
    %2840 = vmatpush.msra.mxu0 0.0
    %2841 = vmatpush.msra.mxu0 0.0
    %2842 = vmatpush.msra.mxu0 0.0
    %2843 = vmatpush.msra.mxu0 0.0
    %2844 = vmatpush.msra.mxu0 0.0
    %2845 = vmatpush.msra.mxu0 0.0
    %2846 = vmatpush.msra.mxu0 0.0
    %2847 = vmatpush.msra.mxu0 0.0
    %2848 = vmatpush.msra.mxu0 0.0
    %2849 = vmatpush.msra.mxu0 0.0
    %2850 = vmatpush.msra.mxu0 %v2812
    %2851 = vmatmul.f32.gmra.mxu0 %v1949
    %v2852 = vpop.f32.mrf.mxu0
    %v2853 = vadd.f32 0.0, %v2852
    %2854 = vdwg.mxu0
    %2855 = vmatpush.msra.mxu0 0.0
    %2856 = vmatpush.msra.mxu0 0.0
    %2857 = vmatpush.msra.mxu0 0.0
    %2858 = vmatpush.msra.mxu0 0.0
    %2859 = vmatpush.msra.mxu0 0.0
    %2860 = vmatpush.msra.mxu0 0.0
    %2861 = vmatpush.msra.mxu0 0.0
    %2862 = vmatpush.msra.mxu0 0.0
    %2863 = vmatpush.msra.mxu0 0.0
    %2864 = vmatpush.msra.mxu0 0.0
    %2865 = vmatpush.msra.mxu0 0.0
    %2866 = vmatpush.msra.mxu0 0.0
    %2867 = vmatpush.msra.mxu0 0.0
    %2868 = vmatpush.msra.mxu0 0.0
    %2869 = vmatpush.msra.mxu0 0.0
    %2870 = vmatpush.msra.mxu0 %v2813
    %2871 = vmatmul.f32.gmra.mxu0 %v1949
    %v2872 = vpop.f32.mrf.mxu0
    %v2873 = vadd.f32 0.0, %v2872
    %2874 = vdwg.mxu0
    %2875 = vmatpush.msra.mxu0 0.0
    %2876 = vmatpush.msra.mxu0 0.0
    %2877 = vmatpush.msra.mxu0 0.0
    %2878 = vmatpush.msra.mxu0 0.0
    %2879 = vmatpush.msra.mxu0 0.0
    %2880 = vmatpush.msra.mxu0 0.0
    %2881 = vmatpush.msra.mxu0 0.0
    %2882 = vmatpush.msra.mxu0 0.0
    %2883 = vmatpush.msra.mxu0 0.0
    %2884 = vmatpush.msra.mxu0 0.0
    %2885 = vmatpush.msra.mxu0 0.0
    %2886 = vmatpush.msra.mxu0 0.0
    %2887 = vmatpush.msra.mxu0 0.0
    %2888 = vmatpush.msra.mxu0 0.0
    %2889 = vmatpush.msra.mxu0 0.0
    %2890 = vmatpush.msra.mxu0 %v2814
    %2891 = vmatmul.f32.gmra.mxu0 %v1949
    %v2892 = vpop.f32.mrf.mxu0
    %v2893 = vadd.f32 0.0, %v2892
    %2894 = vdwg.mxu0
    %v2895 = vmax.f32 %v2833, 0.0
    %v2896 = vmax.f32 %v2853, 0.0
    %v2897 = vmax.f32 %v2873, 0.0
    %v2898 = vmax.f32 %v2893, 0.0
    %2899 = vmatpush.msra.mxu0 0.0
    %2900 = vmatpush.msra.mxu0 0.0
    %2901 = vmatpush.msra.mxu0 0.0
    %2902 = vmatpush.msra.mxu0 0.0
    %2903 = vmatpush.msra.mxu0 0.0
    %2904 = vmatpush.msra.mxu0 0.0
    %2905 = vmatpush.msra.mxu0 0.0
    %2906 = vmatpush.msra.mxu0 0.0
    %2907 = vmatpush.msra.mxu0 0.0
    %2908 = vmatpush.msra.mxu0 0.0
    %2909 = vmatpush.msra.mxu0 0.0
    %2910 = vmatpush.msra.mxu0 0.0
    %2911 = vmatpush.msra.mxu0 0.0
    %2912 = vmatpush.msra.mxu0 0.0
    %2913 = vmatpush.msra.mxu0 0.0
    %2914 = vmatpush.msra.mxu0 %v2895
    %2915 = vmatmul.f32.gmra.mxu0 %v2036
    %v2916 = vpop.f32.mrf.mxu0
    %v2917 = vadd.f32 0.0, %v2916
    %2918 = vdwg.mxu0
    %2919 = vmatpush.msra.mxu0 0.0
    %2920 = vmatpush.msra.mxu0 0.0
    %2921 = vmatpush.msra.mxu0 0.0
    %2922 = vmatpush.msra.mxu0 0.0
    %2923 = vmatpush.msra.mxu0 0.0
    %2924 = vmatpush.msra.mxu0 0.0
    %2925 = vmatpush.msra.mxu0 0.0
    %2926 = vmatpush.msra.mxu0 0.0
    %2927 = vmatpush.msra.mxu0 0.0
    %2928 = vmatpush.msra.mxu0 0.0
    %2929 = vmatpush.msra.mxu0 0.0
    %2930 = vmatpush.msra.mxu0 0.0
    %2931 = vmatpush.msra.mxu0 0.0
    %2932 = vmatpush.msra.mxu0 0.0
    %2933 = vmatpush.msra.mxu0 0.0
    %2934 = vmatpush.msra.mxu0 %v2896
    %2935 = vmatmul.f32.gmra.mxu0 %v2036
    %v2936 = vpop.f32.mrf.mxu0
    %v2937 = vadd.f32 0.0, %v2936
    %2938 = vdwg.mxu0
    %2939 = vmatpush.msra.mxu0 0.0
    %2940 = vmatpush.msra.mxu0 0.0
    %2941 = vmatpush.msra.mxu0 0.0
    %2942 = vmatpush.msra.mxu0 0.0
    %2943 = vmatpush.msra.mxu0 0.0
    %2944 = vmatpush.msra.mxu0 0.0
    %2945 = vmatpush.msra.mxu0 0.0
    %2946 = vmatpush.msra.mxu0 0.0
    %2947 = vmatpush.msra.mxu0 0.0
    %2948 = vmatpush.msra.mxu0 0.0
    %2949 = vmatpush.msra.mxu0 0.0
    %2950 = vmatpush.msra.mxu0 0.0
    %2951 = vmatpush.msra.mxu0 0.0
    %2952 = vmatpush.msra.mxu0 0.0
    %2953 = vmatpush.msra.mxu0 0.0
    %2954 = vmatpush.msra.mxu0 %v2897
    %2955 = vmatmul.f32.gmra.mxu0 %v2036
    %v2956 = vpop.f32.mrf.mxu0
    %v2957 = vadd.f32 0.0, %v2956
    %2958 = vdwg.mxu0
    %2959 = vmatpush.msra.mxu0 0.0
    %2960 = vmatpush.msra.mxu0 0.0
    %2961 = vmatpush.msra.mxu0 0.0
    %2962 = vmatpush.msra.mxu0 0.0
    %2963 = vmatpush.msra.mxu0 0.0
    %2964 = vmatpush.msra.mxu0 0.0
    %2965 = vmatpush.msra.mxu0 0.0
    %2966 = vmatpush.msra.mxu0 0.0
    %2967 = vmatpush.msra.mxu0 0.0
    %2968 = vmatpush.msra.mxu0 0.0
    %2969 = vmatpush.msra.mxu0 0.0
    %2970 = vmatpush.msra.mxu0 0.0
    %2971 = vmatpush.msra.mxu0 0.0
    %2972 = vmatpush.msra.mxu0 0.0
    %2973 = vmatpush.msra.mxu0 0.0
    %2974 = vmatpush.msra.mxu0 %v2898
    %2975 = vmatmul.f32.gmra.mxu0 %v2036
    %v2976 = vpop.f32.mrf.mxu0
    %v2977 = vadd.f32 0.0, %v2976
    %2978 = vdwg.mxu0
    %v2979 = vpack.c.bf16 %v2937, %v2917
    %v2980 = vpack.c.bf16 %v2977, %v2957
    %2981 = vst [vmem:[%s2808 + $0x10] sm:$0xff] %v2979
    %2982 = vst [vmem:[%s2808 + $0x18] sm:$0xff] %v2980
    %v2983 = vld [vmem:[%s242 + $0x40] sm:$0xff]
    %v2984 = vld [vmem:[%s242 + $0x48] sm:$0xff]
    %v2985 = vld [vmem:[%s242 + $0x50] sm:$0xff]
    %v2986 = vld [vmem:[%s242 + $0x58] sm:$0xff]
    %2987 = vmatpush.msra.mxu0 0.0
    %2988 = vmatpush.msra.mxu0 0.0
    %2989 = vmatpush.msra.mxu0 0.0
    %2990 = vmatpush.msra.mxu0 0.0
    %2991 = vmatpush.msra.mxu0 0.0
    %2992 = vmatpush.msra.mxu0 0.0
    %2993 = vmatpush.msra.mxu0 0.0
    %2994 = vmatpush.msra.mxu0 0.0
    %2995 = vmatpush.msra.mxu0 0.0
    %2996 = vmatpush.msra.mxu0 0.0
    %2997 = vmatpush.msra.mxu0 0.0
    %2998 = vmatpush.msra.mxu0 0.0
    %2999 = vmatpush.msra.mxu0 0.0
    %3000 = vmatpush.msra.mxu0 0.0
    %3001 = vmatpush.msra.mxu0 0.0
    %3002 = vmatpush.msra.mxu0 %v2983
    %3003 = vmatmul.f32.gmra.mxu0 %v1949
    %v3004 = vpop.f32.mrf.mxu0
    %v3005 = vadd.f32 0.0, %v3004
    %3006 = vdwg.mxu0
    %3007 = vmatpush.msra.mxu0 0.0
    %3008 = vmatpush.msra.mxu0 0.0
    %3009 = vmatpush.msra.mxu0 0.0
    %3010 = vmatpush.msra.mxu0 0.0
    %3011 = vmatpush.msra.mxu0 0.0
    %3012 = vmatpush.msra.mxu0 0.0
    %3013 = vmatpush.msra.mxu0 0.0
    %3014 = vmatpush.msra.mxu0 0.0
    %3015 = vmatpush.msra.mxu0 0.0
    %3016 = vmatpush.msra.mxu0 0.0
    %3017 = vmatpush.msra.mxu0 0.0
    %3018 = vmatpush.msra.mxu0 0.0
    %3019 = vmatpush.msra.mxu0 0.0
    %3020 = vmatpush.msra.mxu0 0.0
    %3021 = vmatpush.msra.mxu0 0.0
    %3022 = vmatpush.msra.mxu0 %v2984
    %3023 = vmatmul.f32.gmra.mxu0 %v1949
    %v3024 = vpop.f32.mrf.mxu0
    %v3025 = vadd.f32 0.0, %v3024
    %3026 = vdwg.mxu0
    %3027 = vmatpush.msra.mxu0 0.0
    %3028 = vmatpush.msra.mxu0 0.0
    %3029 = vmatpush.msra.mxu0 0.0
    %3030 = vmatpush.msra.mxu0 0.0
    %3031 = vmatpush.msra.mxu0 0.0
    %3032 = vmatpush.msra.mxu0 0.0
    %3033 = vmatpush.msra.mxu0 0.0
    %3034 = vmatpush.msra.mxu0 0.0
    %3035 = vmatpush.msra.mxu0 0.0
    %3036 = vmatpush.msra.mxu0 0.0
    %3037 = vmatpush.msra.mxu0 0.0
    %3038 = vmatpush.msra.mxu0 0.0
    %3039 = vmatpush.msra.mxu0 0.0
    %3040 = vmatpush.msra.mxu0 0.0
    %3041 = vmatpush.msra.mxu0 0.0
    %3042 = vmatpush.msra.mxu0 %v2985
    %3043 = vmatmul.f32.gmra.mxu0 %v1949
    %v3044 = vpop.f32.mrf.mxu0
    %v3045 = vadd.f32 0.0, %v3044
    %3046 = vdwg.mxu0
    %3047 = vmatpush.msra.mxu0 0.0
    %3048 = vmatpush.msra.mxu0 0.0
    %3049 = vmatpush.msra.mxu0 0.0
    %3050 = vmatpush.msra.mxu0 0.0
    %3051 = vmatpush.msra.mxu0 0.0
    %3052 = vmatpush.msra.mxu0 0.0
    %3053 = vmatpush.msra.mxu0 0.0
    %3054 = vmatpush.msra.mxu0 0.0
    %3055 = vmatpush.msra.mxu0 0.0
    %3056 = vmatpush.msra.mxu0 0.0
    %3057 = vmatpush.msra.mxu0 0.0
    %3058 = vmatpush.msra.mxu0 0.0
    %3059 = vmatpush.msra.mxu0 0.0
    %3060 = vmatpush.msra.mxu0 0.0
    %3061 = vmatpush.msra.mxu0 0.0
    %3062 = vmatpush.msra.mxu0 %v2986
    %3063 = vmatmul.f32.gmra.mxu0 %v1949
    %v3064 = vpop.f32.mrf.mxu0
    %v3065 = vadd.f32 0.0, %v3064
    %3066 = vdwg.mxu0
    %v3067 = vmax.f32 %v3005, 0.0
    %v3068 = vmax.f32 %v3025, 0.0
    %v3069 = vmax.f32 %v3045, 0.0
    %v3070 = vmax.f32 %v3065, 0.0
    %3071 = vmatpush.msra.mxu0 0.0
    %3072 = vmatpush.msra.mxu0 0.0
    %3073 = vmatpush.msra.mxu0 0.0
    %3074 = vmatpush.msra.mxu0 0.0
    %3075 = vmatpush.msra.mxu0 0.0
    %3076 = vmatpush.msra.mxu0 0.0
    %3077 = vmatpush.msra.mxu0 0.0
    %3078 = vmatpush.msra.mxu0 0.0
    %3079 = vmatpush.msra.mxu0 0.0
    %3080 = vmatpush.msra.mxu0 0.0
    %3081 = vmatpush.msra.mxu0 0.0
    %3082 = vmatpush.msra.mxu0 0.0
    %3083 = vmatpush.msra.mxu0 0.0
    %3084 = vmatpush.msra.mxu0 0.0
    %3085 = vmatpush.msra.mxu0 0.0
    %3086 = vmatpush.msra.mxu0 %v3067
    %3087 = vmatmul.f32.gmra.mxu0 %v2036
    %v3088 = vpop.f32.mrf.mxu0
    %v3089 = vadd.f32 0.0, %v3088
    %3090 = vdwg.mxu0
    %3091 = vmatpush.msra.mxu0 0.0
    %3092 = vmatpush.msra.mxu0 0.0
    %3093 = vmatpush.msra.mxu0 0.0
    %3094 = vmatpush.msra.mxu0 0.0
    %3095 = vmatpush.msra.mxu0 0.0
    %3096 = vmatpush.msra.mxu0 0.0
    %3097 = vmatpush.msra.mxu0 0.0
    %3098 = vmatpush.msra.mxu0 0.0
    %3099 = vmatpush.msra.mxu0 0.0
    %3100 = vmatpush.msra.mxu0 0.0
    %3101 = vmatpush.msra.mxu0 0.0
    %3102 = vmatpush.msra.mxu0 0.0
    %3103 = vmatpush.msra.mxu0 0.0
    %3104 = vmatpush.msra.mxu0 0.0
    %3105 = vmatpush.msra.mxu0 0.0
    %3106 = vmatpush.msra.mxu0 %v3068
    %3107 = vmatmul.f32.gmra.mxu0 %v2036
    %v3108 = vpop.f32.mrf.mxu0
    %v3109 = vadd.f32 0.0, %v3108
    %3110 = vdwg.mxu0
    %3111 = vmatpush.msra.mxu0 0.0
    %3112 = vmatpush.msra.mxu0 0.0
    %3113 = vmatpush.msra.mxu0 0.0
    %3114 = vmatpush.msra.mxu0 0.0
    %3115 = vmatpush.msra.mxu0 0.0
    %3116 = vmatpush.msra.mxu0 0.0
    %3117 = vmatpush.msra.mxu0 0.0
    %3118 = vmatpush.msra.mxu0 0.0
    %3119 = vmatpush.msra.mxu0 0.0
    %3120 = vmatpush.msra.mxu0 0.0
    %3121 = vmatpush.msra.mxu0 0.0
    %3122 = vmatpush.msra.mxu0 0.0
    %3123 = vmatpush.msra.mxu0 0.0
    %3124 = vmatpush.msra.mxu0 0.0
    %3125 = vmatpush.msra.mxu0 0.0
    %3126 = vmatpush.msra.mxu0 %v3069
    %3127 = vmatmul.f32.gmra.mxu0 %v2036
    %v3128 = vpop.f32.mrf.mxu0
    %v3129 = vadd.f32 0.0, %v3128
    %3130 = vdwg.mxu0
    %3131 = vmatpush.msra.mxu0 0.0
    %3132 = vmatpush.msra.mxu0 0.0
    %3133 = vmatpush.msra.mxu0 0.0
    %3134 = vmatpush.msra.mxu0 0.0
    %3135 = vmatpush.msra.mxu0 0.0
    %3136 = vmatpush.msra.mxu0 0.0
    %3137 = vmatpush.msra.mxu0 0.0
    %3138 = vmatpush.msra.mxu0 0.0
    %3139 = vmatpush.msra.mxu0 0.0
    %3140 = vmatpush.msra.mxu0 0.0
    %3141 = vmatpush.msra.mxu0 0.0
    %3142 = vmatpush.msra.mxu0 0.0
    %3143 = vmatpush.msra.mxu0 0.0
    %3144 = vmatpush.msra.mxu0 0.0
    %3145 = vmatpush.msra.mxu0 0.0
    %3146 = vmatpush.msra.mxu0 %v3070
    %3147 = vmatmul.f32.gmra.mxu0 %v2036
    %v3148 = vpop.f32.mrf.mxu0
    %v3149 = vadd.f32 0.0, %v3148
    %3150 = vdwg.mxu0
    %v3151 = vpack.c.bf16 %v3109, %v3089
    %v3152 = vpack.c.bf16 %v3149, %v3129
    %3153 = vst [vmem:[%s2808 + $0x20] sm:$0xff] %v3151
    %3154 = vst [vmem:[%s2808 + $0x28] sm:$0xff] %v3152
    %v3155 = vld [vmem:[%s242 + $0x60] sm:$0xff]
    %v3156 = vld [vmem:[%s242 + $0x68] sm:$0xff]
    %v3157 = vld [vmem:[%s242 + $0x70] sm:$0xff]
    %v3158 = vld [vmem:[%s242 + $0x78] sm:$0xff]
    %3159 = vmatpush.msra.mxu0 0.0
    %3160 = vmatpush.msra.mxu0 0.0
    %3161 = vmatpush.msra.mxu0 0.0
    %3162 = vmatpush.msra.mxu0 0.0
    %3163 = vmatpush.msra.mxu0 0.0
    %3164 = vmatpush.msra.mxu0 0.0
    %3165 = vmatpush.msra.mxu0 0.0
    %3166 = vmatpush.msra.mxu0 0.0
    %3167 = vmatpush.msra.mxu0 0.0
    %3168 = vmatpush.msra.mxu0 0.0
    %3169 = vmatpush.msra.mxu0 0.0
    %3170 = vmatpush.msra.mxu0 0.0
    %3171 = vmatpush.msra.mxu0 0.0
    %3172 = vmatpush.msra.mxu0 0.0
    %3173 = vmatpush.msra.mxu0 0.0
    %3174 = vmatpush.msra.mxu0 %v3155
    %3175 = vmatmul.f32.gmra.mxu0 %v1949
    %v3176 = vpop.f32.mrf.mxu0
    %v3177 = vadd.f32 0.0, %v3176
    %3178 = vdwg.mxu0
    %3179 = vmatpush.msra.mxu0 0.0
    %3180 = vmatpush.msra.mxu0 0.0
    %3181 = vmatpush.msra.mxu0 0.0
    %3182 = vmatpush.msra.mxu0 0.0
    %3183 = vmatpush.msra.mxu0 0.0
    %3184 = vmatpush.msra.mxu0 0.0
    %3185 = vmatpush.msra.mxu0 0.0
    %3186 = vmatpush.msra.mxu0 0.0
    %3187 = vmatpush.msra.mxu0 0.0
    %3188 = vmatpush.msra.mxu0 0.0
    %3189 = vmatpush.msra.mxu0 0.0
    %3190 = vmatpush.msra.mxu0 0.0
    %3191 = vmatpush.msra.mxu0 0.0
    %3192 = vmatpush.msra.mxu0 0.0
    %3193 = vmatpush.msra.mxu0 0.0
    %3194 = vmatpush.msra.mxu0 %v3156
    %3195 = vmatmul.f32.gmra.mxu0 %v1949
    %v3196 = vpop.f32.mrf.mxu0
    %v3197 = vadd.f32 0.0, %v3196
    %3198 = vdwg.mxu0
    %3199 = vmatpush.msra.mxu0 0.0
    %3200 = vmatpush.msra.mxu0 0.0
    %3201 = vmatpush.msra.mxu0 0.0
    %3202 = vmatpush.msra.mxu0 0.0
    %3203 = vmatpush.msra.mxu0 0.0
    %3204 = vmatpush.msra.mxu0 0.0
    %3205 = vmatpush.msra.mxu0 0.0
    %3206 = vmatpush.msra.mxu0 0.0
    %3207 = vmatpush.msra.mxu0 0.0
    %3208 = vmatpush.msra.mxu0 0.0
    %3209 = vmatpush.msra.mxu0 0.0
    %3210 = vmatpush.msra.mxu0 0.0
    %3211 = vmatpush.msra.mxu0 0.0
    %3212 = vmatpush.msra.mxu0 0.0
    %3213 = vmatpush.msra.mxu0 0.0
    %3214 = vmatpush.msra.mxu0 %v3157
    %3215 = vmatmul.f32.gmra.mxu0 %v1949
    %v3216 = vpop.f32.mrf.mxu0
    %v3217 = vadd.f32 0.0, %v3216
    %3218 = vdwg.mxu0
    %3219 = vmatpush.msra.mxu0 0.0
    %3220 = vmatpush.msra.mxu0 0.0
    %3221 = vmatpush.msra.mxu0 0.0
    %3222 = vmatpush.msra.mxu0 0.0
    %3223 = vmatpush.msra.mxu0 0.0
    %3224 = vmatpush.msra.mxu0 0.0
    %3225 = vmatpush.msra.mxu0 0.0
    %3226 = vmatpush.msra.mxu0 0.0
    %3227 = vmatpush.msra.mxu0 0.0
    %3228 = vmatpush.msra.mxu0 0.0
    %3229 = vmatpush.msra.mxu0 0.0
    %3230 = vmatpush.msra.mxu0 0.0
    %3231 = vmatpush.msra.mxu0 0.0
    %3232 = vmatpush.msra.mxu0 0.0
    %3233 = vmatpush.msra.mxu0 0.0
    %3234 = vmatpush.msra.mxu0 %v3158
    %3235 = vmatmul.f32.gmra.mxu0 %v1949
    %v3236 = vpop.f32.mrf.mxu0
    %v3237 = vadd.f32 0.0, %v3236
    %3238 = vdwg.mxu0
    %v3239 = vmax.f32 %v3177, 0.0
    %v3240 = vmax.f32 %v3197, 0.0
    %v3241 = vmax.f32 %v3217, 0.0
    %v3242 = vmax.f32 %v3237, 0.0
    %3243 = vmatpush.msra.mxu0 0.0
    %3244 = vmatpush.msra.mxu0 0.0
    %3245 = vmatpush.msra.mxu0 0.0
    %3246 = vmatpush.msra.mxu0 0.0
    %3247 = vmatpush.msra.mxu0 0.0
    %3248 = vmatpush.msra.mxu0 0.0
    %3249 = vmatpush.msra.mxu0 0.0
    %3250 = vmatpush.msra.mxu0 0.0
    %3251 = vmatpush.msra.mxu0 0.0
    %3252 = vmatpush.msra.mxu0 0.0
    %3253 = vmatpush.msra.mxu0 0.0
    %3254 = vmatpush.msra.mxu0 0.0
    %3255 = vmatpush.msra.mxu0 0.0
    %3256 = vmatpush.msra.mxu0 0.0
    %3257 = vmatpush.msra.mxu0 0.0
    %3258 = vmatpush.msra.mxu0 %v3239
    %3259 = vmatmul.f32.gmra.mxu0 %v2036
    %v3260 = vpop.f32.mrf.mxu0
    %v3261 = vadd.f32 0.0, %v3260
    %3262 = vdwg.mxu0
    %3263 = vmatpush.msra.mxu0 0.0
    %3264 = vmatpush.msra.mxu0 0.0
    %3265 = vmatpush.msra.mxu0 0.0
    %3266 = vmatpush.msra.mxu0 0.0
    %3267 = vmatpush.msra.mxu0 0.0
    %3268 = vmatpush.msra.mxu0 0.0
    %3269 = vmatpush.msra.mxu0 0.0
    %3270 = vmatpush.msra.mxu0 0.0
    %3271 = vmatpush.msra.mxu0 0.0
    %3272 = vmatpush.msra.mxu0 0.0
    %3273 = vmatpush.msra.mxu0 0.0
    %3274 = vmatpush.msra.mxu0 0.0
    %3275 = vmatpush.msra.mxu0 0.0
    %3276 = vmatpush.msra.mxu0 0.0
    %3277 = vmatpush.msra.mxu0 0.0
    %3278 = vmatpush.msra.mxu0 %v3240
    %3279 = vmatmul.f32.gmra.mxu0 %v2036
    %v3280 = vpop.f32.mrf.mxu0
    %v3281 = vadd.f32 0.0, %v3280
    %3282 = vdwg.mxu0
    %3283 = vmatpush.msra.mxu0 0.0
    %3284 = vmatpush.msra.mxu0 0.0
    %3285 = vmatpush.msra.mxu0 0.0
    %3286 = vmatpush.msra.mxu0 0.0
    %3287 = vmatpush.msra.mxu0 0.0
    %3288 = vmatpush.msra.mxu0 0.0
    %3289 = vmatpush.msra.mxu0 0.0
    %3290 = vmatpush.msra.mxu0 0.0
    %3291 = vmatpush.msra.mxu0 0.0
    %3292 = vmatpush.msra.mxu0 0.0
    %3293 = vmatpush.msra.mxu0 0.0
    %3294 = vmatpush.msra.mxu0 0.0
    %3295 = vmatpush.msra.mxu0 0.0
    %3296 = vmatpush.msra.mxu0 0.0
    %3297 = vmatpush.msra.mxu0 0.0
    %3298 = vmatpush.msra.mxu0 %v3241
    %3299 = vmatmul.f32.gmra.mxu0 %v2036
    %v3300 = vpop.f32.mrf.mxu0
    %v3301 = vadd.f32 0.0, %v3300
    %3302 = vdwg.mxu0
    %3303 = vmatpush.msra.mxu0 0.0
    %3304 = vmatpush.msra.mxu0 0.0
    %3305 = vmatpush.msra.mxu0 0.0
    %3306 = vmatpush.msra.mxu0 0.0
    %3307 = vmatpush.msra.mxu0 0.0
    %3308 = vmatpush.msra.mxu0 0.0
    %3309 = vmatpush.msra.mxu0 0.0
    %3310 = vmatpush.msra.mxu0 0.0
    %3311 = vmatpush.msra.mxu0 0.0
    %3312 = vmatpush.msra.mxu0 0.0
    %3313 = vmatpush.msra.mxu0 0.0
    %3314 = vmatpush.msra.mxu0 0.0
    %3315 = vmatpush.msra.mxu0 0.0
    %3316 = vmatpush.msra.mxu0 0.0
    %3317 = vmatpush.msra.mxu0 0.0
    %3318 = vmatpush.msra.mxu0 %v3242
    %3319 = vmatmul.f32.gmra.mxu0 %v2036
    %v3320 = vpop.f32.mrf.mxu0
    %v3321 = vadd.f32 0.0, %v3320
    %3322 = vdwg.mxu0
    %v3323 = vpack.c.bf16 %v3281, %v3261
    %v3324 = vpack.c.bf16 %v3321, %v3301
    %3325 = vst [vmem:[%s2808 + $0x30] sm:$0xff] %v3323
    %3326 = vst [vmem:[%s2808 + $0x38] sm:$0xff] %v3324
    // Predicated region
    $region26: #{tpu_custom_call.1} parent=1 // pred_check
      _
    $region27: #{tpu_custom_call.1} parent=1 // pred_check_branch
      %3328 = sbr.rel (0) target = $region29
    $region28: #{tpu_custom_call.1} parent=1 // pred_region
      %3330 = vsyncadd [#allocation5], 0
      %s3331 = sshll.u32 [#allocation8], 4
      %s3332 = int_to_ptr.vmem [resolvable:$true] %s3331
      %s3333 = sshll.u32 %s4, 4
      %s3334 = int_to_ptr.hbm [resolvable:$true] %s3333
      %3339 = dma.vmem_to_hbm [thread:$0]  %s3332, 2048, %s3334, [#allocation5], 1024, 1024, 64
    $region29: #{tpu_custom_call.1} parent=1 // pred_fallthru
      _
    // Predicated region
    $region30: #{tpu_custom_call.1} parent=1 // pred_check
      _
    $region31: #{tpu_custom_call.1} parent=1 // pred_check_branch
      %3341 = sbr.rel (0) target = $region33
    $region32: #{tpu_custom_call.1} parent=1 // pred_region
      %3343 = dma.done [#allocation5], 2048
    $region33: #{tpu_custom_call.1} parent=1 // pred_fallthru
      _
    %3344 = vsyncpa [#allocation4], 1
    %3345 = vsyncpa [#allocation7], 1
    %3346 = vsyncpa [#allocation5], 1

</llo_original>
